<compile_context>
chip_gen: v7x
topology: tpu7x:2x2x1
jax: 0.10.0
libtpu: 0.0.40
codegen_flags: <defaults>
</compile_context>

<pallas_src>
import functools

import jax
import jax.numpy as jnp
from jax.experimental import pallas as pl
from jax.experimental.pallas import tpu as pltpu


# ----------------------------------------------------------------------------
# Fused kernel: generator MLP -> rescale -> Boolean STL formula
# ----------------------------------------------------------------------------
def _fused_kernel(obs_ref, noise_ref, w1o_ref, w1n_ref, b1_ref,
                  w2x_ref, w2y_ref, b2x_ref, b2y_ref, out_ref,
                  *, off_x, sc_x, off_y, sc_y):
    # ---- stand-in generator: 2-layer tanh MLP, bf16 MXU operands (weights pre-cast
    # in the wrapper), f32 accumulation. The input concat is replaced by summing two
    # matmuls against the once-split first-layer weights. ----
    h = jnp.dot(obs_ref[...].astype(jnp.bfloat16), w1o_ref[...],
                preferred_element_type=jnp.float32)
    h = h + jnp.dot(noise_ref[...].astype(jnp.bfloat16), w1n_ref[...],
                    preferred_element_type=jnp.float32)
    h = jnp.tanh(h + b1_ref[...])
    hb = h.astype(jnp.bfloat16)

    # ---- per-channel generator head: two lane-aligned matmuls (no lane-offset slice
    # of a fused [., 2T] output). sx/sy are the x / y trajectories, tanh-range. ----
    sx = jnp.tanh(jnp.dot(hb, w2x_ref[...], preferred_element_type=jnp.float32)
                  + b2x_ref[...])
    sy = jnp.tanh(jnp.dot(hb, w2y_ref[...], preferred_element_type=jnp.float32)
                  + b2y_ref[...])

    # ---- rescale folded to a single multiply-add per element (constants baked) ----
    # rescaled = mins + (sig + 1) * (maxs - mins) / 2  ==  sig * scale + (mins + scale)
    x = sx * sc_x + off_x
    y = sy * sc_y + off_y

    # ---- Boolean STL predicates as strict comparisons, kept boolean ----
    # atomic_predicate: sign(relu(x - 0)) == 1 iff x > 0; sign(relu(30 - x)) == 1 iff x < 30
    in_box = (x > 0.0) & (x < 30.0) & (y > 0.0) & (y < 30.0)

    # atomic_predicate_norm (lte=False): sign(relu(||p - C|| - R)) == 1 iff d > R iff d^2 > R^2
    def outside(cx, cy, r):
        dx = x - cx
        dy = y - cy
        return dx * dx + dy * dy > r * r

    ok = (in_box
          & outside(7.5, 22.5, 2.5)
          & outside(13.0, 13.0, 3.0)
          & outside(22.5, 7.5, 2.5)
          & outside(19.0, 21.0, 2.0))          # [TB, T] bool — bAnd chain

    # bAlways(...)[:, 0]: AND over the whole horizon. Reduce as an int32 min (boolean
    # AND), cast only the reduced vector to f32, and store it as a lane-dense (1, TB)
    # row (unmasked vst) — the column->row move touches just TB elements.
    col = jnp.min(ok.astype(jnp.int32), axis=1, keepdims=True)   # [TB, 1] in {0, 1}
    out_ref[...] = col.astype(jnp.float32).T                     # (1, TB) row


# ----------------------------------------------------------------------------
# Tiling helpers
# ----------------------------------------------------------------------------
def _tensorcores_per_chip():
    # v7x-class chips expose 2 TensorCores per chip (the "parallel" grid axis shards
    # across them); v5e/v6e have a single TensorCore, where extra grid steps are pure
    # per-step overhead, so we prefer a single whole-batch tile there.
    try:
        kind = jax.devices()[0].device_kind.lower()
    except Exception:
        return 1
    if ("v7" in kind) or ("tpu7" in kind) or ("v4" in kind) or ("v5p" in kind):
        return 2
    return 1


def _pick_batch_tile(B, cores):
    # One tile per TensorCore when the batch splits into lane-aligned (multiple-of-128)
    # tiles; otherwise the largest multiple-of-128 divisor of B, capped at 2048 so the
    # per-tile working set stays well inside every generation's scoped-VMEM default
    # (v5e 16 MiB / v6e 32 MiB / v7x 32 MiB); fall back to the whole batch as one tile.
    if cores > 1 and B % (128 * cores) == 0 and (B // cores) <= 2048:
        return B // cores
    for cand in (2048, 1024, 512, 256, 128):
        if B % cand == 0:
            return cand
    return B


# ----------------------------------------------------------------------------
# Wrapper
# ----------------------------------------------------------------------------
def cond_gen_with_bool_stl(obs_data, noise, params, mins, maxs):
    """obs_data: [B, 2, T_obs] f32, noise: [B, Z] f32.
    params: (w1 [2*T_obs+Z, H], b1 [1, H], w2 [H, 2*T], b2 [1, 2*T]) stand-in generator.
    mins/maxs: per-channel (x, y) rescale bounds (MINS / MAXES of the module).
    Returns [B] float32 in {0., 1.} — formula.evaluate(rescaled_signal)[:, 0]."""
    w1, b1, w2, b2 = params
    B = obs_data.shape[0]
    D_obs = obs_data.shape[1] * obs_data.shape[2]
    Z = noise.shape[1]
    H = w1.shape[1]
    T = w2.shape[1] // 2

    # Rescale baked as Python constants (MINS/MAXES are fixed at module-construction
    # time in the PyTorch spec). If they ever become runtime tensors, pass them as
    # SMEM scalars (PrefetchScalarGridSpec) instead to avoid retraces.
    min_x, min_y = float(mins[0]), float(mins[1])
    max_x, max_y = float(maxs[0]), float(maxs[1])
    sc_x = (max_x - min_x) * 0.5
    sc_y = (max_y - min_y) * 0.5
    off_x = min_x + sc_x
    off_y = min_y + sc_y

    # One-time wrapper-side parameter prep:
    #   * w1 split at the obs/noise concat boundary (kernel sums two matmuls instead of
    #     reading a wrapper-side [B, D_in] concat from HBM),
    #   * w2/b2 split per output channel (both channels lane-aligned at offset 0),
    #   * weights pre-cast to bf16 (MXU accumulates in f32; biases stay f32).
    w1o = w1[:D_obs].astype(jnp.bfloat16)
    w1n = w1[D_obs:].astype(jnp.bfloat16)
    w2x = w2[:, :T].astype(jnp.bfloat16)
    w2y = w2[:, T:].astype(jnp.bfloat16)
    b1f = b1.astype(jnp.float32)
    b2x = b2[:, :T].astype(jnp.float32)
    b2y = b2[:, T:].astype(jnp.float32)

    obs_flat = obs_data.reshape(B, D_obs).astype(jnp.float32)
    noise = noise.astype(jnp.float32)

    TB = _pick_batch_tile(B, _tensorcores_per_chip())
    num_tiles = B // TB

    kernel = functools.partial(
        _fused_kernel, off_x=off_x, sc_x=sc_x, off_y=off_y, sc_y=sc_y)

    out = pl.pallas_call(
        kernel,
        out_shape=jax.ShapeDtypeStruct((1, B), jnp.float32),   # lane-dense output row
        grid_spec=pltpu.PrefetchScalarGridSpec(
            num_scalar_prefetch=0,
            grid=(num_tiles,),
            in_specs=[
                pl.BlockSpec((TB, D_obs), lambda i: (i, 0)),   # obs tile per batch block
                pl.BlockSpec((TB, Z), lambda i: (i, 0)),       # noise tile per batch block
                pl.BlockSpec((D_obs, H), lambda i: (0, 0)),    # w1 (obs rows, bf16, replicated)
                pl.BlockSpec((Z, H), lambda i: (0, 0)),        # w1 (noise rows, bf16, replicated)
                pl.BlockSpec((1, H), lambda i: (0, 0)),        # b1 (replicated)
                pl.BlockSpec((H, T), lambda i: (0, 0)),        # w2 x-channel (bf16, replicated)
                pl.BlockSpec((H, T), lambda i: (0, 0)),        # w2 y-channel (bf16, replicated)
                pl.BlockSpec((1, T), lambda i: (0, 0)),        # b2 x-channel
                pl.BlockSpec((1, T), lambda i: (0, 0)),        # b2 y-channel
            ],
            out_specs=pl.BlockSpec((1, TB), lambda i: (0, i)),
        ),
        compiler_params=pltpu.CompilerParams(
            dimension_semantics=("parallel",)),
    )(obs_flat, noise, w1o, w1n, b1f, w2x, w2y, b2x, b2y)

    return out[0]  # [B], matches `formula.evaluate(...)[:, 0]`


if __name__ == "__main__":
    # small deterministic shapes; B=256 -> one whole-batch tile on v5e/v6e,
    # two 128-row parallel tiles on v7x-class chips.
    B, T_OBS, T, Z, H = 256, 8, 16, 8, 32
    D_IN = 2 * T_OBS + Z

    key = jax.random.PRNGKey(0)
    k_obs, k_noise, k_w1, k_w2 = jax.random.split(key, 4)

    obs_data = jax.random.uniform(k_obs, (B, 2, T_OBS), jnp.float32, 0.0, 30.0)
    noise = jax.random.normal(k_noise, (B, Z), jnp.float32)

    # deterministic synthetic generator parameters (stand-in for the external module)
    w1 = 0.3 * jax.random.normal(k_w1, (D_IN, H), jnp.float32)
    b1 = jnp.zeros((1, H), jnp.float32)
    w2 = 0.3 * jax.random.normal(k_w2, (H, 2 * T), jnp.float32)
    b2 = jnp.zeros((1, 2 * T), jnp.float32)

    # MINS / MAXES (per-channel rescale bounds for x and y)
    MINS = (0.0, 0.0)
    MAXES = (30.0, 30.0)

    out = cond_gen_with_bool_stl(obs_data, noise, (w1, b1, w2, b2), MINS, MAXES)
    out = jax.block_until_ready(out)
    assert out.shape == (B,)
    assert bool(jnp.all((out == 0.0) | (out == 1.0)))
    print("KERNEL_OK")
</pallas_src>

<mosaic_0001>
module attributes {stable_mosaic.version = 11 : i64} {
  func.func @_fused_kernel(%arg0: i32, %arg1: memref<256x16xf32, #tpu.memory_space<vmem>>, %arg2: memref<256x8xf32, #tpu.memory_space<vmem>>, %arg3: memref<16x32xbf16, #tpu.memory_space<vmem>>, %arg4: memref<8x32xbf16, #tpu.memory_space<vmem>>, %arg5: memref<1x32xf32, #tpu.memory_space<vmem>>, %arg6: memref<32x16xbf16, #tpu.memory_space<vmem>>, %arg7: memref<32x16xbf16, #tpu.memory_space<vmem>>, %arg8: memref<1x16xf32, #tpu.memory_space<vmem>>, %arg9: memref<1x16xf32, #tpu.memory_space<vmem>>, %arg10: memref<1x256xf32, #tpu.memory_space<vmem>>) attributes {dimension_semantics = [#tpu.dimension_semantics<parallel>], iteration_bounds = array<i64: 1>, scalar_prefetch = 0 : i64, scratch_operands = 0 : i64, tpu.core_type = #tpu.core_type<tc>, window_params = [{transform_indices = @transform_0, window_bounds = array<i64: 256, 16>}, {transform_indices = @transform_1, window_bounds = array<i64: 256, 8>}, {pipeline_mode = #tpu.pipeline_mode<synchronous>, transform_indices = @transform_2, window_bounds = array<i64: 16, 32>}, {pipeline_mode = #tpu.pipeline_mode<synchronous>, transform_indices = @transform_3, window_bounds = array<i64: 8, 32>}, {pipeline_mode = #tpu.pipeline_mode<synchronous>, transform_indices = @transform_4, window_bounds = array<i64: 1, 32>}, {pipeline_mode = #tpu.pipeline_mode<synchronous>, transform_indices = @transform_5, window_bounds = array<i64: 32, 16>}, {pipeline_mode = #tpu.pipeline_mode<synchronous>, transform_indices = @transform_6, window_bounds = array<i64: 32, 16>}, {pipeline_mode = #tpu.pipeline_mode<synchronous>, transform_indices = @transform_7, window_bounds = array<i64: 1, 16>}, {pipeline_mode = #tpu.pipeline_mode<synchronous>, transform_indices = @transform_8, window_bounds = array<i64: 1, 16>}, {transform_indices = @transform_9, window_bounds = array<i64: 1, 256>}]} {
    %c0 = arith.constant 0 : index
    %c0_0 = arith.constant 0 : index
    %0 = vector.load %arg1[%c0, %c0_0] : memref<256x16xf32, #tpu.memory_space<vmem>>, vector<256x16xf32>
    %1 = arith.truncf %0 : vector<256x16xf32> to vector<256x16xbf16>
    %c0_1 = arith.constant 0 : index
    %c0_2 = arith.constant 0 : index
    %2 = vector.load %arg3[%c0_1, %c0_2] : memref<16x32xbf16, #tpu.memory_space<vmem>>, vector<16x32xbf16>
    %cst = arith.constant dense<0.000000e+00> : vector<256x32xf32>
    %3 = tpu.matmul %1, %2, %cst {dimension_numbers = #tpu.dot_dimension_numbers<[1], [0], [0], [1], [0, 0, 1, 1], [], []>} : vector<256x16xbf16>, vector<16x32xbf16>, vector<256x32xf32> -> vector<256x32xf32>
    %c0_3 = arith.constant 0 : index
    %c0_4 = arith.constant 0 : index
    %4 = vector.load %arg2[%c0_3, %c0_4] : memref<256x8xf32, #tpu.memory_space<vmem>>, vector<256x8xf32>
    %5 = arith.truncf %4 : vector<256x8xf32> to vector<256x8xbf16>
    %c0_5 = arith.constant 0 : index
    %c0_6 = arith.constant 0 : index
    %6 = vector.load %arg4[%c0_5, %c0_6] : memref<8x32xbf16, #tpu.memory_space<vmem>>, vector<8x32xbf16>
    %cst_7 = arith.constant dense<0.000000e+00> : vector<256x32xf32>
    %7 = tpu.matmul %5, %6, %cst_7 {dimension_numbers = #tpu.dot_dimension_numbers<[1], [0], [0], [1], [0, 0, 1, 1], [], []>} : vector<256x8xbf16>, vector<8x32xbf16>, vector<256x32xf32> -> vector<256x32xf32>
    %8 = arith.addf %3, %7 : vector<256x32xf32>
    %c0_8 = arith.constant 0 : index
    %c0_9 = arith.constant 0 : index
    %9 = vector.load %arg5[%c0_8, %c0_9] : memref<1x32xf32, #tpu.memory_space<vmem>>, vector<1x32xf32>
    %10 = vector.broadcast %9 : vector<1x32xf32> to vector<256x32xf32>
    %11 = arith.addf %8, %10 : vector<256x32xf32>
    %12 = math.tanh %11 : vector<256x32xf32>
    %13 = arith.truncf %12 : vector<256x32xf32> to vector<256x32xbf16>
    %c0_10 = arith.constant 0 : index
    %c0_11 = arith.constant 0 : index
    %14 = vector.load %arg6[%c0_10, %c0_11] : memref<32x16xbf16, #tpu.memory_space<vmem>>, vector<32x16xbf16>
    %cst_12 = arith.constant dense<0.000000e+00> : vector<256x16xf32>
    %15 = tpu.matmul %13, %14, %cst_12 {dimension_numbers = #tpu.dot_dimension_numbers<[1], [0], [0], [1], [0, 0, 1, 1], [], []>} : vector<256x32xbf16>, vector<32x16xbf16>, vector<256x16xf32> -> vector<256x16xf32>
    %c0_13 = arith.constant 0 : index
    %c0_14 = arith.constant 0 : index
    %16 = vector.load %arg8[%c0_13, %c0_14] : memref<1x16xf32, #tpu.memory_space<vmem>>, vector<1x16xf32>
    %17 = vector.broadcast %16 : vector<1x16xf32> to vector<256x16xf32>
    %18 = arith.addf %15, %17 : vector<256x16xf32>
    %19 = math.tanh %18 : vector<256x16xf32>
    %c0_15 = arith.constant 0 : index
    %c0_16 = arith.constant 0 : index
    %20 = vector.load %arg7[%c0_15, %c0_16] : memref<32x16xbf16, #tpu.memory_space<vmem>>, vector<32x16xbf16>
    %cst_17 = arith.constant dense<0.000000e+00> : vector<256x16xf32>
    %21 = tpu.matmul %13, %20, %cst_17 {dimension_numbers = #tpu.dot_dimension_numbers<[1], [0], [0], [1], [0, 0, 1, 1], [], []>} : vector<256x32xbf16>, vector<32x16xbf16>, vector<256x16xf32> -> vector<256x16xf32>
    %c0_18 = arith.constant 0 : index
    %c0_19 = arith.constant 0 : index
    %22 = vector.load %arg9[%c0_18, %c0_19] : memref<1x16xf32, #tpu.memory_space<vmem>>, vector<1x16xf32>
    %23 = vector.broadcast %22 : vector<1x16xf32> to vector<256x16xf32>
    %24 = arith.addf %21, %23 : vector<256x16xf32>
    %25 = math.tanh %24 : vector<256x16xf32>
    %cst_20 = arith.constant 1.500000e+01 : f32
    %26 = vector.broadcast %cst_20 : f32 to vector<256x16xf32>
    %27 = arith.mulf %19, %26 : vector<256x16xf32>
    %cst_21 = arith.constant 1.500000e+01 : f32
    %28 = vector.broadcast %cst_21 : f32 to vector<256x16xf32>
    %29 = arith.addf %27, %28 : vector<256x16xf32>
    %cst_22 = arith.constant 1.500000e+01 : f32
    %30 = vector.broadcast %cst_22 : f32 to vector<256x16xf32>
    %31 = arith.mulf %25, %30 : vector<256x16xf32>
    %cst_23 = arith.constant 1.500000e+01 : f32
    %32 = vector.broadcast %cst_23 : f32 to vector<256x16xf32>
    %33 = arith.addf %31, %32 : vector<256x16xf32>
    %cst_24 = arith.constant 0.000000e+00 : f32
    %34 = vector.broadcast %cst_24 : f32 to vector<256x16xf32>
    %35 = arith.cmpf ogt, %29, %34 : vector<256x16xf32>
    %cst_25 = arith.constant 3.000000e+01 : f32
    %36 = vector.broadcast %cst_25 : f32 to vector<256x16xf32>
    %37 = arith.cmpf olt, %29, %36 : vector<256x16xf32>
    %38 = arith.andi %35, %37 : vector<256x16xi1>
    %cst_26 = arith.constant 0.000000e+00 : f32
    %39 = vector.broadcast %cst_26 : f32 to vector<256x16xf32>
    %40 = arith.cmpf ogt, %33, %39 : vector<256x16xf32>
    %41 = arith.andi %38, %40 : vector<256x16xi1>
    %cst_27 = arith.constant 3.000000e+01 : f32
    %42 = vector.broadcast %cst_27 : f32 to vector<256x16xf32>
    %43 = arith.cmpf olt, %33, %42 : vector<256x16xf32>
    %44 = arith.andi %41, %43 : vector<256x16xi1>
    %cst_28 = arith.constant 7.500000e+00 : f32
    %45 = vector.broadcast %cst_28 : f32 to vector<256x16xf32>
    %46 = arith.subf %29, %45 : vector<256x16xf32>
    %cst_29 = arith.constant 2.250000e+01 : f32
    %47 = vector.broadcast %cst_29 : f32 to vector<256x16xf32>
    %48 = arith.subf %33, %47 : vector<256x16xf32>
    %49 = arith.mulf %46, %46 : vector<256x16xf32>
    %50 = arith.mulf %48, %48 : vector<256x16xf32>
    %51 = arith.addf %49, %50 : vector<256x16xf32>
    %cst_30 = arith.constant 6.250000e+00 : f32
    %52 = vector.broadcast %cst_30 : f32 to vector<256x16xf32>
    %53 = arith.cmpf ogt, %51, %52 : vector<256x16xf32>
    %54 = arith.andi %44, %53 : vector<256x16xi1>
    %cst_31 = arith.constant 1.300000e+01 : f32
    %55 = vector.broadcast %cst_31 : f32 to vector<256x16xf32>
    %56 = arith.subf %29, %55 : vector<256x16xf32>
    %cst_32 = arith.constant 1.300000e+01 : f32
    %57 = vector.broadcast %cst_32 : f32 to vector<256x16xf32>
    %58 = arith.subf %33, %57 : vector<256x16xf32>
    %59 = arith.mulf %56, %56 : vector<256x16xf32>
    %60 = arith.mulf %58, %58 : vector<256x16xf32>
    %61 = arith.addf %59, %60 : vector<256x16xf32>
    %cst_33 = arith.constant 9.000000e+00 : f32
    %62 = vector.broadcast %cst_33 : f32 to vector<256x16xf32>
    %63 = arith.cmpf ogt, %61, %62 : vector<256x16xf32>
    %64 = arith.andi %54, %63 : vector<256x16xi1>
    %cst_34 = arith.constant 2.250000e+01 : f32
    %65 = vector.broadcast %cst_34 : f32 to vector<256x16xf32>
    %66 = arith.subf %29, %65 : vector<256x16xf32>
    %cst_35 = arith.constant 7.500000e+00 : f32
    %67 = vector.broadcast %cst_35 : f32 to vector<256x16xf32>
    %68 = arith.subf %33, %67 : vector<256x16xf32>
    %69 = arith.mulf %66, %66 : vector<256x16xf32>
    %70 = arith.mulf %68, %68 : vector<256x16xf32>
    %71 = arith.addf %69, %70 : vector<256x16xf32>
    %cst_36 = arith.constant 6.250000e+00 : f32
    %72 = vector.broadcast %cst_36 : f32 to vector<256x16xf32>
    %73 = arith.cmpf ogt, %71, %72 : vector<256x16xf32>
    %74 = arith.andi %64, %73 : vector<256x16xi1>
    %cst_37 = arith.constant 1.900000e+01 : f32
    %75 = vector.broadcast %cst_37 : f32 to vector<256x16xf32>
    %76 = arith.subf %29, %75 : vector<256x16xf32>
    %cst_38 = arith.constant 2.100000e+01 : f32
    %77 = vector.broadcast %cst_38 : f32 to vector<256x16xf32>
    %78 = arith.subf %33, %77 : vector<256x16xf32>
    %79 = arith.mulf %76, %76 : vector<256x16xf32>
    %80 = arith.mulf %78, %78 : vector<256x16xf32>
    %81 = arith.addf %79, %80 : vector<256x16xf32>
    %cst_39 = arith.constant 4.000000e+00 : f32
    %82 = vector.broadcast %cst_39 : f32 to vector<256x16xf32>
    %83 = arith.cmpf ogt, %81, %82 : vector<256x16xf32>
    %84 = arith.andi %74, %83 : vector<256x16xi1>
    %85 = arith.extui %84 : vector<256x16xi1> to vector<256x16xi32>
    %cst_40 = arith.constant dense<2147483647> : vector<256xi32>
    %86 = vector.multi_reduction <minsi>, %85, %cst_40 [1] : vector<256x16xi32> to vector<256xi32>
    %87 = vector.shape_cast %86 : vector<256xi32> to vector<256x1xi32>
    %88 = arith.sitofp %87 : vector<256x1xi32> to vector<256x1xf32>
    %89 = tpu.transpose %88, [1, 0] : vector<256x1xf32> -> vector<1x256xf32>
    %c0_41 = arith.constant 0 : index
    %c0_42 = arith.constant 0 : index
    %90 = vector.load %arg10[%c0_41, %c0_42] : memref<1x256xf32, #tpu.memory_space<vmem>>, vector<1x256xf32>
    tpu.vector_store %arg10[%c0_41, %c0_42], %89 {strides = array<i32>} : memref<1x256xf32, #tpu.memory_space<vmem>>, vector<1x256xf32>,
    return
  }
  func.func @transform_0(%arg0: i32) -> (i32, i32) {
    %c0_i32 = arith.constant 0 : i32
    %c0_i32_0 = arith.constant 0 : i32
    return %arg0, %c0_i32 : i32, i32
  }
  func.func @transform_1(%arg0: i32) -> (i32, i32) {
    %c0_i32 = arith.constant 0 : i32
    %c0_i32_0 = arith.constant 0 : i32
    return %arg0, %c0_i32 : i32, i32
  }
  func.func @transform_2(%arg0: i32) -> (i32, i32) {
    %c0_i32 = arith.constant 0 : i32
    %c0_i32_0 = arith.constant 0 : i32
    %c0_i32_1 = arith.constant 0 : i32
    return %c0_i32, %c0_i32_0 : i32, i32
  }
  func.func @transform_3(%arg0: i32) -> (i32, i32) {
    %c0_i32 = arith.constant 0 : i32
    %c0_i32_0 = arith.constant 0 : i32
    %c0_i32_1 = arith.constant 0 : i32
    return %c0_i32, %c0_i32_0 : i32, i32
  }
  func.func @transform_4(%arg0: i32) -> (i32, i32) {
    %c0_i32 = arith.constant 0 : i32
    %c0_i32_0 = arith.constant 0 : i32
    %c0_i32_1 = arith.constant 0 : i32
    return %c0_i32, %c0_i32_0 : i32, i32
  }
  func.func @transform_5(%arg0: i32) -> (i32, i32) {
    %c0_i32 = arith.constant 0 : i32
    %c0_i32_0 = arith.constant 0 : i32
    %c0_i32_1 = arith.constant 0 : i32
    return %c0_i32, %c0_i32_0 : i32, i32
  }
  func.func @transform_6(%arg0: i32) -> (i32, i32) {
    %c0_i32 = arith.constant 0 : i32
    %c0_i32_0 = arith.constant 0 : i32
    %c0_i32_1 = arith.constant 0 : i32
    return %c0_i32, %c0_i32_0 : i32, i32
  }
  func.func @transform_7(%arg0: i32) -> (i32, i32) {
    %c0_i32 = arith.constant 0 : i32
    %c0_i32_0 = arith.constant 0 : i32
    %c0_i32_1 = arith.constant 0 : i32
    return %c0_i32, %c0_i32_0 : i32, i32
  }
  func.func @transform_8(%arg0: i32) -> (i32, i32) {
    %c0_i32 = arith.constant 0 : i32
    %c0_i32_0 = arith.constant 0 : i32
    %c0_i32_1 = arith.constant 0 : i32
    return %c0_i32, %c0_i32_0 : i32, i32
  }
  func.func @transform_9(%arg0: i32) -> (i32, i32) {
    %c0_i32 = arith.constant 0 : i32
    %c0_i32_0 = arith.constant 0 : i32
    return %c0_i32, %arg0 : i32, i32
  }
}

</mosaic_0001>

<llo_original>
// kernel: tpu_custom_call.1
$region0: #{tpu_custom_call.1}
  #allocation0 [shape = 'u32[]', space=smem, size = 0x4, offset = 0x4, fixed_abs, tag = 'smem constant byte address 0x4 - core index']
  #allocation1 [shape = 'u32[144,128]{1,0:T(1,128)}', space=vmem, size = 0x12000, scoped, tag = 'internal scratch']
  %s0 = inlined_call_operand.vmem [shape: f32[256,16], index: 0, kind: input, shape index: {}]
  %s1 = inlined_call_operand.vmem [shape: f32[256,8], index: 1, kind: input, shape index: {}]
  %s2 = inlined_call_operand.vmem [shape: bf16[16,32], index: 2, kind: input, shape index: {}]
  %s3 = inlined_call_operand.vmem [shape: bf16[8,32], index: 3, kind: input, shape index: {}]
  %s4 = inlined_call_operand.vmem [shape: f32[1,32], index: 4, kind: input, shape index: {}]
  %s5 = inlined_call_operand.vmem [shape: bf16[32,16], index: 5, kind: input, shape index: {}]
  %s6 = inlined_call_operand.vmem [shape: bf16[32,16], index: 6, kind: input, shape index: {}]
  %s7 = inlined_call_operand.vmem [shape: f32[1,16], index: 7, kind: input, shape index: {}]
  %s8 = inlined_call_operand.vmem [shape: f32[1,16], index: 8, kind: input, shape index: {}]
  %s9 = inlined_call_operand.hbm [shape: f32[1,256], index: 9, kind: output, shape index: {}]
  %s10 = sld [smem:[#allocation0]]
  $region46: #{tpu_custom_call.1} parent=0
    _
  %s12 = ssub.s32 1, %s10
  %s13 = scalar_select 0, %s12, %s10
  $region1: #{tpu_custom_call.1} parent=0
    #allocation2 [shape = 'u8[1024]{0}', space=vmem, size = 0x400, scoped, tag = 'output window, operand 0, single buffered']
    #allocation3 [shape = 's32[1]{0}', space=sflag, size = 0x4, scoped, tag = 'scoped memory for tpu_custom_call.1']
    %14 = vsyncpa [#allocation3], 0
    // Predicated region
    $region2: #{tpu_custom_call.1} parent=1 // pred_check
      _
    $region3: #{tpu_custom_call.1} parent=1 // pred_check_branch
      %16 = sbr.rel (0) target = $region5
    $region4: #{tpu_custom_call.1} parent=1 // pred_region
      _
    $region5: #{tpu_custom_call.1} parent=1 // pred_fallthru
      _
    // Predicated region
    $region6: #{tpu_custom_call.1} parent=1 // pred_check
      _
    $region7: #{tpu_custom_call.1} parent=1 // pred_check_branch
      %18 = sbr.rel (0) target = $region9
    $region8: #{tpu_custom_call.1} parent=1 // pred_region
      _
    $region9: #{tpu_custom_call.1} parent=1 // pred_fallthru
      _
    // Predicated region
    $region10: #{tpu_custom_call.1} parent=1 // pred_check
      _
    $region11: #{tpu_custom_call.1} parent=1 // pred_check_branch
      %20 = sbr.rel (0) target = $region13
    $region12: #{tpu_custom_call.1} parent=1 // pred_region
      _
    $region13: #{tpu_custom_call.1} parent=1 // pred_fallthru
      _
    // Predicated region
    $region14: #{tpu_custom_call.1} parent=1 // pred_check
      _
    $region15: #{tpu_custom_call.1} parent=1 // pred_check_branch
      %22 = sbr.rel (0) target = $region17
    $region16: #{tpu_custom_call.1} parent=1 // pred_region
      _
    $region17: #{tpu_custom_call.1} parent=1 // pred_fallthru
      _
    // Predicated region
    $region18: #{tpu_custom_call.1} parent=1 // pred_check
      _
    $region19: #{tpu_custom_call.1} parent=1 // pred_check_branch
      %24 = sbr.rel (0) target = $region21
    $region20: #{tpu_custom_call.1} parent=1 // pred_region
      _
    $region21: #{tpu_custom_call.1} parent=1 // pred_fallthru
      _
    // Predicated region
    $region22: #{tpu_custom_call.1} parent=1 // pred_check
      _
    $region23: #{tpu_custom_call.1} parent=1 // pred_check_branch
      %26 = sbr.rel (0) target = $region25
    $region24: #{tpu_custom_call.1} parent=1 // pred_region
      _
    $region25: #{tpu_custom_call.1} parent=1 // pred_fallthru
      _
    // Predicated region
    $region26: #{tpu_custom_call.1} parent=1 // pred_check
      _
    $region27: #{tpu_custom_call.1} parent=1 // pred_check_branch
      %28 = sbr.rel (0) target = $region29
    $region28: #{tpu_custom_call.1} parent=1 // pred_region
      _
    $region29: #{tpu_custom_call.1} parent=1 // pred_fallthru
      _
    // Predicated region
    $region30: #{tpu_custom_call.1} parent=1 // pred_check
      _
    $region31: #{tpu_custom_call.1} parent=1 // pred_check_branch
      %30 = sbr.rel (0) target = $region33
    $region32: #{tpu_custom_call.1} parent=1 // pred_region
      _
    $region33: #{tpu_custom_call.1} parent=1 // pred_fallthru
      _
    // Predicated region
    $region34: #{tpu_custom_call.1} parent=1 // pred_check
      _
    $region35: #{tpu_custom_call.1} parent=1 // pred_check_branch
      %32 = sbr.rel (0) target = $region37
    $region36: #{tpu_custom_call.1} parent=1 // pred_region
      _
    $region37: #{tpu_custom_call.1} parent=1 // pred_fallthru
      _
    %v34 = vld [vmem:[%s0] sm:$0xff]
    %v35 = vld [vmem:[%s0 + $0x8] sm:$0xff]
    %v36 = vld [vmem:[%s0 + $0x10] sm:$0xff]
    %v37 = vld [vmem:[%s0 + $0x18] sm:$0xff]
    %v38 = vld [vmem:[%s0 + $0x20] sm:$0xff]
    %v39 = vld [vmem:[%s0 + $0x28] sm:$0xff]
    %v40 = vld [vmem:[%s0 + $0x30] sm:$0xff]
    %v41 = vld [vmem:[%s0 + $0x38] sm:$0xff]
    %v42 = vld [vmem:[%s0 + $0x40] sm:$0xff]
    %v43 = vld [vmem:[%s0 + $0x48] sm:$0xff]
    %v44 = vld [vmem:[%s0 + $0x50] sm:$0xff]
    %v45 = vld [vmem:[%s0 + $0x58] sm:$0xff]
    %v46 = vld [vmem:[%s0 + $0x60] sm:$0xff]
    %v47 = vld [vmem:[%s0 + $0x68] sm:$0xff]
    %v48 = vld [vmem:[%s0 + $0x70] sm:$0xff]
    %v49 = vld [vmem:[%s0 + $0x78] sm:$0xff]
    %v50 = vld [vmem:[%s0 + $0x80] sm:$0xff]
    %v51 = vld [vmem:[%s0 + $0x88] sm:$0xff]
    %v52 = vld [vmem:[%s0 + $0x90] sm:$0xff]
    %v53 = vld [vmem:[%s0 + $0x98] sm:$0xff]
    %v54 = vld [vmem:[%s0 + $0xa0] sm:$0xff]
    %v55 = vld [vmem:[%s0 + $0xa8] sm:$0xff]
    %v56 = vld [vmem:[%s0 + $0xb0] sm:$0xff]
    %v57 = vld [vmem:[%s0 + $0xb8] sm:$0xff]
    %v58 = vld [vmem:[%s0 + $0xc0] sm:$0xff]
    %v59 = vld [vmem:[%s0 + $0xc8] sm:$0xff]
    %v60 = vld [vmem:[%s0 + $0xd0] sm:$0xff]
    %v61 = vld [vmem:[%s0 + $0xd8] sm:$0xff]
    %v62 = vld [vmem:[%s0 + $0xe0] sm:$0xff]
    %v63 = vld [vmem:[%s0 + $0xe8] sm:$0xff]
    %v64 = vld [vmem:[%s0 + $0xf0] sm:$0xff]
    %v65 = vld [vmem:[%s0 + $0xf8] sm:$0xff]
    %v66 = vpack.c.bf16 %v35, %v34
    %v67 = vpack.c.bf16 %v37, %v36
    %v68 = vpack.c.bf16 %v39, %v38
    %v69 = vpack.c.bf16 %v41, %v40
    %v70 = vpack.c.bf16 %v43, %v42
    %v71 = vpack.c.bf16 %v45, %v44
    %v72 = vpack.c.bf16 %v47, %v46
    %v73 = vpack.c.bf16 %v49, %v48
    %v74 = vpack.c.bf16 %v51, %v50
    %v75 = vpack.c.bf16 %v53, %v52
    %v76 = vpack.c.bf16 %v55, %v54
    %v77 = vpack.c.bf16 %v57, %v56
    %v78 = vpack.c.bf16 %v59, %v58
    %v79 = vpack.c.bf16 %v61, %v60
    %v80 = vpack.c.bf16 %v63, %v62
    %v81 = vpack.c.bf16 %v65, %v64
    %v82 = vld [vmem:[%s2] sm:$0xf]
    %v83 = vld [vmem:[%s2 + $0x4] sm:$0xf]
    %v84 = vld [vmem:[%s1] sm:$0xff]
    %v85 = vld [vmem:[%s1 + $0x8] sm:$0xff]
    %v86 = vld [vmem:[%s1 + $0x10] sm:$0xff]
    %v87 = vld [vmem:[%s1 + $0x18] sm:$0xff]
    %v88 = vld [vmem:[%s1 + $0x20] sm:$0xff]
    %v89 = vld [vmem:[%s1 + $0x28] sm:$0xff]
    %v90 = vld [vmem:[%s1 + $0x30] sm:$0xff]
    %v91 = vld [vmem:[%s1 + $0x38] sm:$0xff]
    %v92 = vld [vmem:[%s1 + $0x40] sm:$0xff]
    %v93 = vld [vmem:[%s1 + $0x48] sm:$0xff]
    %v94 = vld [vmem:[%s1 + $0x50] sm:$0xff]
    %v95 = vld [vmem:[%s1 + $0x58] sm:$0xff]
    %v96 = vld [vmem:[%s1 + $0x60] sm:$0xff]
    %v97 = vld [vmem:[%s1 + $0x68] sm:$0xff]
    %v98 = vld [vmem:[%s1 + $0x70] sm:$0xff]
    %v99 = vld [vmem:[%s1 + $0x78] sm:$0xff]
    %v100 = vld [vmem:[%s1 + $0x80] sm:$0xff]
    %v101 = vld [vmem:[%s1 + $0x88] sm:$0xff]
    %v102 = vld [vmem:[%s1 + $0x90] sm:$0xff]
    %v103 = vld [vmem:[%s1 + $0x98] sm:$0xff]
    %v104 = vld [vmem:[%s1 + $0xa0] sm:$0xff]
    %v105 = vld [vmem:[%s1 + $0xa8] sm:$0xff]
    %v106 = vld [vmem:[%s1 + $0xb0] sm:$0xff]
    %v107 = vld [vmem:[%s1 + $0xb8] sm:$0xff]
    %v108 = vld [vmem:[%s1 + $0xc0] sm:$0xff]
    %v109 = vld [vmem:[%s1 + $0xc8] sm:$0xff]
    %v110 = vld [vmem:[%s1 + $0xd0] sm:$0xff]
    %v111 = vld [vmem:[%s1 + $0xd8] sm:$0xff]
    %v112 = vld [vmem:[%s1 + $0xe0] sm:$0xff]
    %v113 = vld [vmem:[%s1 + $0xe8] sm:$0xff]
    %v114 = vld [vmem:[%s1 + $0xf0] sm:$0xff]
    %v115 = vld [vmem:[%s1 + $0xf8] sm:$0xff]
    %v116 = vpack.c.bf16 %v85, %v84
    %v117 = vpack.c.bf16 %v87, %v86
    %v118 = vpack.c.bf16 %v89, %v88
    %v119 = vpack.c.bf16 %v91, %v90
    %v120 = vpack.c.bf16 %v93, %v92
    %v121 = vpack.c.bf16 %v95, %v94
    %v122 = vpack.c.bf16 %v97, %v96
    %v123 = vpack.c.bf16 %v99, %v98
    %v124 = vpack.c.bf16 %v101, %v100
    %v125 = vpack.c.bf16 %v103, %v102
    %v126 = vpack.c.bf16 %v105, %v104
    %v127 = vpack.c.bf16 %v107, %v106
    %v128 = vpack.c.bf16 %v109, %v108
    %v129 = vpack.c.bf16 %v111, %v110
    %v130 = vpack.c.bf16 %v113, %v112
    %v131 = vpack.c.bf16 %v115, %v114
    %v132 = vld [vmem:[%s3] sm:$0xf]
    %vm133 = vcmask 64512
    %v135 = vsel %vm133, %v116, 0
    %v138 = vsel %vm133, %v117, 0
    %v141 = vsel %vm133, %v118, 0
    %v144 = vsel %vm133, %v119, 0
    %v147 = vsel %vm133, %v120, 0
    %v150 = vsel %vm133, %v121, 0
    %v153 = vsel %vm133, %v122, 0
    %v156 = vsel %vm133, %v123, 0
    %v159 = vsel %vm133, %v124, 0
    %v162 = vsel %vm133, %v125, 0
    %v165 = vsel %vm133, %v126, 0
    %v168 = vsel %vm133, %v127, 0
    %v171 = vsel %vm133, %v128, 0
    %v174 = vsel %vm133, %v129, 0
    %v177 = vsel %vm133, %v130, 0
    %v180 = vsel %vm133, %v131, 0
    %vm182 = vcmask 1043456
    %v184 = vsel %vm182, %v132, 0
    %186 = vmatprep.subr.bf16.mxu0 0
    %187 = vmatpush1.bf16.msra.mxu0 %v184
    %188 = vmatprep.subr.bf16.mxu0 0
    %189 = vmatpush1.bf16.msra.mxu0 0
    %190 = vmatprep.subr.bf16.mxu0 0
    %191 = vmatpush1.bf16.msra.mxu0 0
    %192 = vmatprep.subr.bf16.mxu0 0
    %193 = vmatpush1.bf16.msra.mxu0 0
    %194 = vmatprep.subr.bf16.mxu0 0
    %195 = vmatpush1.bf16.msra.mxu0 0
    %196 = vmatprep.subr.bf16.mxu0 0
    %197 = vmatpush1.bf16.msra.mxu0 0
    %198 = vmatprep.subr.bf16.mxu0 0
    %199 = vmatpush1.bf16.msra.mxu0 0
    %200 = vmatprep.subr.bf16.mxu0 0
    %201 = vmatpush1.bf16.msra.mxu0 0
    %202 = vmatprep.subr.bf16.mxu0 0
    %203 = vmatpush1.bf16.msra.mxu0 0
    %204 = vmatprep.subr.bf16.mxu0 0
    %205 = vmatpush1.bf16.msra.mxu0 0
    %206 = vmatprep.subr.bf16.mxu0 0
    %207 = vmatpush1.bf16.msra.mxu0 0
    %208 = vmatprep.subr.bf16.mxu0 0
    %209 = vmatpush1.bf16.msra.mxu0 0
    %210 = vmatprep.subr.bf16.mxu0 0
    %211 = vmatpush1.bf16.msra.mxu0 0
    %212 = vmatprep.subr.bf16.mxu0 0
    %213 = vmatpush1.bf16.msra.mxu0 0
    %214 = vmatprep.subr.bf16.mxu0 0
    %215 = vmatpush1.bf16.msra.mxu0 0
    %216 = vmatprep.subr.bf16.mxu0 0
    %217 = vmatpush1.bf16.msra.mxu0 0
    %218 = vmatprep.mubr.bf16.mxu0 0
    %219 = vmatmul.mubr.bf16.gmra.mrb[0].mxu0 %v135
    %v220 = vpop.f32.mrb[0].mxu0
    %v221 = vadd.f32 0.0, %v220
    %v222 = vpop.f32.mrb[0].mxu0
    %v223 = vpop.f32.mrb[0].mxu0
    %v224 = vadd.f32 0.0, %v223
    %v225 = vpop.f32.mrb[0].mxu0
    %226 = vmatprep.mubr.bf16.mxu0 0
    %227 = vmatmul.mubr.bf16.gmra.mrb[0].mxu0 %v138
    %v228 = vpop.f32.mrb[0].mxu0
    %v229 = vadd.f32 0.0, %v228
    %v230 = vpop.f32.mrb[0].mxu0
    %v231 = vpop.f32.mrb[0].mxu0
    %v232 = vadd.f32 0.0, %v231
    %v233 = vpop.f32.mrb[0].mxu0
    %234 = vmatprep.mubr.bf16.mxu0 0
    %235 = vmatmul.mubr.bf16.gmra.mrb[0].mxu0 %v141
    %v236 = vpop.f32.mrb[0].mxu0
    %v237 = vadd.f32 0.0, %v236
    %v238 = vpop.f32.mrb[0].mxu0
    %v239 = vpop.f32.mrb[0].mxu0
    %v240 = vadd.f32 0.0, %v239
    %v241 = vpop.f32.mrb[0].mxu0
    %242 = vmatprep.mubr.bf16.mxu0 0
    %243 = vmatmul.mubr.bf16.gmra.mrb[0].mxu0 %v144
    %v244 = vpop.f32.mrb[0].mxu0
    %v245 = vadd.f32 0.0, %v244
    %v246 = vpop.f32.mrb[0].mxu0
    %v247 = vpop.f32.mrb[0].mxu0
    %v248 = vadd.f32 0.0, %v247
    %v249 = vpop.f32.mrb[0].mxu0
    %250 = vmatprep.mubr.bf16.mxu0 0
    %251 = vmatmul.mubr.bf16.gmra.mrb[0].mxu0 %v147
    %v252 = vpop.f32.mrb[0].mxu0
    %v253 = vadd.f32 0.0, %v252
    %v254 = vpop.f32.mrb[0].mxu0
    %v255 = vpop.f32.mrb[0].mxu0
    %v256 = vadd.f32 0.0, %v255
    %v257 = vpop.f32.mrb[0].mxu0
    %258 = vmatprep.mubr.bf16.mxu0 0
    %259 = vmatmul.mubr.bf16.gmra.mrb[0].mxu0 %v150
    %v260 = vpop.f32.mrb[0].mxu0
    %v261 = vadd.f32 0.0, %v260
    %v262 = vpop.f32.mrb[0].mxu0
    %v263 = vpop.f32.mrb[0].mxu0
    %v264 = vadd.f32 0.0, %v263
    %v265 = vpop.f32.mrb[0].mxu0
    %266 = vmatprep.mubr.bf16.mxu0 0
    %267 = vmatmul.mubr.bf16.gmra.mrb[0].mxu0 %v153
    %v268 = vpop.f32.mrb[0].mxu0
    %v269 = vadd.f32 0.0, %v268
    %v270 = vpop.f32.mrb[0].mxu0
    %v271 = vpop.f32.mrb[0].mxu0
    %v272 = vadd.f32 0.0, %v271
    %v273 = vpop.f32.mrb[0].mxu0
    %274 = vmatprep.mubr.bf16.mxu0 0
    %275 = vmatmul.mubr.bf16.gmra.mrb[0].mxu0 %v156
    %v276 = vpop.f32.mrb[0].mxu0
    %v277 = vadd.f32 0.0, %v276
    %v278 = vpop.f32.mrb[0].mxu0
    %v279 = vpop.f32.mrb[0].mxu0
    %v280 = vadd.f32 0.0, %v279
    %v281 = vpop.f32.mrb[0].mxu0
    %282 = vmatprep.mubr.bf16.mxu0 0
    %283 = vmatmul.mubr.bf16.gmra.mrb[0].mxu0 %v159
    %v284 = vpop.f32.mrb[0].mxu0
    %v285 = vadd.f32 0.0, %v284
    %v286 = vpop.f32.mrb[0].mxu0
    %v287 = vpop.f32.mrb[0].mxu0
    %v288 = vadd.f32 0.0, %v287
    %v289 = vpop.f32.mrb[0].mxu0
    %290 = vmatprep.mubr.bf16.mxu0 0
    %291 = vmatmul.mubr.bf16.gmra.mrb[0].mxu0 %v162
    %v292 = vpop.f32.mrb[0].mxu0
    %v293 = vadd.f32 0.0, %v292
    %v294 = vpop.f32.mrb[0].mxu0
    %v295 = vpop.f32.mrb[0].mxu0
    %v296 = vadd.f32 0.0, %v295
    %v297 = vpop.f32.mrb[0].mxu0
    %298 = vmatprep.mubr.bf16.mxu0 0
    %299 = vmatmul.mubr.bf16.gmra.mrb[0].mxu0 %v165
    %v300 = vpop.f32.mrb[0].mxu0
    %v301 = vadd.f32 0.0, %v300
    %v302 = vpop.f32.mrb[0].mxu0
    %v303 = vpop.f32.mrb[0].mxu0
    %v304 = vadd.f32 0.0, %v303
    %v305 = vpop.f32.mrb[0].mxu0
    %306 = vmatprep.mubr.bf16.mxu0 0
    %307 = vmatmul.mubr.bf16.gmra.mrb[0].mxu0 %v168
    %v308 = vpop.f32.mrb[0].mxu0
    %v309 = vadd.f32 0.0, %v308
    %v310 = vpop.f32.mrb[0].mxu0
    %v311 = vpop.f32.mrb[0].mxu0
    %v312 = vadd.f32 0.0, %v311
    %v313 = vpop.f32.mrb[0].mxu0
    %314 = vmatprep.mubr.bf16.mxu0 0
    %315 = vmatmul.mubr.bf16.gmra.mrb[0].mxu0 %v171
    %v316 = vpop.f32.mrb[0].mxu0
    %v317 = vadd.f32 0.0, %v316
    %v318 = vpop.f32.mrb[0].mxu0
    %v319 = vpop.f32.mrb[0].mxu0
    %v320 = vadd.f32 0.0, %v319
    %v321 = vpop.f32.mrb[0].mxu0
    %322 = vmatprep.mubr.bf16.mxu0 0
    %323 = vmatmul.mubr.bf16.gmra.mrb[0].mxu0 %v174
    %v324 = vpop.f32.mrb[0].mxu0
    %v325 = vadd.f32 0.0, %v324
    %v326 = vpop.f32.mrb[0].mxu0
    %v327 = vpop.f32.mrb[0].mxu0
    %v328 = vadd.f32 0.0, %v327
    %v329 = vpop.f32.mrb[0].mxu0
    %330 = vmatprep.mubr.bf16.mxu0 0
    %331 = vmatmul.mubr.bf16.gmra.mrb[0].mxu0 %v177
    %v332 = vpop.f32.mrb[0].mxu0
    %v333 = vadd.f32 0.0, %v332
    %v334 = vpop.f32.mrb[0].mxu0
    %v335 = vpop.f32.mrb[0].mxu0
    %v336 = vadd.f32 0.0, %v335
    %v337 = vpop.f32.mrb[0].mxu0
    %338 = vmatprep.mubr.bf16.mxu0 0
    %339 = vmatmul.mubr.bf16.gmra.mrb[0].mxu0 %v180
    %v340 = vpop.f32.mrb[0].mxu0
    %v341 = vadd.f32 0.0, %v340
    %v342 = vpop.f32.mrb[0].mxu0
    %v343 = vpop.f32.mrb[0].mxu0
    %v344 = vadd.f32 0.0, %v343
    %v345 = vpop.f32.mrb[0].mxu0
    %346 = vdwg.mxu0
    %v349 = vunpack.c.l.b16 %v82
    %v350 = vunpack.c.l.b16 %v83
    %v351 = vpack.c.b16 %v350, %v349
    %vm353 = vcmask 130048
    %v355 = vsel %vm353, %v66, 0
    %v358 = vsel %vm353, %v67, 0
    %v361 = vsel %vm353, %v68, 0
    %v364 = vsel %vm353, %v69, 0
    %v367 = vsel %vm353, %v70, 0
    %v370 = vsel %vm353, %v71, 0
    %v373 = vsel %vm353, %v72, 0
    %v376 = vsel %vm353, %v73, 0
    %v379 = vsel %vm353, %v74, 0
    %v382 = vsel %vm353, %v75, 0
    %v385 = vsel %vm353, %v76, 0
    %v388 = vsel %vm353, %v77, 0
    %v391 = vsel %vm353, %v78, 0
    %v394 = vsel %vm353, %v79, 0
    %v397 = vsel %vm353, %v80, 0
    %v400 = vsel %vm353, %v81, 0
    %402 = vmatprep.subr.bf16.mxu0 0
    %403 = vmatpush1.bf16.msra.mxu0 %v351
    %404 = vmatprep.subr.bf16.mxu0 0
    %405 = vmatpush1.bf16.msra.mxu0 0
    %406 = vmatprep.subr.bf16.mxu0 0
    %407 = vmatpush1.bf16.msra.mxu0 0
    %408 = vmatprep.subr.bf16.mxu0 0
    %409 = vmatpush1.bf16.msra.mxu0 0
    %410 = vmatprep.subr.bf16.mxu0 0
    %411 = vmatpush1.bf16.msra.mxu0 0
    %412 = vmatprep.subr.bf16.mxu0 0
    %413 = vmatpush1.bf16.msra.mxu0 0
    %414 = vmatprep.subr.bf16.mxu0 0
    %415 = vmatpush1.bf16.msra.mxu0 0
    %416 = vmatprep.subr.bf16.mxu0 0
    %417 = vmatpush1.bf16.msra.mxu0 0
    %418 = vmatprep.subr.bf16.mxu0 0
    %419 = vmatpush1.bf16.msra.mxu0 0
    %420 = vmatprep.subr.bf16.mxu0 0
    %421 = vmatpush1.bf16.msra.mxu0 0
    %422 = vmatprep.subr.bf16.mxu0 0
    %423 = vmatpush1.bf16.msra.mxu0 0
    %424 = vmatprep.subr.bf16.mxu0 0
    %425 = vmatpush1.bf16.msra.mxu0 0
    %426 = vmatprep.subr.bf16.mxu0 0
    %427 = vmatpush1.bf16.msra.mxu0 0
    %428 = vmatprep.subr.bf16.mxu0 0
    %429 = vmatpush1.bf16.msra.mxu0 0
    %430 = vmatprep.subr.bf16.mxu0 0
    %431 = vmatpush1.bf16.msra.mxu0 0
    %432 = vmatprep.subr.bf16.mxu0 0
    %433 = vmatpush1.bf16.msra.mxu0 0
    %434 = vmatprep.mubr.bf16.mxu0 0
    %435 = vmatmul.mubr.bf16.gmra.mrb[0].mxu0 %v355
    %v436 = vpop.f32.mrb[0].mxu0
    %v437 = vadd.f32 %v221, %v436
    %v438 = vpop.f32.mrb[0].mxu0
    %v439 = vpop.f32.mrb[0].mxu0
    %v440 = vadd.f32 %v224, %v439
    %v441 = vpop.f32.mrb[0].mxu0
    %442 = vmatprep.mubr.bf16.mxu0 0
    %443 = vmatmul.mubr.bf16.gmra.mrb[0].mxu0 %v358
    %v444 = vpop.f32.mrb[0].mxu0
    %v445 = vadd.f32 %v229, %v444
    %v446 = vpop.f32.mrb[0].mxu0
    %v447 = vpop.f32.mrb[0].mxu0
    %v448 = vadd.f32 %v232, %v447
    %v449 = vpop.f32.mrb[0].mxu0
    %450 = vmatprep.mubr.bf16.mxu0 0
    %451 = vmatmul.mubr.bf16.gmra.mrb[0].mxu0 %v361
    %v452 = vpop.f32.mrb[0].mxu0
    %v453 = vadd.f32 %v237, %v452
    %v454 = vpop.f32.mrb[0].mxu0
    %v455 = vpop.f32.mrb[0].mxu0
    %v456 = vadd.f32 %v240, %v455
    %v457 = vpop.f32.mrb[0].mxu0
    %458 = vmatprep.mubr.bf16.mxu0 0
    %459 = vmatmul.mubr.bf16.gmra.mrb[0].mxu0 %v364
    %v460 = vpop.f32.mrb[0].mxu0
    %v461 = vadd.f32 %v245, %v460
    %v462 = vpop.f32.mrb[0].mxu0
    %v463 = vpop.f32.mrb[0].mxu0
    %v464 = vadd.f32 %v248, %v463
    %v465 = vpop.f32.mrb[0].mxu0
    %466 = vmatprep.mubr.bf16.mxu0 0
    %467 = vmatmul.mubr.bf16.gmra.mrb[0].mxu0 %v367
    %v468 = vpop.f32.mrb[0].mxu0
    %v469 = vadd.f32 %v253, %v468
    %v470 = vpop.f32.mrb[0].mxu0
    %v471 = vpop.f32.mrb[0].mxu0
    %v472 = vadd.f32 %v256, %v471
    %v473 = vpop.f32.mrb[0].mxu0
    %474 = vmatprep.mubr.bf16.mxu0 0
    %475 = vmatmul.mubr.bf16.gmra.mrb[0].mxu0 %v370
    %v476 = vpop.f32.mrb[0].mxu0
    %v477 = vadd.f32 %v261, %v476
    %v478 = vpop.f32.mrb[0].mxu0
    %v479 = vpop.f32.mrb[0].mxu0
    %v480 = vadd.f32 %v264, %v479
    %v481 = vpop.f32.mrb[0].mxu0
    %482 = vmatprep.mubr.bf16.mxu0 0
    %483 = vmatmul.mubr.bf16.gmra.mrb[0].mxu0 %v373
    %v484 = vpop.f32.mrb[0].mxu0
    %v485 = vadd.f32 %v269, %v484
    %v486 = vpop.f32.mrb[0].mxu0
    %v487 = vpop.f32.mrb[0].mxu0
    %v488 = vadd.f32 %v272, %v487
    %v489 = vpop.f32.mrb[0].mxu0
    %490 = vmatprep.mubr.bf16.mxu0 0
    %491 = vmatmul.mubr.bf16.gmra.mrb[0].mxu0 %v376
    %v492 = vpop.f32.mrb[0].mxu0
    %v493 = vadd.f32 %v277, %v492
    %v494 = vpop.f32.mrb[0].mxu0
    %v495 = vpop.f32.mrb[0].mxu0
    %v496 = vadd.f32 %v280, %v495
    %v497 = vpop.f32.mrb[0].mxu0
    %498 = vmatprep.mubr.bf16.mxu0 0
    %499 = vmatmul.mubr.bf16.gmra.mrb[0].mxu0 %v379
    %v500 = vpop.f32.mrb[0].mxu0
    %v501 = vadd.f32 %v285, %v500
    %v502 = vpop.f32.mrb[0].mxu0
    %v503 = vpop.f32.mrb[0].mxu0
    %v504 = vadd.f32 %v288, %v503
    %v505 = vpop.f32.mrb[0].mxu0
    %506 = vmatprep.mubr.bf16.mxu0 0
    %507 = vmatmul.mubr.bf16.gmra.mrb[0].mxu0 %v382
    %v508 = vpop.f32.mrb[0].mxu0
    %v509 = vadd.f32 %v293, %v508
    %v510 = vpop.f32.mrb[0].mxu0
    %v511 = vpop.f32.mrb[0].mxu0
    %v512 = vadd.f32 %v296, %v511
    %v513 = vpop.f32.mrb[0].mxu0
    %514 = vmatprep.mubr.bf16.mxu0 0
    %515 = vmatmul.mubr.bf16.gmra.mrb[0].mxu0 %v385
    %v516 = vpop.f32.mrb[0].mxu0
    %v517 = vadd.f32 %v301, %v516
    %v518 = vpop.f32.mrb[0].mxu0
    %v519 = vpop.f32.mrb[0].mxu0
    %v520 = vadd.f32 %v304, %v519
    %v521 = vpop.f32.mrb[0].mxu0
    %522 = vmatprep.mubr.bf16.mxu0 0
    %523 = vmatmul.mubr.bf16.gmra.mrb[0].mxu0 %v388
    %v524 = vpop.f32.mrb[0].mxu0
    %v525 = vadd.f32 %v309, %v524
    %v526 = vpop.f32.mrb[0].mxu0
    %v527 = vpop.f32.mrb[0].mxu0
    %v528 = vadd.f32 %v312, %v527
    %v529 = vpop.f32.mrb[0].mxu0
    %530 = vmatprep.mubr.bf16.mxu0 0
    %531 = vmatmul.mubr.bf16.gmra.mrb[0].mxu0 %v391
    %v532 = vpop.f32.mrb[0].mxu0
    %v533 = vadd.f32 %v317, %v532
    %v534 = vpop.f32.mrb[0].mxu0
    %v535 = vpop.f32.mrb[0].mxu0
    %v536 = vadd.f32 %v320, %v535
    %v537 = vpop.f32.mrb[0].mxu0
    %538 = vmatprep.mubr.bf16.mxu0 0
    %539 = vmatmul.mubr.bf16.gmra.mrb[0].mxu0 %v394
    %v540 = vpop.f32.mrb[0].mxu0
    %v541 = vadd.f32 %v325, %v540
    %v542 = vpop.f32.mrb[0].mxu0
    %v543 = vpop.f32.mrb[0].mxu0
    %v544 = vadd.f32 %v328, %v543
    %v545 = vpop.f32.mrb[0].mxu0
    %546 = vmatprep.mubr.bf16.mxu0 0
    %547 = vmatmul.mubr.bf16.gmra.mrb[0].mxu0 %v397
    %v548 = vpop.f32.mrb[0].mxu0
    %v549 = vadd.f32 %v333, %v548
    %v550 = vpop.f32.mrb[0].mxu0
    %v551 = vpop.f32.mrb[0].mxu0
    %v552 = vadd.f32 %v336, %v551
    %v553 = vpop.f32.mrb[0].mxu0
    %554 = vmatprep.mubr.bf16.mxu0 0
    %555 = vmatmul.mubr.bf16.gmra.mrb[0].mxu0 %v400
    %v556 = vpop.f32.mrb[0].mxu0
    %v557 = vadd.f32 %v341, %v556
    %v558 = vpop.f32.mrb[0].mxu0
    %v559 = vpop.f32.mrb[0].mxu0
    %v560 = vadd.f32 %v344, %v559
    %v561 = vpop.f32.mrb[0].mxu0
    %562 = vdwg.mxu0
    %v563 = vld [vmem:[%s4] sm:$0x1]
    %v565 = vlaneseq
    %v566 = vshrl.u32 %v565, 7
    %v567 = vsub.s32 0, %v566
    %v568 = vrot.slane %v563, %v567
    %v570 = vadd.f32 %v437, %v568
    %v571 = vadd.f32 %v440, %v568
    %v572 = vadd.f32 %v445, %v568
    %v573 = vadd.f32 %v448, %v568
    %v574 = vadd.f32 %v453, %v568
    %v575 = vadd.f32 %v456, %v568
    %v576 = vadd.f32 %v461, %v568
    %v577 = vadd.f32 %v464, %v568
    %v578 = vadd.f32 %v469, %v568
    %v579 = vadd.f32 %v472, %v568
    %v580 = vadd.f32 %v477, %v568
    %v581 = vadd.f32 %v480, %v568
    %v582 = vadd.f32 %v485, %v568
    %v583 = vadd.f32 %v488, %v568
    %v584 = vadd.f32 %v493, %v568
    %v585 = vadd.f32 %v496, %v568
    %v586 = vadd.f32 %v501, %v568
    %v587 = vadd.f32 %v504, %v568
    %v588 = vadd.f32 %v509, %v568
    %v589 = vadd.f32 %v512, %v568
    %v590 = vadd.f32 %v517, %v568
    %v591 = vadd.f32 %v520, %v568
    %v592 = vadd.f32 %v525, %v568
    %v593 = vadd.f32 %v528, %v568
    %v594 = vadd.f32 %v533, %v568
    %v595 = vadd.f32 %v536, %v568
    %v596 = vadd.f32 %v541, %v568
    %v597 = vadd.f32 %v544, %v568
    %v598 = vadd.f32 %v549, %v568
    %v599 = vadd.f32 %v552, %v568
    %v600 = vadd.f32 %v557, %v568
    %v601 = vadd.f32 %v560, %v568
    %v602 = vtanh.pop %v570
    %v603 = vtanh.pop %v571
    %v604 = vtanh.pop %v572
    %v605 = vtanh.pop %v573
    %v606 = vtanh.pop %v574
    %v607 = vtanh.pop %v575
    %v608 = vtanh.pop %v576
    %v609 = vtanh.pop %v577
    %v610 = vtanh.pop %v578
    %v611 = vtanh.pop %v579
    %v612 = vtanh.pop %v580
    %v613 = vtanh.pop %v581
    %v614 = vtanh.pop %v582
    %v615 = vtanh.pop %v583
    %v616 = vtanh.pop %v584
    %v617 = vtanh.pop %v585
    %v618 = vtanh.pop %v586
    %v619 = vtanh.pop %v587
    %v620 = vtanh.pop %v588
    %v621 = vtanh.pop %v589
    %v622 = vtanh.pop %v590
    %v623 = vtanh.pop %v591
    %v624 = vtanh.pop %v592
    %v625 = vtanh.pop %v593
    %v626 = vtanh.pop %v594
    %v627 = vtanh.pop %v595
    %v628 = vtanh.pop %v596
    %v629 = vtanh.pop %v597
    %v630 = vtanh.pop %v598
    %v631 = vtanh.pop %v599
    %v632 = vtanh.pop %v600
    %v633 = vtanh.pop %v601
    %v634 = vpack.c.bf16 %v603, %v602
    %v635 = vpack.c.bf16 %v605, %v604
    %v636 = vpack.c.bf16 %v607, %v606
    %v637 = vpack.c.bf16 %v609, %v608
    %v638 = vpack.c.bf16 %v611, %v610
    %v639 = vpack.c.bf16 %v613, %v612
    %v640 = vpack.c.bf16 %v615, %v614
    %v641 = vpack.c.bf16 %v617, %v616
    %v642 = vpack.c.bf16 %v619, %v618
    %v643 = vpack.c.bf16 %v621, %v620
    %v644 = vpack.c.bf16 %v623, %v622
    %v645 = vpack.c.bf16 %v625, %v624
    %v646 = vpack.c.bf16 %v627, %v626
    %v647 = vpack.c.bf16 %v629, %v628
    %v648 = vpack.c.bf16 %v631, %v630
    %v649 = vpack.c.bf16 %v633, %v632
    %v650 = vld [vmem:[%s5] sm:$0xf]
    %v651 = vld [vmem:[%s5 + $0x4] sm:$0xf]
    %v652 = vld [vmem:[%s5 + $0x8] sm:$0xf]
    %v653 = vld [vmem:[%s5 + $0xc] sm:$0xf]
    %v654 = vld [vmem:[%s7] sm:$0x1]
    %v656 = vlaneseq
    %v657 = vshrl.u32 %v656, 7
    %v658 = vsub.s32 0, %v657
    %v659 = vrot.slane %v654, %v658
    %v665 = vunpack.c.l.b16 %v650
    %v666 = vunpack.c.l.b16 %v651
    %v667 = vunpack.c.l.b16 %v652
    %v668 = vunpack.c.l.b16 %v653
    %v669 = vpack.c.b16 %v666, %v665
    %v670 = vpack.c.b16 %v668, %v667
    %vm673 = vcmask 261120
    %v675 = vsel %vm673, %v634, 0
    %v678 = vsel %vm673, %v635, 0
    %v681 = vsel %vm673, %v636, 0
    %v684 = vsel %vm673, %v637, 0
    %v687 = vsel %vm673, %v638, 0
    %v690 = vsel %vm673, %v639, 0
    %v693 = vsel %vm673, %v640, 0
    %v696 = vsel %vm673, %v641, 0
    %v699 = vsel %vm673, %v642, 0
    %v702 = vsel %vm673, %v643, 0
    %v705 = vsel %vm673, %v644, 0
    %v708 = vsel %vm673, %v645, 0
    %v711 = vsel %vm673, %v646, 0
    %v714 = vsel %vm673, %v647, 0
    %v717 = vsel %vm673, %v648, 0
    %v720 = vsel %vm673, %v649, 0
    %722 = vmatprep.subr.bf16.mxu0 0
    %723 = vmatpush1.bf16.msra.mxu0 %v669
    %724 = vmatprep.subr.bf16.mxu0 0
    %725 = vmatpush1.bf16.msra.mxu0 %v670
    %726 = vmatprep.subr.bf16.mxu0 0
    %727 = vmatpush1.bf16.msra.mxu0 0
    %728 = vmatprep.subr.bf16.mxu0 0
    %729 = vmatpush1.bf16.msra.mxu0 0
    %730 = vmatprep.subr.bf16.mxu0 0
    %731 = vmatpush1.bf16.msra.mxu0 0
    %732 = vmatprep.subr.bf16.mxu0 0
    %733 = vmatpush1.bf16.msra.mxu0 0
    %734 = vmatprep.subr.bf16.mxu0 0
    %735 = vmatpush1.bf16.msra.mxu0 0
    %736 = vmatprep.subr.bf16.mxu0 0
    %737 = vmatpush1.bf16.msra.mxu0 0
    %738 = vmatprep.subr.bf16.mxu0 0
    %739 = vmatpush1.bf16.msra.mxu0 0
    %740 = vmatprep.subr.bf16.mxu0 0
    %741 = vmatpush1.bf16.msra.mxu0 0
    %742 = vmatprep.subr.bf16.mxu0 0
    %743 = vmatpush1.bf16.msra.mxu0 0
    %744 = vmatprep.subr.bf16.mxu0 0
    %745 = vmatpush1.bf16.msra.mxu0 0
    %746 = vmatprep.subr.bf16.mxu0 0
    %747 = vmatpush1.bf16.msra.mxu0 0
    %748 = vmatprep.subr.bf16.mxu0 0
    %749 = vmatpush1.bf16.msra.mxu0 0
    %750 = vmatprep.subr.bf16.mxu0 0
    %751 = vmatpush1.bf16.msra.mxu0 0
    %752 = vmatprep.subr.bf16.mxu0 0
    %753 = vmatpush1.bf16.msra.mxu0 0
    %754 = vmatprep.mubr.bf16.mxu0 0
    %755 = vmatmul.mubr.bf16.gmra.mrb[0].mxu0 %v675
    %v756 = vpop.f32.mrb[0].mxu0
    %v757 = vadd.f32 %v659, %v756
    %v758 = vpop.f32.mrb[0].mxu0
    %v759 = vpop.f32.mrb[0].mxu0
    %v760 = vadd.f32 %v659, %v759
    %v761 = vpop.f32.mrb[0].mxu0
    %762 = vmatprep.mubr.bf16.mxu0 0
    %763 = vmatmul.mubr.bf16.gmra.mrb[0].mxu0 %v678
    %v764 = vpop.f32.mrb[0].mxu0
    %v765 = vadd.f32 %v659, %v764
    %v766 = vpop.f32.mrb[0].mxu0
    %v767 = vpop.f32.mrb[0].mxu0
    %v768 = vadd.f32 %v659, %v767
    %v769 = vpop.f32.mrb[0].mxu0
    %770 = vmatprep.mubr.bf16.mxu0 0
    %771 = vmatmul.mubr.bf16.gmra.mrb[0].mxu0 %v681
    %v772 = vpop.f32.mrb[0].mxu0
    %v773 = vadd.f32 %v659, %v772
    %v774 = vpop.f32.mrb[0].mxu0
    %v775 = vpop.f32.mrb[0].mxu0
    %v776 = vadd.f32 %v659, %v775
    %v777 = vpop.f32.mrb[0].mxu0
    %778 = vmatprep.mubr.bf16.mxu0 0
    %779 = vmatmul.mubr.bf16.gmra.mrb[0].mxu0 %v684
    %v780 = vpop.f32.mrb[0].mxu0
    %v781 = vadd.f32 %v659, %v780
    %v782 = vpop.f32.mrb[0].mxu0
    %v783 = vpop.f32.mrb[0].mxu0
    %v784 = vadd.f32 %v659, %v783
    %v785 = vpop.f32.mrb[0].mxu0
    %786 = vmatprep.mubr.bf16.mxu0 0
    %787 = vmatmul.mubr.bf16.gmra.mrb[0].mxu0 %v687
    %v788 = vpop.f32.mrb[0].mxu0
    %v789 = vadd.f32 %v659, %v788
    %v790 = vpop.f32.mrb[0].mxu0
    %v791 = vpop.f32.mrb[0].mxu0
    %v792 = vadd.f32 %v659, %v791
    %v793 = vpop.f32.mrb[0].mxu0
    %794 = vmatprep.mubr.bf16.mxu0 0
    %795 = vmatmul.mubr.bf16.gmra.mrb[0].mxu0 %v690
    %v796 = vpop.f32.mrb[0].mxu0
    %v797 = vadd.f32 %v659, %v796
    %v798 = vpop.f32.mrb[0].mxu0
    %v799 = vpop.f32.mrb[0].mxu0
    %v800 = vadd.f32 %v659, %v799
    %v801 = vpop.f32.mrb[0].mxu0
    %802 = vmatprep.mubr.bf16.mxu0 0
    %803 = vmatmul.mubr.bf16.gmra.mrb[0].mxu0 %v693
    %v804 = vpop.f32.mrb[0].mxu0
    %v805 = vadd.f32 %v659, %v804
    %v806 = vpop.f32.mrb[0].mxu0
    %v807 = vpop.f32.mrb[0].mxu0
    %v808 = vadd.f32 %v659, %v807
    %v809 = vpop.f32.mrb[0].mxu0
    %810 = vmatprep.mubr.bf16.mxu0 0
    %811 = vmatmul.mubr.bf16.gmra.mrb[0].mxu0 %v696
    %v812 = vpop.f32.mrb[0].mxu0
    %v813 = vadd.f32 %v659, %v812
    %v814 = vpop.f32.mrb[0].mxu0
    %v815 = vpop.f32.mrb[0].mxu0
    %v816 = vadd.f32 %v659, %v815
    %v817 = vpop.f32.mrb[0].mxu0
    %818 = vmatprep.mubr.bf16.mxu0 0
    %819 = vmatmul.mubr.bf16.gmra.mrb[0].mxu0 %v699
    %v820 = vpop.f32.mrb[0].mxu0
    %v821 = vadd.f32 %v659, %v820
    %v822 = vpop.f32.mrb[0].mxu0
    %v823 = vpop.f32.mrb[0].mxu0
    %v824 = vadd.f32 %v659, %v823
    %v825 = vpop.f32.mrb[0].mxu0
    %826 = vmatprep.mubr.bf16.mxu0 0
    %827 = vmatmul.mubr.bf16.gmra.mrb[0].mxu0 %v702
    %v828 = vpop.f32.mrb[0].mxu0
    %v829 = vadd.f32 %v659, %v828
    %v830 = vpop.f32.mrb[0].mxu0
    %v831 = vpop.f32.mrb[0].mxu0
    %v832 = vadd.f32 %v659, %v831
    %v833 = vpop.f32.mrb[0].mxu0
    %834 = vmatprep.mubr.bf16.mxu0 0
    %835 = vmatmul.mubr.bf16.gmra.mrb[0].mxu0 %v705
    %v836 = vpop.f32.mrb[0].mxu0
    %v837 = vadd.f32 %v659, %v836
    %v838 = vpop.f32.mrb[0].mxu0
    %v839 = vpop.f32.mrb[0].mxu0
    %v840 = vadd.f32 %v659, %v839
    %v841 = vpop.f32.mrb[0].mxu0
    %842 = vmatprep.mubr.bf16.mxu0 0
    %843 = vmatmul.mubr.bf16.gmra.mrb[0].mxu0 %v708
    %v844 = vpop.f32.mrb[0].mxu0
    %v845 = vadd.f32 %v659, %v844
    %v846 = vpop.f32.mrb[0].mxu0
    %v847 = vpop.f32.mrb[0].mxu0
    %v848 = vadd.f32 %v659, %v847
    %v849 = vpop.f32.mrb[0].mxu0
    %850 = vmatprep.mubr.bf16.mxu0 0
    %851 = vmatmul.mubr.bf16.gmra.mrb[0].mxu0 %v711
    %v852 = vpop.f32.mrb[0].mxu0
    %v853 = vadd.f32 %v659, %v852
    %v854 = vpop.f32.mrb[0].mxu0
    %v855 = vpop.f32.mrb[0].mxu0
    %v856 = vadd.f32 %v659, %v855
    %v857 = vpop.f32.mrb[0].mxu0
    %858 = vmatprep.mubr.bf16.mxu0 0
    %859 = vmatmul.mubr.bf16.gmra.mrb[0].mxu0 %v714
    %v860 = vpop.f32.mrb[0].mxu0
    %v861 = vadd.f32 %v659, %v860
    %v862 = vpop.f32.mrb[0].mxu0
    %v863 = vpop.f32.mrb[0].mxu0
    %v864 = vadd.f32 %v659, %v863
    %v865 = vpop.f32.mrb[0].mxu0
    %866 = vmatprep.mubr.bf16.mxu0 0
    %867 = vmatmul.mubr.bf16.gmra.mrb[0].mxu0 %v717
    %v868 = vpop.f32.mrb[0].mxu0
    %v869 = vadd.f32 %v659, %v868
    %v870 = vpop.f32.mrb[0].mxu0
    %v871 = vpop.f32.mrb[0].mxu0
    %v872 = vadd.f32 %v659, %v871
    %v873 = vpop.f32.mrb[0].mxu0
    %874 = vmatprep.mubr.bf16.mxu0 0
    %875 = vmatmul.mubr.bf16.gmra.mrb[0].mxu0 %v720
    %v876 = vpop.f32.mrb[0].mxu0
    %v877 = vadd.f32 %v659, %v876
    %v878 = vpop.f32.mrb[0].mxu0
    %v879 = vpop.f32.mrb[0].mxu0
    %v880 = vadd.f32 %v659, %v879
    %v881 = vpop.f32.mrb[0].mxu0
    %882 = vdwg.mxu0
    %v883 = vtanh.pop %v757
    %v884 = vtanh.pop %v760
    %v885 = vtanh.pop %v765
    %v886 = vtanh.pop %v768
    %v887 = vtanh.pop %v773
    %v888 = vtanh.pop %v776
    %v889 = vtanh.pop %v781
    %v890 = vtanh.pop %v784
    %v891 = vtanh.pop %v789
    %v892 = vtanh.pop %v792
    %v893 = vtanh.pop %v797
    %v894 = vtanh.pop %v800
    %v895 = vtanh.pop %v805
    %v896 = vtanh.pop %v808
    %v897 = vtanh.pop %v813
    %v898 = vtanh.pop %v816
    %v899 = vtanh.pop %v821
    %v900 = vtanh.pop %v824
    %v901 = vtanh.pop %v829
    %v902 = vtanh.pop %v832
    %v903 = vtanh.pop %v837
    %v904 = vtanh.pop %v840
    %v905 = vtanh.pop %v845
    %v906 = vtanh.pop %v848
    %v907 = vtanh.pop %v853
    %v908 = vtanh.pop %v856
    %v909 = vtanh.pop %v861
    %v910 = vtanh.pop %v864
    %v911 = vtanh.pop %v869
    %v912 = vtanh.pop %v872
    %v913 = vtanh.pop %v877
    %v914 = vtanh.pop %v880
    %v915 = vld [vmem:[%s6] sm:$0xf]
    %v916 = vld [vmem:[%s6 + $0x4] sm:$0xf]
    %v917 = vld [vmem:[%s6 + $0x8] sm:$0xf]
    %v918 = vld [vmem:[%s6 + $0xc] sm:$0xf]
    %v919 = vld [vmem:[%s8] sm:$0x1]
    %v921 = vlaneseq
    %v922 = vshrl.u32 %v921, 7
    %v923 = vsub.s32 0, %v922
    %v924 = vrot.slane %v919, %v923
    %v930 = vunpack.c.l.b16 %v915
    %v931 = vunpack.c.l.b16 %v916
    %v932 = vunpack.c.l.b16 %v917
    %v933 = vunpack.c.l.b16 %v918
    %v934 = vpack.c.b16 %v931, %v930
    %v935 = vpack.c.b16 %v933, %v932
    %938 = vmatprep.subr.bf16.mxu0 0
    %939 = vmatpush1.bf16.msra.mxu0 %v934
    %940 = vmatprep.subr.bf16.mxu0 0
    %941 = vmatpush1.bf16.msra.mxu0 %v935
    %942 = vmatprep.subr.bf16.mxu0 0
    %943 = vmatpush1.bf16.msra.mxu0 0
    %944 = vmatprep.subr.bf16.mxu0 0
    %945 = vmatpush1.bf16.msra.mxu0 0
    %946 = vmatprep.subr.bf16.mxu0 0
    %947 = vmatpush1.bf16.msra.mxu0 0
    %948 = vmatprep.subr.bf16.mxu0 0
    %949 = vmatpush1.bf16.msra.mxu0 0
    %950 = vmatprep.subr.bf16.mxu0 0
    %951 = vmatpush1.bf16.msra.mxu0 0
    %952 = vmatprep.subr.bf16.mxu0 0
    %953 = vmatpush1.bf16.msra.mxu0 0
    %954 = vmatprep.subr.bf16.mxu0 0
    %955 = vmatpush1.bf16.msra.mxu0 0
    %956 = vmatprep.subr.bf16.mxu0 0
    %957 = vmatpush1.bf16.msra.mxu0 0
    %958 = vmatprep.subr.bf16.mxu0 0
    %959 = vmatpush1.bf16.msra.mxu0 0
    %960 = vmatprep.subr.bf16.mxu0 0
    %961 = vmatpush1.bf16.msra.mxu0 0
    %962 = vmatprep.subr.bf16.mxu0 0
    %963 = vmatpush1.bf16.msra.mxu0 0
    %964 = vmatprep.subr.bf16.mxu0 0
    %965 = vmatpush1.bf16.msra.mxu0 0
    %966 = vmatprep.subr.bf16.mxu0 0
    %967 = vmatpush1.bf16.msra.mxu0 0
    %968 = vmatprep.subr.bf16.mxu0 0
    %969 = vmatpush1.bf16.msra.mxu0 0
    %970 = vmatprep.mubr.bf16.mxu0 0
    %971 = vmatmul.mubr.bf16.gmra.mrb[0].mxu0 %v675
    %v972 = vpop.f32.mrb[0].mxu0
    %v973 = vadd.f32 %v924, %v972
    %v974 = vpop.f32.mrb[0].mxu0
    %v975 = vpop.f32.mrb[0].mxu0
    %v976 = vadd.f32 %v924, %v975
    %v977 = vpop.f32.mrb[0].mxu0
    %978 = vmatprep.mubr.bf16.mxu0 0
    %979 = vmatmul.mubr.bf16.gmra.mrb[0].mxu0 %v678
    %v980 = vpop.f32.mrb[0].mxu0
    %v981 = vadd.f32 %v924, %v980
    %v982 = vpop.f32.mrb[0].mxu0
    %v983 = vpop.f32.mrb[0].mxu0
    %v984 = vadd.f32 %v924, %v983
    %v985 = vpop.f32.mrb[0].mxu0
    %986 = vmatprep.mubr.bf16.mxu0 0
    %987 = vmatmul.mubr.bf16.gmra.mrb[0].mxu0 %v681
    %v988 = vpop.f32.mrb[0].mxu0
    %v989 = vadd.f32 %v924, %v988
    %v990 = vpop.f32.mrb[0].mxu0
    %v991 = vpop.f32.mrb[0].mxu0
    %v992 = vadd.f32 %v924, %v991
    %v993 = vpop.f32.mrb[0].mxu0
    %994 = vmatprep.mubr.bf16.mxu0 0
    %995 = vmatmul.mubr.bf16.gmra.mrb[0].mxu0 %v684
    %v996 = vpop.f32.mrb[0].mxu0
    %v997 = vadd.f32 %v924, %v996
    %v998 = vpop.f32.mrb[0].mxu0
    %v999 = vpop.f32.mrb[0].mxu0
    %v1000 = vadd.f32 %v924, %v999
    %v1001 = vpop.f32.mrb[0].mxu0
    %1002 = vmatprep.mubr.bf16.mxu0 0
    %1003 = vmatmul.mubr.bf16.gmra.mrb[0].mxu0 %v687
    %v1004 = vpop.f32.mrb[0].mxu0
    %v1005 = vadd.f32 %v924, %v1004
    %v1006 = vpop.f32.mrb[0].mxu0
    %v1007 = vpop.f32.mrb[0].mxu0
    %v1008 = vadd.f32 %v924, %v1007
    %v1009 = vpop.f32.mrb[0].mxu0
    %1010 = vmatprep.mubr.bf16.mxu0 0
    %1011 = vmatmul.mubr.bf16.gmra.mrb[0].mxu0 %v690
    %v1012 = vpop.f32.mrb[0].mxu0
    %v1013 = vadd.f32 %v924, %v1012
    %v1014 = vpop.f32.mrb[0].mxu0
    %v1015 = vpop.f32.mrb[0].mxu0
    %v1016 = vadd.f32 %v924, %v1015
    %v1017 = vpop.f32.mrb[0].mxu0
    %1018 = vmatprep.mubr.bf16.mxu0 0
    %1019 = vmatmul.mubr.bf16.gmra.mrb[0].mxu0 %v693
    %v1020 = vpop.f32.mrb[0].mxu0
    %v1021 = vadd.f32 %v924, %v1020
    %v1022 = vpop.f32.mrb[0].mxu0
    %v1023 = vpop.f32.mrb[0].mxu0
    %v1024 = vadd.f32 %v924, %v1023
    %v1025 = vpop.f32.mrb[0].mxu0
    %1026 = vmatprep.mubr.bf16.mxu0 0
    %1027 = vmatmul.mubr.bf16.gmra.mrb[0].mxu0 %v696
    %v1028 = vpop.f32.mrb[0].mxu0
    %v1029 = vadd.f32 %v924, %v1028
    %v1030 = vpop.f32.mrb[0].mxu0
    %v1031 = vpop.f32.mrb[0].mxu0
    %v1032 = vadd.f32 %v924, %v1031
    %v1033 = vpop.f32.mrb[0].mxu0
    %1034 = vmatprep.mubr.bf16.mxu0 0
    %1035 = vmatmul.mubr.bf16.gmra.mrb[0].mxu0 %v699
    %v1036 = vpop.f32.mrb[0].mxu0
    %v1037 = vadd.f32 %v924, %v1036
    %v1038 = vpop.f32.mrb[0].mxu0
    %v1039 = vpop.f32.mrb[0].mxu0
    %v1040 = vadd.f32 %v924, %v1039
    %v1041 = vpop.f32.mrb[0].mxu0
    %1042 = vmatprep.mubr.bf16.mxu0 0
    %1043 = vmatmul.mubr.bf16.gmra.mrb[0].mxu0 %v702
    %v1044 = vpop.f32.mrb[0].mxu0
    %v1045 = vadd.f32 %v924, %v1044
    %v1046 = vpop.f32.mrb[0].mxu0
    %v1047 = vpop.f32.mrb[0].mxu0
    %v1048 = vadd.f32 %v924, %v1047
    %v1049 = vpop.f32.mrb[0].mxu0
    %1050 = vmatprep.mubr.bf16.mxu0 0
    %1051 = vmatmul.mubr.bf16.gmra.mrb[0].mxu0 %v705
    %v1052 = vpop.f32.mrb[0].mxu0
    %v1053 = vadd.f32 %v924, %v1052
    %v1054 = vpop.f32.mrb[0].mxu0
    %v1055 = vpop.f32.mrb[0].mxu0
    %v1056 = vadd.f32 %v924, %v1055
    %v1057 = vpop.f32.mrb[0].mxu0
    %1058 = vmatprep.mubr.bf16.mxu0 0
    %1059 = vmatmul.mubr.bf16.gmra.mrb[0].mxu0 %v708
    %v1060 = vpop.f32.mrb[0].mxu0
    %v1061 = vadd.f32 %v924, %v1060
    %v1062 = vpop.f32.mrb[0].mxu0
    %v1063 = vpop.f32.mrb[0].mxu0
    %v1064 = vadd.f32 %v924, %v1063
    %v1065 = vpop.f32.mrb[0].mxu0
    %1066 = vmatprep.mubr.bf16.mxu0 0
    %1067 = vmatmul.mubr.bf16.gmra.mrb[0].mxu0 %v711
    %v1068 = vpop.f32.mrb[0].mxu0
    %v1069 = vadd.f32 %v924, %v1068
    %v1070 = vpop.f32.mrb[0].mxu0
    %v1071 = vpop.f32.mrb[0].mxu0
    %v1072 = vadd.f32 %v924, %v1071
    %v1073 = vpop.f32.mrb[0].mxu0
    %1074 = vmatprep.mubr.bf16.mxu0 0
    %1075 = vmatmul.mubr.bf16.gmra.mrb[0].mxu0 %v714
    %v1076 = vpop.f32.mrb[0].mxu0
    %v1077 = vadd.f32 %v924, %v1076
    %v1078 = vpop.f32.mrb[0].mxu0
    %v1079 = vpop.f32.mrb[0].mxu0
    %v1080 = vadd.f32 %v924, %v1079
    %v1081 = vpop.f32.mrb[0].mxu0
    %1082 = vmatprep.mubr.bf16.mxu0 0
    %1083 = vmatmul.mubr.bf16.gmra.mrb[0].mxu0 %v717
    %v1084 = vpop.f32.mrb[0].mxu0
    %v1085 = vadd.f32 %v924, %v1084
    %v1086 = vpop.f32.mrb[0].mxu0
    %v1087 = vpop.f32.mrb[0].mxu0
    %v1088 = vadd.f32 %v924, %v1087
    %v1089 = vpop.f32.mrb[0].mxu0
    %1090 = vmatprep.mubr.bf16.mxu0 0
    %1091 = vmatmul.mubr.bf16.gmra.mrb[0].mxu0 %v720
    %v1092 = vpop.f32.mrb[0].mxu0
    %v1093 = vadd.f32 %v924, %v1092
    %v1094 = vpop.f32.mrb[0].mxu0
    %v1095 = vpop.f32.mrb[0].mxu0
    %v1096 = vadd.f32 %v924, %v1095
    %v1097 = vpop.f32.mrb[0].mxu0
    %1098 = vdwg.mxu0
    %v1099 = vtanh.pop %v973
    %v1100 = vtanh.pop %v976
    %v1101 = vtanh.pop %v981
    %v1102 = vtanh.pop %v984
    %v1103 = vtanh.pop %v989
    %v1104 = vtanh.pop %v992
    %v1105 = vtanh.pop %v997
    %v1106 = vtanh.pop %v1000
    %v1107 = vtanh.pop %v1005
    %v1108 = vtanh.pop %v1008
    %v1109 = vtanh.pop %v1013
    %v1110 = vtanh.pop %v1016
    %v1111 = vtanh.pop %v1021
    %v1112 = vtanh.pop %v1024
    %v1113 = vtanh.pop %v1029
    %v1114 = vtanh.pop %v1032
    %v1115 = vtanh.pop %v1037
    %v1116 = vtanh.pop %v1040
    %v1117 = vtanh.pop %v1045
    %v1118 = vtanh.pop %v1048
    %v1119 = vtanh.pop %v1053
    %v1120 = vtanh.pop %v1056
    %v1121 = vtanh.pop %v1061
    %v1122 = vtanh.pop %v1064
    %v1123 = vtanh.pop %v1069
    %v1124 = vtanh.pop %v1072
    %v1125 = vtanh.pop %v1077
    %v1126 = vtanh.pop %v1080
    %v1127 = vtanh.pop %v1085
    %v1128 = vtanh.pop %v1088
    %v1129 = vtanh.pop %v1093
    %v1130 = vtanh.pop %v1096
    %v1131 = vmul.f32 %v883, 15.0
    %v1132 = vmul.f32 %v884, 15.0
    %v1133 = vmul.f32 %v885, 15.0
    %v1134 = vmul.f32 %v886, 15.0
    %v1135 = vmul.f32 %v887, 15.0
    %v1136 = vmul.f32 %v888, 15.0
    %v1137 = vmul.f32 %v889, 15.0
    %v1138 = vmul.f32 %v890, 15.0
    %v1139 = vmul.f32 %v891, 15.0
    %v1140 = vmul.f32 %v892, 15.0
    %v1141 = vmul.f32 %v893, 15.0
    %v1142 = vmul.f32 %v894, 15.0
    %v1143 = vmul.f32 %v895, 15.0
    %v1144 = vmul.f32 %v896, 15.0
    %v1145 = vmul.f32 %v897, 15.0
    %v1146 = vmul.f32 %v898, 15.0
    %v1147 = vmul.f32 %v899, 15.0
    %v1148 = vmul.f32 %v900, 15.0
    %v1149 = vmul.f32 %v901, 15.0
    %v1150 = vmul.f32 %v902, 15.0
    %v1151 = vmul.f32 %v903, 15.0
    %v1152 = vmul.f32 %v904, 15.0
    %v1153 = vmul.f32 %v905, 15.0
    %v1154 = vmul.f32 %v906, 15.0
    %v1155 = vmul.f32 %v907, 15.0
    %v1156 = vmul.f32 %v908, 15.0
    %v1157 = vmul.f32 %v909, 15.0
    %v1158 = vmul.f32 %v910, 15.0
    %v1159 = vmul.f32 %v911, 15.0
    %v1160 = vmul.f32 %v912, 15.0
    %v1161 = vmul.f32 %v913, 15.0
    %v1162 = vmul.f32 %v914, 15.0
    %v1163 = vadd.f32 %v1131, 15.0
    %v1164 = vadd.f32 %v1132, 15.0
    %v1165 = vadd.f32 %v1133, 15.0
    %v1166 = vadd.f32 %v1134, 15.0
    %v1167 = vadd.f32 %v1135, 15.0
    %v1168 = vadd.f32 %v1136, 15.0
    %v1169 = vadd.f32 %v1137, 15.0
    %v1170 = vadd.f32 %v1138, 15.0
    %v1171 = vadd.f32 %v1139, 15.0
    %v1172 = vadd.f32 %v1140, 15.0
    %v1173 = vadd.f32 %v1141, 15.0
    %v1174 = vadd.f32 %v1142, 15.0
    %v1175 = vadd.f32 %v1143, 15.0
    %v1176 = vadd.f32 %v1144, 15.0
    %v1177 = vadd.f32 %v1145, 15.0
    %v1178 = vadd.f32 %v1146, 15.0
    %v1179 = vadd.f32 %v1147, 15.0
    %v1180 = vadd.f32 %v1148, 15.0
    %v1181 = vadd.f32 %v1149, 15.0
    %v1182 = vadd.f32 %v1150, 15.0
    %v1183 = vadd.f32 %v1151, 15.0
    %v1184 = vadd.f32 %v1152, 15.0
    %v1185 = vadd.f32 %v1153, 15.0
    %v1186 = vadd.f32 %v1154, 15.0
    %v1187 = vadd.f32 %v1155, 15.0
    %v1188 = vadd.f32 %v1156, 15.0
    %v1189 = vadd.f32 %v1157, 15.0
    %v1190 = vadd.f32 %v1158, 15.0
    %v1191 = vadd.f32 %v1159, 15.0
    %v1192 = vadd.f32 %v1160, 15.0
    %v1193 = vadd.f32 %v1161, 15.0
    %v1194 = vadd.f32 %v1162, 15.0
    %v1195 = vmul.f32 %v1099, 15.0
    %v1196 = vmul.f32 %v1100, 15.0
    %v1197 = vmul.f32 %v1101, 15.0
    %v1198 = vmul.f32 %v1102, 15.0
    %v1199 = vmul.f32 %v1103, 15.0
    %v1200 = vmul.f32 %v1104, 15.0
    %v1201 = vmul.f32 %v1105, 15.0
    %v1202 = vmul.f32 %v1106, 15.0
    %v1203 = vmul.f32 %v1107, 15.0
    %v1204 = vmul.f32 %v1108, 15.0
    %v1205 = vmul.f32 %v1109, 15.0
    %v1206 = vmul.f32 %v1110, 15.0
    %v1207 = vmul.f32 %v1111, 15.0
    %v1208 = vmul.f32 %v1112, 15.0
    %v1209 = vmul.f32 %v1113, 15.0
    %v1210 = vmul.f32 %v1114, 15.0
    %v1211 = vmul.f32 %v1115, 15.0
    %v1212 = vmul.f32 %v1116, 15.0
    %v1213 = vmul.f32 %v1117, 15.0
    %v1214 = vmul.f32 %v1118, 15.0
    %v1215 = vmul.f32 %v1119, 15.0
    %v1216 = vmul.f32 %v1120, 15.0
    %v1217 = vmul.f32 %v1121, 15.0
    %v1218 = vmul.f32 %v1122, 15.0
    %v1219 = vmul.f32 %v1123, 15.0
    %v1220 = vmul.f32 %v1124, 15.0
    %v1221 = vmul.f32 %v1125, 15.0
    %v1222 = vmul.f32 %v1126, 15.0
    %v1223 = vmul.f32 %v1127, 15.0
    %v1224 = vmul.f32 %v1128, 15.0
    %v1225 = vmul.f32 %v1129, 15.0
    %v1226 = vmul.f32 %v1130, 15.0
    %v1227 = vadd.f32 %v1195, 15.0
    %v1228 = vadd.f32 %v1196, 15.0
    %v1229 = vadd.f32 %v1197, 15.0
    %v1230 = vadd.f32 %v1198, 15.0
    %v1231 = vadd.f32 %v1199, 15.0
    %v1232 = vadd.f32 %v1200, 15.0
    %v1233 = vadd.f32 %v1201, 15.0
    %v1234 = vadd.f32 %v1202, 15.0
    %v1235 = vadd.f32 %v1203, 15.0
    %v1236 = vadd.f32 %v1204, 15.0
    %v1237 = vadd.f32 %v1205, 15.0
    %v1238 = vadd.f32 %v1206, 15.0
    %v1239 = vadd.f32 %v1207, 15.0
    %v1240 = vadd.f32 %v1208, 15.0
    %v1241 = vadd.f32 %v1209, 15.0
    %v1242 = vadd.f32 %v1210, 15.0
    %v1243 = vadd.f32 %v1211, 15.0
    %v1244 = vadd.f32 %v1212, 15.0
    %v1245 = vadd.f32 %v1213, 15.0
    %v1246 = vadd.f32 %v1214, 15.0
    %v1247 = vadd.f32 %v1215, 15.0
    %v1248 = vadd.f32 %v1216, 15.0
    %v1249 = vadd.f32 %v1217, 15.0
    %v1250 = vadd.f32 %v1218, 15.0
    %v1251 = vadd.f32 %v1219, 15.0
    %v1252 = vadd.f32 %v1220, 15.0
    %v1253 = vadd.f32 %v1221, 15.0
    %v1254 = vadd.f32 %v1222, 15.0
    %v1255 = vadd.f32 %v1223, 15.0
    %v1256 = vadd.f32 %v1224, 15.0
    %v1257 = vadd.f32 %v1225, 15.0
    %v1258 = vadd.f32 %v1226, 15.0
    %vm1259 = vcmp.gt.f32.partialorder %v1163, 0.0
    %vm1260 = vcmp.gt.f32.partialorder %v1164, 0.0
    %vm1261 = vcmp.gt.f32.partialorder %v1165, 0.0
    %vm1262 = vcmp.gt.f32.partialorder %v1166, 0.0
    %vm1263 = vcmp.gt.f32.partialorder %v1167, 0.0
    %vm1264 = vcmp.gt.f32.partialorder %v1168, 0.0
    %vm1265 = vcmp.gt.f32.partialorder %v1169, 0.0
    %vm1266 = vcmp.gt.f32.partialorder %v1170, 0.0
    %vm1267 = vcmp.gt.f32.partialorder %v1171, 0.0
    %vm1268 = vcmp.gt.f32.partialorder %v1172, 0.0
    %vm1269 = vcmp.gt.f32.partialorder %v1173, 0.0
    %vm1270 = vcmp.gt.f32.partialorder %v1174, 0.0
    %vm1271 = vcmp.gt.f32.partialorder %v1175, 0.0
    %vm1272 = vcmp.gt.f32.partialorder %v1176, 0.0
    %vm1273 = vcmp.gt.f32.partialorder %v1177, 0.0
    %vm1274 = vcmp.gt.f32.partialorder %v1178, 0.0
    %vm1275 = vcmp.gt.f32.partialorder %v1179, 0.0
    %vm1276 = vcmp.gt.f32.partialorder %v1180, 0.0
    %vm1277 = vcmp.gt.f32.partialorder %v1181, 0.0
    %vm1278 = vcmp.gt.f32.partialorder %v1182, 0.0
    %vm1279 = vcmp.gt.f32.partialorder %v1183, 0.0
    %vm1280 = vcmp.gt.f32.partialorder %v1184, 0.0
    %vm1281 = vcmp.gt.f32.partialorder %v1185, 0.0
    %vm1282 = vcmp.gt.f32.partialorder %v1186, 0.0
    %vm1283 = vcmp.gt.f32.partialorder %v1187, 0.0
    %vm1284 = vcmp.gt.f32.partialorder %v1188, 0.0
    %vm1285 = vcmp.gt.f32.partialorder %v1189, 0.0
    %vm1286 = vcmp.gt.f32.partialorder %v1190, 0.0
    %vm1287 = vcmp.gt.f32.partialorder %v1191, 0.0
    %vm1288 = vcmp.gt.f32.partialorder %v1192, 0.0
    %vm1289 = vcmp.gt.f32.partialorder %v1193, 0.0
    %vm1290 = vcmp.gt.f32.partialorder %v1194, 0.0
    %vm1291 = vcmp.lt.f32.partialorder %v1163, 30.0
    %vm1292 = vcmp.lt.f32.partialorder %v1164, 30.0
    %vm1293 = vcmp.lt.f32.partialorder %v1165, 30.0
    %vm1294 = vcmp.lt.f32.partialorder %v1166, 30.0
    %vm1295 = vcmp.lt.f32.partialorder %v1167, 30.0
    %vm1296 = vcmp.lt.f32.partialorder %v1168, 30.0
    %vm1297 = vcmp.lt.f32.partialorder %v1169, 30.0
    %vm1298 = vcmp.lt.f32.partialorder %v1170, 30.0
    %vm1299 = vcmp.lt.f32.partialorder %v1171, 30.0
    %vm1300 = vcmp.lt.f32.partialorder %v1172, 30.0
    %vm1301 = vcmp.lt.f32.partialorder %v1173, 30.0
    %vm1302 = vcmp.lt.f32.partialorder %v1174, 30.0
    %vm1303 = vcmp.lt.f32.partialorder %v1175, 30.0
    %vm1304 = vcmp.lt.f32.partialorder %v1176, 30.0
    %vm1305 = vcmp.lt.f32.partialorder %v1177, 30.0
    %vm1306 = vcmp.lt.f32.partialorder %v1178, 30.0
    %vm1307 = vcmp.lt.f32.partialorder %v1179, 30.0
    %vm1308 = vcmp.lt.f32.partialorder %v1180, 30.0
    %vm1309 = vcmp.lt.f32.partialorder %v1181, 30.0
    %vm1310 = vcmp.lt.f32.partialorder %v1182, 30.0
    %vm1311 = vcmp.lt.f32.partialorder %v1183, 30.0
    %vm1312 = vcmp.lt.f32.partialorder %v1184, 30.0
    %vm1313 = vcmp.lt.f32.partialorder %v1185, 30.0
    %vm1314 = vcmp.lt.f32.partialorder %v1186, 30.0
    %vm1315 = vcmp.lt.f32.partialorder %v1187, 30.0
    %vm1316 = vcmp.lt.f32.partialorder %v1188, 30.0
    %vm1317 = vcmp.lt.f32.partialorder %v1189, 30.0
    %vm1318 = vcmp.lt.f32.partialorder %v1190, 30.0
    %vm1319 = vcmp.lt.f32.partialorder %v1191, 30.0
    %vm1320 = vcmp.lt.f32.partialorder %v1192, 30.0
    %vm1321 = vcmp.lt.f32.partialorder %v1193, 30.0
    %vm1322 = vcmp.lt.f32.partialorder %v1194, 30.0
    %vm1323 = vmand %vm1259, %vm1291
    %vm1324 = vmand %vm1260, %vm1292
    %vm1325 = vmand %vm1261, %vm1293
    %vm1326 = vmand %vm1262, %vm1294
    %vm1327 = vmand %vm1263, %vm1295
    %vm1328 = vmand %vm1264, %vm1296
    %vm1329 = vmand %vm1265, %vm1297
    %vm1330 = vmand %vm1266, %vm1298
    %vm1331 = vmand %vm1267, %vm1299
    %vm1332 = vmand %vm1268, %vm1300
    %vm1333 = vmand %vm1269, %vm1301
    %vm1334 = vmand %vm1270, %vm1302
    %vm1335 = vmand %vm1271, %vm1303
    %vm1336 = vmand %vm1272, %vm1304
    %vm1337 = vmand %vm1273, %vm1305
    %vm1338 = vmand %vm1274, %vm1306
    %vm1339 = vmand %vm1275, %vm1307
    %vm1340 = vmand %vm1276, %vm1308
    %vm1341 = vmand %vm1277, %vm1309
    %vm1342 = vmand %vm1278, %vm1310
    %vm1343 = vmand %vm1279, %vm1311
    %vm1344 = vmand %vm1280, %vm1312
    %vm1345 = vmand %vm1281, %vm1313
    %vm1346 = vmand %vm1282, %vm1314
    %vm1347 = vmand %vm1283, %vm1315
    %vm1348 = vmand %vm1284, %vm1316
    %vm1349 = vmand %vm1285, %vm1317
    %vm1350 = vmand %vm1286, %vm1318
    %vm1351 = vmand %vm1287, %vm1319
    %vm1352 = vmand %vm1288, %vm1320
    %vm1353 = vmand %vm1289, %vm1321
    %vm1354 = vmand %vm1290, %vm1322
    %vm1355 = vcmp.gt.f32.partialorder %v1227, 0.0
    %vm1356 = vcmp.gt.f32.partialorder %v1228, 0.0
    %vm1357 = vcmp.gt.f32.partialorder %v1229, 0.0
    %vm1358 = vcmp.gt.f32.partialorder %v1230, 0.0
    %vm1359 = vcmp.gt.f32.partialorder %v1231, 0.0
    %vm1360 = vcmp.gt.f32.partialorder %v1232, 0.0
    %vm1361 = vcmp.gt.f32.partialorder %v1233, 0.0
    %vm1362 = vcmp.gt.f32.partialorder %v1234, 0.0
    %vm1363 = vcmp.gt.f32.partialorder %v1235, 0.0
    %vm1364 = vcmp.gt.f32.partialorder %v1236, 0.0
    %vm1365 = vcmp.gt.f32.partialorder %v1237, 0.0
    %vm1366 = vcmp.gt.f32.partialorder %v1238, 0.0
    %vm1367 = vcmp.gt.f32.partialorder %v1239, 0.0
    %vm1368 = vcmp.gt.f32.partialorder %v1240, 0.0
    %vm1369 = vcmp.gt.f32.partialorder %v1241, 0.0
    %vm1370 = vcmp.gt.f32.partialorder %v1242, 0.0
    %vm1371 = vcmp.gt.f32.partialorder %v1243, 0.0
    %vm1372 = vcmp.gt.f32.partialorder %v1244, 0.0
    %vm1373 = vcmp.gt.f32.partialorder %v1245, 0.0
    %vm1374 = vcmp.gt.f32.partialorder %v1246, 0.0
    %vm1375 = vcmp.gt.f32.partialorder %v1247, 0.0
    %vm1376 = vcmp.gt.f32.partialorder %v1248, 0.0
    %vm1377 = vcmp.gt.f32.partialorder %v1249, 0.0
    %vm1378 = vcmp.gt.f32.partialorder %v1250, 0.0
    %vm1379 = vcmp.gt.f32.partialorder %v1251, 0.0
    %vm1380 = vcmp.gt.f32.partialorder %v1252, 0.0
    %vm1381 = vcmp.gt.f32.partialorder %v1253, 0.0
    %vm1382 = vcmp.gt.f32.partialorder %v1254, 0.0
    %vm1383 = vcmp.gt.f32.partialorder %v1255, 0.0
    %vm1384 = vcmp.gt.f32.partialorder %v1256, 0.0
    %vm1385 = vcmp.gt.f32.partialorder %v1257, 0.0
    %vm1386 = vcmp.gt.f32.partialorder %v1258, 0.0
    %vm1387 = vmand %vm1323, %vm1355
    %vm1388 = vmand %vm1324, %vm1356
    %vm1389 = vmand %vm1325, %vm1357
    %vm1390 = vmand %vm1326, %vm1358
    %vm1391 = vmand %vm1327, %vm1359
    %vm1392 = vmand %vm1328, %vm1360
    %vm1393 = vmand %vm1329, %vm1361
    %vm1394 = vmand %vm1330, %vm1362
    %vm1395 = vmand %vm1331, %vm1363
    %vm1396 = vmand %vm1332, %vm1364
    %vm1397 = vmand %vm1333, %vm1365
    %vm1398 = vmand %vm1334, %vm1366
    %vm1399 = vmand %vm1335, %vm1367
    %vm1400 = vmand %vm1336, %vm1368
    %vm1401 = vmand %vm1337, %vm1369
    %vm1402 = vmand %vm1338, %vm1370
    %vm1403 = vmand %vm1339, %vm1371
    %vm1404 = vmand %vm1340, %vm1372
    %vm1405 = vmand %vm1341, %vm1373
    %vm1406 = vmand %vm1342, %vm1374
    %vm1407 = vmand %vm1343, %vm1375
    %vm1408 = vmand %vm1344, %vm1376
    %vm1409 = vmand %vm1345, %vm1377
    %vm1410 = vmand %vm1346, %vm1378
    %vm1411 = vmand %vm1347, %vm1379
    %vm1412 = vmand %vm1348, %vm1380
    %vm1413 = vmand %vm1349, %vm1381
    %vm1414 = vmand %vm1350, %vm1382
    %vm1415 = vmand %vm1351, %vm1383
    %vm1416 = vmand %vm1352, %vm1384
    %vm1417 = vmand %vm1353, %vm1385
    %vm1418 = vmand %vm1354, %vm1386
    %vm1419 = vcmp.lt.f32.partialorder %v1227, 30.0
    %vm1420 = vcmp.lt.f32.partialorder %v1228, 30.0
    %vm1421 = vcmp.lt.f32.partialorder %v1229, 30.0
    %vm1422 = vcmp.lt.f32.partialorder %v1230, 30.0
    %vm1423 = vcmp.lt.f32.partialorder %v1231, 30.0
    %vm1424 = vcmp.lt.f32.partialorder %v1232, 30.0
    %vm1425 = vcmp.lt.f32.partialorder %v1233, 30.0
    %vm1426 = vcmp.lt.f32.partialorder %v1234, 30.0
    %vm1427 = vcmp.lt.f32.partialorder %v1235, 30.0
    %vm1428 = vcmp.lt.f32.partialorder %v1236, 30.0
    %vm1429 = vcmp.lt.f32.partialorder %v1237, 30.0
    %vm1430 = vcmp.lt.f32.partialorder %v1238, 30.0
    %vm1431 = vcmp.lt.f32.partialorder %v1239, 30.0
    %vm1432 = vcmp.lt.f32.partialorder %v1240, 30.0
    %vm1433 = vcmp.lt.f32.partialorder %v1241, 30.0
    %vm1434 = vcmp.lt.f32.partialorder %v1242, 30.0
    %vm1435 = vcmp.lt.f32.partialorder %v1243, 30.0
    %vm1436 = vcmp.lt.f32.partialorder %v1244, 30.0
    %vm1437 = vcmp.lt.f32.partialorder %v1245, 30.0
    %vm1438 = vcmp.lt.f32.partialorder %v1246, 30.0
    %vm1439 = vcmp.lt.f32.partialorder %v1247, 30.0
    %vm1440 = vcmp.lt.f32.partialorder %v1248, 30.0
    %vm1441 = vcmp.lt.f32.partialorder %v1249, 30.0
    %vm1442 = vcmp.lt.f32.partialorder %v1250, 30.0
    %vm1443 = vcmp.lt.f32.partialorder %v1251, 30.0
    %vm1444 = vcmp.lt.f32.partialorder %v1252, 30.0
    %vm1445 = vcmp.lt.f32.partialorder %v1253, 30.0
    %vm1446 = vcmp.lt.f32.partialorder %v1254, 30.0
    %vm1447 = vcmp.lt.f32.partialorder %v1255, 30.0
    %vm1448 = vcmp.lt.f32.partialorder %v1256, 30.0
    %vm1449 = vcmp.lt.f32.partialorder %v1257, 30.0
    %vm1450 = vcmp.lt.f32.partialorder %v1258, 30.0
    %vm1451 = vmand %vm1387, %vm1419
    %vm1452 = vmand %vm1388, %vm1420
    %vm1453 = vmand %vm1389, %vm1421
    %vm1454 = vmand %vm1390, %vm1422
    %vm1455 = vmand %vm1391, %vm1423
    %vm1456 = vmand %vm1392, %vm1424
    %vm1457 = vmand %vm1393, %vm1425
    %vm1458 = vmand %vm1394, %vm1426
    %vm1459 = vmand %vm1395, %vm1427
    %vm1460 = vmand %vm1396, %vm1428
    %vm1461 = vmand %vm1397, %vm1429
    %vm1462 = vmand %vm1398, %vm1430
    %vm1463 = vmand %vm1399, %vm1431
    %vm1464 = vmand %vm1400, %vm1432
    %vm1465 = vmand %vm1401, %vm1433
    %vm1466 = vmand %vm1402, %vm1434
    %vm1467 = vmand %vm1403, %vm1435
    %vm1468 = vmand %vm1404, %vm1436
    %vm1469 = vmand %vm1405, %vm1437
    %vm1470 = vmand %vm1406, %vm1438
    %vm1471 = vmand %vm1407, %vm1439
    %vm1472 = vmand %vm1408, %vm1440
    %vm1473 = vmand %vm1409, %vm1441
    %vm1474 = vmand %vm1410, %vm1442
    %vm1475 = vmand %vm1411, %vm1443
    %vm1476 = vmand %vm1412, %vm1444
    %vm1477 = vmand %vm1413, %vm1445
    %vm1478 = vmand %vm1414, %vm1446
    %vm1479 = vmand %vm1415, %vm1447
    %vm1480 = vmand %vm1416, %vm1448
    %vm1481 = vmand %vm1417, %vm1449
    %vm1482 = vmand %vm1418, %vm1450
    %v1483 = vsub.f32 %v1163, 7.5
    %v1484 = vsub.f32 %v1164, 7.5
    %v1485 = vsub.f32 %v1165, 7.5
    %v1486 = vsub.f32 %v1166, 7.5
    %v1487 = vsub.f32 %v1167, 7.5
    %v1488 = vsub.f32 %v1168, 7.5
    %v1489 = vsub.f32 %v1169, 7.5
    %v1490 = vsub.f32 %v1170, 7.5
    %v1491 = vsub.f32 %v1171, 7.5
    %v1492 = vsub.f32 %v1172, 7.5
    %v1493 = vsub.f32 %v1173, 7.5
    %v1494 = vsub.f32 %v1174, 7.5
    %v1495 = vsub.f32 %v1175, 7.5
    %v1496 = vsub.f32 %v1176, 7.5
    %v1497 = vsub.f32 %v1177, 7.5
    %v1498 = vsub.f32 %v1178, 7.5
    %v1499 = vsub.f32 %v1179, 7.5
    %v1500 = vsub.f32 %v1180, 7.5
    %v1501 = vsub.f32 %v1181, 7.5
    %v1502 = vsub.f32 %v1182, 7.5
    %v1503 = vsub.f32 %v1183, 7.5
    %v1504 = vsub.f32 %v1184, 7.5
    %v1505 = vsub.f32 %v1185, 7.5
    %v1506 = vsub.f32 %v1186, 7.5
    %v1507 = vsub.f32 %v1187, 7.5
    %v1508 = vsub.f32 %v1188, 7.5
    %v1509 = vsub.f32 %v1189, 7.5
    %v1510 = vsub.f32 %v1190, 7.5
    %v1511 = vsub.f32 %v1191, 7.5
    %v1512 = vsub.f32 %v1192, 7.5
    %v1513 = vsub.f32 %v1193, 7.5
    %v1514 = vsub.f32 %v1194, 7.5
    %v1515 = vsub.f32 %v1227, 22.5
    %v1516 = vsub.f32 %v1228, 22.5
    %v1517 = vsub.f32 %v1229, 22.5
    %v1518 = vsub.f32 %v1230, 22.5
    %v1519 = vsub.f32 %v1231, 22.5
    %v1520 = vsub.f32 %v1232, 22.5
    %v1521 = vsub.f32 %v1233, 22.5
    %v1522 = vsub.f32 %v1234, 22.5
    %v1523 = vsub.f32 %v1235, 22.5
    %v1524 = vsub.f32 %v1236, 22.5
    %v1525 = vsub.f32 %v1237, 22.5
    %v1526 = vsub.f32 %v1238, 22.5
    %v1527 = vsub.f32 %v1239, 22.5
    %v1528 = vsub.f32 %v1240, 22.5
    %v1529 = vsub.f32 %v1241, 22.5
    %v1530 = vsub.f32 %v1242, 22.5
    %v1531 = vsub.f32 %v1243, 22.5
    %v1532 = vsub.f32 %v1244, 22.5
    %v1533 = vsub.f32 %v1245, 22.5
    %v1534 = vsub.f32 %v1246, 22.5
    %v1535 = vsub.f32 %v1247, 22.5
    %v1536 = vsub.f32 %v1248, 22.5
    %v1537 = vsub.f32 %v1249, 22.5
    %v1538 = vsub.f32 %v1250, 22.5
    %v1539 = vsub.f32 %v1251, 22.5
    %v1540 = vsub.f32 %v1252, 22.5
    %v1541 = vsub.f32 %v1253, 22.5
    %v1542 = vsub.f32 %v1254, 22.5
    %v1543 = vsub.f32 %v1255, 22.5
    %v1544 = vsub.f32 %v1256, 22.5
    %v1545 = vsub.f32 %v1257, 22.5
    %v1546 = vsub.f32 %v1258, 22.5
    %v1547 = vmul.f32 %v1483, %v1483
    %v1548 = vmul.f32 %v1484, %v1484
    %v1549 = vmul.f32 %v1485, %v1485
    %v1550 = vmul.f32 %v1486, %v1486
    %v1551 = vmul.f32 %v1487, %v1487
    %v1552 = vmul.f32 %v1488, %v1488
    %v1553 = vmul.f32 %v1489, %v1489
    %v1554 = vmul.f32 %v1490, %v1490
    %v1555 = vmul.f32 %v1491, %v1491
    %v1556 = vmul.f32 %v1492, %v1492
    %v1557 = vmul.f32 %v1493, %v1493
    %v1558 = vmul.f32 %v1494, %v1494
    %v1559 = vmul.f32 %v1495, %v1495
    %v1560 = vmul.f32 %v1496, %v1496
    %v1561 = vmul.f32 %v1497, %v1497
    %v1562 = vmul.f32 %v1498, %v1498
    %v1563 = vmul.f32 %v1499, %v1499
    %v1564 = vmul.f32 %v1500, %v1500
    %v1565 = vmul.f32 %v1501, %v1501
    %v1566 = vmul.f32 %v1502, %v1502
    %v1567 = vmul.f32 %v1503, %v1503
    %v1568 = vmul.f32 %v1504, %v1504
    %v1569 = vmul.f32 %v1505, %v1505
    %v1570 = vmul.f32 %v1506, %v1506
    %v1571 = vmul.f32 %v1507, %v1507
    %v1572 = vmul.f32 %v1508, %v1508
    %v1573 = vmul.f32 %v1509, %v1509
    %v1574 = vmul.f32 %v1510, %v1510
    %v1575 = vmul.f32 %v1511, %v1511
    %v1576 = vmul.f32 %v1512, %v1512
    %v1577 = vmul.f32 %v1513, %v1513
    %v1578 = vmul.f32 %v1514, %v1514
    %v1579 = vmul.f32 %v1515, %v1515
    %v1580 = vmul.f32 %v1516, %v1516
    %v1581 = vmul.f32 %v1517, %v1517
    %v1582 = vmul.f32 %v1518, %v1518
    %v1583 = vmul.f32 %v1519, %v1519
    %v1584 = vmul.f32 %v1520, %v1520
    %v1585 = vmul.f32 %v1521, %v1521
    %v1586 = vmul.f32 %v1522, %v1522
    %v1587 = vmul.f32 %v1523, %v1523
    %v1588 = vmul.f32 %v1524, %v1524
    %v1589 = vmul.f32 %v1525, %v1525
    %v1590 = vmul.f32 %v1526, %v1526
    %v1591 = vmul.f32 %v1527, %v1527
    %v1592 = vmul.f32 %v1528, %v1528
    %v1593 = vmul.f32 %v1529, %v1529
    %v1594 = vmul.f32 %v1530, %v1530
    %v1595 = vmul.f32 %v1531, %v1531
    %v1596 = vmul.f32 %v1532, %v1532
    %v1597 = vmul.f32 %v1533, %v1533
    %v1598 = vmul.f32 %v1534, %v1534
    %v1599 = vmul.f32 %v1535, %v1535
    %v1600 = vmul.f32 %v1536, %v1536
    %v1601 = vmul.f32 %v1537, %v1537
    %v1602 = vmul.f32 %v1538, %v1538
    %v1603 = vmul.f32 %v1539, %v1539
    %v1604 = vmul.f32 %v1540, %v1540
    %v1605 = vmul.f32 %v1541, %v1541
    %v1606 = vmul.f32 %v1542, %v1542
    %v1607 = vmul.f32 %v1543, %v1543
    %v1608 = vmul.f32 %v1544, %v1544
    %v1609 = vmul.f32 %v1545, %v1545
    %v1610 = vmul.f32 %v1546, %v1546
    %v1611 = vadd.f32 %v1547, %v1579
    %v1612 = vadd.f32 %v1548, %v1580
    %v1613 = vadd.f32 %v1549, %v1581
    %v1614 = vadd.f32 %v1550, %v1582
    %v1615 = vadd.f32 %v1551, %v1583
    %v1616 = vadd.f32 %v1552, %v1584
    %v1617 = vadd.f32 %v1553, %v1585
    %v1618 = vadd.f32 %v1554, %v1586
    %v1619 = vadd.f32 %v1555, %v1587
    %v1620 = vadd.f32 %v1556, %v1588
    %v1621 = vadd.f32 %v1557, %v1589
    %v1622 = vadd.f32 %v1558, %v1590
    %v1623 = vadd.f32 %v1559, %v1591
    %v1624 = vadd.f32 %v1560, %v1592
    %v1625 = vadd.f32 %v1561, %v1593
    %v1626 = vadd.f32 %v1562, %v1594
    %v1627 = vadd.f32 %v1563, %v1595
    %v1628 = vadd.f32 %v1564, %v1596
    %v1629 = vadd.f32 %v1565, %v1597
    %v1630 = vadd.f32 %v1566, %v1598
    %v1631 = vadd.f32 %v1567, %v1599
    %v1632 = vadd.f32 %v1568, %v1600
    %v1633 = vadd.f32 %v1569, %v1601
    %v1634 = vadd.f32 %v1570, %v1602
    %v1635 = vadd.f32 %v1571, %v1603
    %v1636 = vadd.f32 %v1572, %v1604
    %v1637 = vadd.f32 %v1573, %v1605
    %v1638 = vadd.f32 %v1574, %v1606
    %v1639 = vadd.f32 %v1575, %v1607
    %v1640 = vadd.f32 %v1576, %v1608
    %v1641 = vadd.f32 %v1577, %v1609
    %v1642 = vadd.f32 %v1578, %v1610
    %vm1643 = vcmp.gt.f32.partialorder %v1611, 6.25
    %vm1644 = vcmp.gt.f32.partialorder %v1612, 6.25
    %vm1645 = vcmp.gt.f32.partialorder %v1613, 6.25
    %vm1646 = vcmp.gt.f32.partialorder %v1614, 6.25
    %vm1647 = vcmp.gt.f32.partialorder %v1615, 6.25
    %vm1648 = vcmp.gt.f32.partialorder %v1616, 6.25
    %vm1649 = vcmp.gt.f32.partialorder %v1617, 6.25
    %vm1650 = vcmp.gt.f32.partialorder %v1618, 6.25
    %vm1651 = vcmp.gt.f32.partialorder %v1619, 6.25
    %vm1652 = vcmp.gt.f32.partialorder %v1620, 6.25
    %vm1653 = vcmp.gt.f32.partialorder %v1621, 6.25
    %vm1654 = vcmp.gt.f32.partialorder %v1622, 6.25
    %vm1655 = vcmp.gt.f32.partialorder %v1623, 6.25
    %vm1656 = vcmp.gt.f32.partialorder %v1624, 6.25
    %vm1657 = vcmp.gt.f32.partialorder %v1625, 6.25
    %vm1658 = vcmp.gt.f32.partialorder %v1626, 6.25
    %vm1659 = vcmp.gt.f32.partialorder %v1627, 6.25
    %vm1660 = vcmp.gt.f32.partialorder %v1628, 6.25
    %vm1661 = vcmp.gt.f32.partialorder %v1629, 6.25
    %vm1662 = vcmp.gt.f32.partialorder %v1630, 6.25
    %vm1663 = vcmp.gt.f32.partialorder %v1631, 6.25
    %vm1664 = vcmp.gt.f32.partialorder %v1632, 6.25
    %vm1665 = vcmp.gt.f32.partialorder %v1633, 6.25
    %vm1666 = vcmp.gt.f32.partialorder %v1634, 6.25
    %vm1667 = vcmp.gt.f32.partialorder %v1635, 6.25
    %vm1668 = vcmp.gt.f32.partialorder %v1636, 6.25
    %vm1669 = vcmp.gt.f32.partialorder %v1637, 6.25
    %vm1670 = vcmp.gt.f32.partialorder %v1638, 6.25
    %vm1671 = vcmp.gt.f32.partialorder %v1639, 6.25
    %vm1672 = vcmp.gt.f32.partialorder %v1640, 6.25
    %vm1673 = vcmp.gt.f32.partialorder %v1641, 6.25
    %vm1674 = vcmp.gt.f32.partialorder %v1642, 6.25
    %vm1675 = vmand %vm1451, %vm1643
    %vm1676 = vmand %vm1452, %vm1644
    %vm1677 = vmand %vm1453, %vm1645
    %vm1678 = vmand %vm1454, %vm1646
    %vm1679 = vmand %vm1455, %vm1647
    %vm1680 = vmand %vm1456, %vm1648
    %vm1681 = vmand %vm1457, %vm1649
    %vm1682 = vmand %vm1458, %vm1650
    %vm1683 = vmand %vm1459, %vm1651
    %vm1684 = vmand %vm1460, %vm1652
    %vm1685 = vmand %vm1461, %vm1653
    %vm1686 = vmand %vm1462, %vm1654
    %vm1687 = vmand %vm1463, %vm1655
    %vm1688 = vmand %vm1464, %vm1656
    %vm1689 = vmand %vm1465, %vm1657
    %vm1690 = vmand %vm1466, %vm1658
    %vm1691 = vmand %vm1467, %vm1659
    %vm1692 = vmand %vm1468, %vm1660
    %vm1693 = vmand %vm1469, %vm1661
    %vm1694 = vmand %vm1470, %vm1662
    %vm1695 = vmand %vm1471, %vm1663
    %vm1696 = vmand %vm1472, %vm1664
    %vm1697 = vmand %vm1473, %vm1665
    %vm1698 = vmand %vm1474, %vm1666
    %vm1699 = vmand %vm1475, %vm1667
    %vm1700 = vmand %vm1476, %vm1668
    %vm1701 = vmand %vm1477, %vm1669
    %vm1702 = vmand %vm1478, %vm1670
    %vm1703 = vmand %vm1479, %vm1671
    %vm1704 = vmand %vm1480, %vm1672
    %vm1705 = vmand %vm1481, %vm1673
    %vm1706 = vmand %vm1482, %vm1674
    %v1707 = vsub.f32 %v1163, 13.0
    %v1708 = vsub.f32 %v1164, 13.0
    %v1709 = vsub.f32 %v1165, 13.0
    %v1710 = vsub.f32 %v1166, 13.0
    %v1711 = vsub.f32 %v1167, 13.0
    %v1712 = vsub.f32 %v1168, 13.0
    %v1713 = vsub.f32 %v1169, 13.0
    %v1714 = vsub.f32 %v1170, 13.0
    %v1715 = vsub.f32 %v1171, 13.0
    %v1716 = vsub.f32 %v1172, 13.0
    %v1717 = vsub.f32 %v1173, 13.0
    %v1718 = vsub.f32 %v1174, 13.0
    %v1719 = vsub.f32 %v1175, 13.0
    %v1720 = vsub.f32 %v1176, 13.0
    %v1721 = vsub.f32 %v1177, 13.0
    %v1722 = vsub.f32 %v1178, 13.0
    %v1723 = vsub.f32 %v1179, 13.0
    %v1724 = vsub.f32 %v1180, 13.0
    %v1725 = vsub.f32 %v1181, 13.0
    %v1726 = vsub.f32 %v1182, 13.0
    %v1727 = vsub.f32 %v1183, 13.0
    %v1728 = vsub.f32 %v1184, 13.0
    %v1729 = vsub.f32 %v1185, 13.0
    %v1730 = vsub.f32 %v1186, 13.0
    %v1731 = vsub.f32 %v1187, 13.0
    %v1732 = vsub.f32 %v1188, 13.0
    %v1733 = vsub.f32 %v1189, 13.0
    %v1734 = vsub.f32 %v1190, 13.0
    %v1735 = vsub.f32 %v1191, 13.0
    %v1736 = vsub.f32 %v1192, 13.0
    %v1737 = vsub.f32 %v1193, 13.0
    %v1738 = vsub.f32 %v1194, 13.0
    %v1739 = vsub.f32 %v1227, 13.0
    %v1740 = vsub.f32 %v1228, 13.0
    %v1741 = vsub.f32 %v1229, 13.0
    %v1742 = vsub.f32 %v1230, 13.0
    %v1743 = vsub.f32 %v1231, 13.0
    %v1744 = vsub.f32 %v1232, 13.0
    %v1745 = vsub.f32 %v1233, 13.0
    %v1746 = vsub.f32 %v1234, 13.0
    %v1747 = vsub.f32 %v1235, 13.0
    %v1748 = vsub.f32 %v1236, 13.0
    %v1749 = vsub.f32 %v1237, 13.0
    %v1750 = vsub.f32 %v1238, 13.0
    %v1751 = vsub.f32 %v1239, 13.0
    %v1752 = vsub.f32 %v1240, 13.0
    %v1753 = vsub.f32 %v1241, 13.0
    %v1754 = vsub.f32 %v1242, 13.0
    %v1755 = vsub.f32 %v1243, 13.0
    %v1756 = vsub.f32 %v1244, 13.0
    %v1757 = vsub.f32 %v1245, 13.0
    %v1758 = vsub.f32 %v1246, 13.0
    %v1759 = vsub.f32 %v1247, 13.0
    %v1760 = vsub.f32 %v1248, 13.0
    %v1761 = vsub.f32 %v1249, 13.0
    %v1762 = vsub.f32 %v1250, 13.0
    %v1763 = vsub.f32 %v1251, 13.0
    %v1764 = vsub.f32 %v1252, 13.0
    %v1765 = vsub.f32 %v1253, 13.0
    %v1766 = vsub.f32 %v1254, 13.0
    %v1767 = vsub.f32 %v1255, 13.0
    %v1768 = vsub.f32 %v1256, 13.0
    %v1769 = vsub.f32 %v1257, 13.0
    %v1770 = vsub.f32 %v1258, 13.0
    %v1771 = vmul.f32 %v1707, %v1707
    %v1772 = vmul.f32 %v1708, %v1708
    %v1773 = vmul.f32 %v1709, %v1709
    %v1774 = vmul.f32 %v1710, %v1710
    %v1775 = vmul.f32 %v1711, %v1711
    %v1776 = vmul.f32 %v1712, %v1712
    %v1777 = vmul.f32 %v1713, %v1713
    %v1778 = vmul.f32 %v1714, %v1714
    %v1779 = vmul.f32 %v1715, %v1715
    %v1780 = vmul.f32 %v1716, %v1716
    %v1781 = vmul.f32 %v1717, %v1717
    %v1782 = vmul.f32 %v1718, %v1718
    %v1783 = vmul.f32 %v1719, %v1719
    %v1784 = vmul.f32 %v1720, %v1720
    %v1785 = vmul.f32 %v1721, %v1721
    %v1786 = vmul.f32 %v1722, %v1722
    %v1787 = vmul.f32 %v1723, %v1723
    %v1788 = vmul.f32 %v1724, %v1724
    %v1789 = vmul.f32 %v1725, %v1725
    %v1790 = vmul.f32 %v1726, %v1726
    %v1791 = vmul.f32 %v1727, %v1727
    %v1792 = vmul.f32 %v1728, %v1728
    %v1793 = vmul.f32 %v1729, %v1729
    %v1794 = vmul.f32 %v1730, %v1730
    %v1795 = vmul.f32 %v1731, %v1731
    %v1796 = vmul.f32 %v1732, %v1732
    %v1797 = vmul.f32 %v1733, %v1733
    %v1798 = vmul.f32 %v1734, %v1734
    %v1799 = vmul.f32 %v1735, %v1735
    %v1800 = vmul.f32 %v1736, %v1736
    %v1801 = vmul.f32 %v1737, %v1737
    %v1802 = vmul.f32 %v1738, %v1738
    %v1803 = vmul.f32 %v1739, %v1739
    %v1804 = vmul.f32 %v1740, %v1740
    %v1805 = vmul.f32 %v1741, %v1741
    %v1806 = vmul.f32 %v1742, %v1742
    %v1807 = vmul.f32 %v1743, %v1743
    %v1808 = vmul.f32 %v1744, %v1744
    %v1809 = vmul.f32 %v1745, %v1745
    %v1810 = vmul.f32 %v1746, %v1746
    %v1811 = vmul.f32 %v1747, %v1747
    %v1812 = vmul.f32 %v1748, %v1748
    %v1813 = vmul.f32 %v1749, %v1749
    %v1814 = vmul.f32 %v1750, %v1750
    %v1815 = vmul.f32 %v1751, %v1751
    %v1816 = vmul.f32 %v1752, %v1752
    %v1817 = vmul.f32 %v1753, %v1753
    %v1818 = vmul.f32 %v1754, %v1754
    %v1819 = vmul.f32 %v1755, %v1755
    %v1820 = vmul.f32 %v1756, %v1756
    %v1821 = vmul.f32 %v1757, %v1757
    %v1822 = vmul.f32 %v1758, %v1758
    %v1823 = vmul.f32 %v1759, %v1759
    %v1824 = vmul.f32 %v1760, %v1760
    %v1825 = vmul.f32 %v1761, %v1761
    %v1826 = vmul.f32 %v1762, %v1762
    %v1827 = vmul.f32 %v1763, %v1763
    %v1828 = vmul.f32 %v1764, %v1764
    %v1829 = vmul.f32 %v1765, %v1765
    %v1830 = vmul.f32 %v1766, %v1766
    %v1831 = vmul.f32 %v1767, %v1767
    %v1832 = vmul.f32 %v1768, %v1768
    %v1833 = vmul.f32 %v1769, %v1769
    %v1834 = vmul.f32 %v1770, %v1770
    %v1835 = vadd.f32 %v1771, %v1803
    %v1836 = vadd.f32 %v1772, %v1804
    %v1837 = vadd.f32 %v1773, %v1805
    %v1838 = vadd.f32 %v1774, %v1806
    %v1839 = vadd.f32 %v1775, %v1807
    %v1840 = vadd.f32 %v1776, %v1808
    %v1841 = vadd.f32 %v1777, %v1809
    %v1842 = vadd.f32 %v1778, %v1810
    %v1843 = vadd.f32 %v1779, %v1811
    %v1844 = vadd.f32 %v1780, %v1812
    %v1845 = vadd.f32 %v1781, %v1813
    %v1846 = vadd.f32 %v1782, %v1814
    %v1847 = vadd.f32 %v1783, %v1815
    %v1848 = vadd.f32 %v1784, %v1816
    %v1849 = vadd.f32 %v1785, %v1817
    %v1850 = vadd.f32 %v1786, %v1818
    %v1851 = vadd.f32 %v1787, %v1819
    %v1852 = vadd.f32 %v1788, %v1820
    %v1853 = vadd.f32 %v1789, %v1821
    %v1854 = vadd.f32 %v1790, %v1822
    %v1855 = vadd.f32 %v1791, %v1823
    %v1856 = vadd.f32 %v1792, %v1824
    %v1857 = vadd.f32 %v1793, %v1825
    %v1858 = vadd.f32 %v1794, %v1826
    %v1859 = vadd.f32 %v1795, %v1827
    %v1860 = vadd.f32 %v1796, %v1828
    %v1861 = vadd.f32 %v1797, %v1829
    %v1862 = vadd.f32 %v1798, %v1830
    %v1863 = vadd.f32 %v1799, %v1831
    %v1864 = vadd.f32 %v1800, %v1832
    %v1865 = vadd.f32 %v1801, %v1833
    %v1866 = vadd.f32 %v1802, %v1834
    %vm1867 = vcmp.gt.f32.partialorder %v1835, 9.0
    %vm1868 = vcmp.gt.f32.partialorder %v1836, 9.0
    %vm1869 = vcmp.gt.f32.partialorder %v1837, 9.0
    %vm1870 = vcmp.gt.f32.partialorder %v1838, 9.0
    %vm1871 = vcmp.gt.f32.partialorder %v1839, 9.0
    %vm1872 = vcmp.gt.f32.partialorder %v1840, 9.0
    %vm1873 = vcmp.gt.f32.partialorder %v1841, 9.0
    %vm1874 = vcmp.gt.f32.partialorder %v1842, 9.0
    %vm1875 = vcmp.gt.f32.partialorder %v1843, 9.0
    %vm1876 = vcmp.gt.f32.partialorder %v1844, 9.0
    %vm1877 = vcmp.gt.f32.partialorder %v1845, 9.0
    %vm1878 = vcmp.gt.f32.partialorder %v1846, 9.0
    %vm1879 = vcmp.gt.f32.partialorder %v1847, 9.0
    %vm1880 = vcmp.gt.f32.partialorder %v1848, 9.0
    %vm1881 = vcmp.gt.f32.partialorder %v1849, 9.0
    %vm1882 = vcmp.gt.f32.partialorder %v1850, 9.0
    %vm1883 = vcmp.gt.f32.partialorder %v1851, 9.0
    %vm1884 = vcmp.gt.f32.partialorder %v1852, 9.0
    %vm1885 = vcmp.gt.f32.partialorder %v1853, 9.0
    %vm1886 = vcmp.gt.f32.partialorder %v1854, 9.0
    %vm1887 = vcmp.gt.f32.partialorder %v1855, 9.0
    %vm1888 = vcmp.gt.f32.partialorder %v1856, 9.0
    %vm1889 = vcmp.gt.f32.partialorder %v1857, 9.0
    %vm1890 = vcmp.gt.f32.partialorder %v1858, 9.0
    %vm1891 = vcmp.gt.f32.partialorder %v1859, 9.0
    %vm1892 = vcmp.gt.f32.partialorder %v1860, 9.0
    %vm1893 = vcmp.gt.f32.partialorder %v1861, 9.0
    %vm1894 = vcmp.gt.f32.partialorder %v1862, 9.0
    %vm1895 = vcmp.gt.f32.partialorder %v1863, 9.0
    %vm1896 = vcmp.gt.f32.partialorder %v1864, 9.0
    %vm1897 = vcmp.gt.f32.partialorder %v1865, 9.0
    %vm1898 = vcmp.gt.f32.partialorder %v1866, 9.0
    %vm1899 = vmand %vm1675, %vm1867
    %vm1900 = vmand %vm1676, %vm1868
    %vm1901 = vmand %vm1677, %vm1869
    %vm1902 = vmand %vm1678, %vm1870
    %vm1903 = vmand %vm1679, %vm1871
    %vm1904 = vmand %vm1680, %vm1872
    %vm1905 = vmand %vm1681, %vm1873
    %vm1906 = vmand %vm1682, %vm1874
    %vm1907 = vmand %vm1683, %vm1875
    %vm1908 = vmand %vm1684, %vm1876
    %vm1909 = vmand %vm1685, %vm1877
    %vm1910 = vmand %vm1686, %vm1878
    %vm1911 = vmand %vm1687, %vm1879
    %vm1912 = vmand %vm1688, %vm1880
    %vm1913 = vmand %vm1689, %vm1881
    %vm1914 = vmand %vm1690, %vm1882
    %vm1915 = vmand %vm1691, %vm1883
    %vm1916 = vmand %vm1692, %vm1884
    %vm1917 = vmand %vm1693, %vm1885
    %vm1918 = vmand %vm1694, %vm1886
    %vm1919 = vmand %vm1695, %vm1887
    %vm1920 = vmand %vm1696, %vm1888
    %vm1921 = vmand %vm1697, %vm1889
    %vm1922 = vmand %vm1698, %vm1890
    %vm1923 = vmand %vm1699, %vm1891
    %vm1924 = vmand %vm1700, %vm1892
    %vm1925 = vmand %vm1701, %vm1893
    %vm1926 = vmand %vm1702, %vm1894
    %vm1927 = vmand %vm1703, %vm1895
    %vm1928 = vmand %vm1704, %vm1896
    %vm1929 = vmand %vm1705, %vm1897
    %vm1930 = vmand %vm1706, %vm1898
    %v1931 = vsub.f32 %v1163, 22.5
    %v1932 = vsub.f32 %v1164, 22.5
    %v1933 = vsub.f32 %v1165, 22.5
    %v1934 = vsub.f32 %v1166, 22.5
    %v1935 = vsub.f32 %v1167, 22.5
    %v1936 = vsub.f32 %v1168, 22.5
    %v1937 = vsub.f32 %v1169, 22.5
    %v1938 = vsub.f32 %v1170, 22.5
    %v1939 = vsub.f32 %v1171, 22.5
    %v1940 = vsub.f32 %v1172, 22.5
    %v1941 = vsub.f32 %v1173, 22.5
    %v1942 = vsub.f32 %v1174, 22.5
    %v1943 = vsub.f32 %v1175, 22.5
    %v1944 = vsub.f32 %v1176, 22.5
    %v1945 = vsub.f32 %v1177, 22.5
    %v1946 = vsub.f32 %v1178, 22.5
    %v1947 = vsub.f32 %v1179, 22.5
    %v1948 = vsub.f32 %v1180, 22.5
    %v1949 = vsub.f32 %v1181, 22.5
    %v1950 = vsub.f32 %v1182, 22.5
    %v1951 = vsub.f32 %v1183, 22.5
    %v1952 = vsub.f32 %v1184, 22.5
    %v1953 = vsub.f32 %v1185, 22.5
    %v1954 = vsub.f32 %v1186, 22.5
    %v1955 = vsub.f32 %v1187, 22.5
    %v1956 = vsub.f32 %v1188, 22.5
    %v1957 = vsub.f32 %v1189, 22.5
    %v1958 = vsub.f32 %v1190, 22.5
    %v1959 = vsub.f32 %v1191, 22.5
    %v1960 = vsub.f32 %v1192, 22.5
    %v1961 = vsub.f32 %v1193, 22.5
    %v1962 = vsub.f32 %v1194, 22.5
    %v1963 = vsub.f32 %v1227, 7.5
    %v1964 = vsub.f32 %v1228, 7.5
    %v1965 = vsub.f32 %v1229, 7.5
    %v1966 = vsub.f32 %v1230, 7.5
    %v1967 = vsub.f32 %v1231, 7.5
    %v1968 = vsub.f32 %v1232, 7.5
    %v1969 = vsub.f32 %v1233, 7.5
    %v1970 = vsub.f32 %v1234, 7.5
    %v1971 = vsub.f32 %v1235, 7.5
    %v1972 = vsub.f32 %v1236, 7.5
    %v1973 = vsub.f32 %v1237, 7.5
    %v1974 = vsub.f32 %v1238, 7.5
    %v1975 = vsub.f32 %v1239, 7.5
    %v1976 = vsub.f32 %v1240, 7.5
    %v1977 = vsub.f32 %v1241, 7.5
    %v1978 = vsub.f32 %v1242, 7.5
    %v1979 = vsub.f32 %v1243, 7.5
    %v1980 = vsub.f32 %v1244, 7.5
    %v1981 = vsub.f32 %v1245, 7.5
    %v1982 = vsub.f32 %v1246, 7.5
    %v1983 = vsub.f32 %v1247, 7.5
    %v1984 = vsub.f32 %v1248, 7.5
    %v1985 = vsub.f32 %v1249, 7.5
    %v1986 = vsub.f32 %v1250, 7.5
    %v1987 = vsub.f32 %v1251, 7.5
    %v1988 = vsub.f32 %v1252, 7.5
    %v1989 = vsub.f32 %v1253, 7.5
    %v1990 = vsub.f32 %v1254, 7.5
    %v1991 = vsub.f32 %v1255, 7.5
    %v1992 = vsub.f32 %v1256, 7.5
    %v1993 = vsub.f32 %v1257, 7.5
    %v1994 = vsub.f32 %v1258, 7.5
    %v1995 = vmul.f32 %v1931, %v1931
    %v1996 = vmul.f32 %v1932, %v1932
    %v1997 = vmul.f32 %v1933, %v1933
    %v1998 = vmul.f32 %v1934, %v1934
    %v1999 = vmul.f32 %v1935, %v1935
    %v2000 = vmul.f32 %v1936, %v1936
    %v2001 = vmul.f32 %v1937, %v1937
    %v2002 = vmul.f32 %v1938, %v1938
    %v2003 = vmul.f32 %v1939, %v1939
    %v2004 = vmul.f32 %v1940, %v1940
    %v2005 = vmul.f32 %v1941, %v1941
    %v2006 = vmul.f32 %v1942, %v1942
    %v2007 = vmul.f32 %v1943, %v1943
    %v2008 = vmul.f32 %v1944, %v1944
    %v2009 = vmul.f32 %v1945, %v1945
    %v2010 = vmul.f32 %v1946, %v1946
    %v2011 = vmul.f32 %v1947, %v1947
    %v2012 = vmul.f32 %v1948, %v1948
    %v2013 = vmul.f32 %v1949, %v1949
    %v2014 = vmul.f32 %v1950, %v1950
    %v2015 = vmul.f32 %v1951, %v1951
    %v2016 = vmul.f32 %v1952, %v1952
    %v2017 = vmul.f32 %v1953, %v1953
    %v2018 = vmul.f32 %v1954, %v1954
    %v2019 = vmul.f32 %v1955, %v1955
    %v2020 = vmul.f32 %v1956, %v1956
    %v2021 = vmul.f32 %v1957, %v1957
    %v2022 = vmul.f32 %v1958, %v1958
    %v2023 = vmul.f32 %v1959, %v1959
    %v2024 = vmul.f32 %v1960, %v1960
    %v2025 = vmul.f32 %v1961, %v1961
    %v2026 = vmul.f32 %v1962, %v1962
    %v2027 = vmul.f32 %v1963, %v1963
    %v2028 = vmul.f32 %v1964, %v1964
    %v2029 = vmul.f32 %v1965, %v1965
    %v2030 = vmul.f32 %v1966, %v1966
    %v2031 = vmul.f32 %v1967, %v1967
    %v2032 = vmul.f32 %v1968, %v1968
    %v2033 = vmul.f32 %v1969, %v1969
    %v2034 = vmul.f32 %v1970, %v1970
    %v2035 = vmul.f32 %v1971, %v1971
    %v2036 = vmul.f32 %v1972, %v1972
    %v2037 = vmul.f32 %v1973, %v1973
    %v2038 = vmul.f32 %v1974, %v1974
    %v2039 = vmul.f32 %v1975, %v1975
    %v2040 = vmul.f32 %v1976, %v1976
    %v2041 = vmul.f32 %v1977, %v1977
    %v2042 = vmul.f32 %v1978, %v1978
    %v2043 = vmul.f32 %v1979, %v1979
    %v2044 = vmul.f32 %v1980, %v1980
    %v2045 = vmul.f32 %v1981, %v1981
    %v2046 = vmul.f32 %v1982, %v1982
    %v2047 = vmul.f32 %v1983, %v1983
    %v2048 = vmul.f32 %v1984, %v1984
    %v2049 = vmul.f32 %v1985, %v1985
    %v2050 = vmul.f32 %v1986, %v1986
    %v2051 = vmul.f32 %v1987, %v1987
    %v2052 = vmul.f32 %v1988, %v1988
    %v2053 = vmul.f32 %v1989, %v1989
    %v2054 = vmul.f32 %v1990, %v1990
    %v2055 = vmul.f32 %v1991, %v1991
    %v2056 = vmul.f32 %v1992, %v1992
    %v2057 = vmul.f32 %v1993, %v1993
    %v2058 = vmul.f32 %v1994, %v1994
    %v2059 = vadd.f32 %v1995, %v2027
    %v2060 = vadd.f32 %v1996, %v2028
    %v2061 = vadd.f32 %v1997, %v2029
    %v2062 = vadd.f32 %v1998, %v2030
    %v2063 = vadd.f32 %v1999, %v2031
    %v2064 = vadd.f32 %v2000, %v2032
    %v2065 = vadd.f32 %v2001, %v2033
    %v2066 = vadd.f32 %v2002, %v2034
    %v2067 = vadd.f32 %v2003, %v2035
    %v2068 = vadd.f32 %v2004, %v2036
    %v2069 = vadd.f32 %v2005, %v2037
    %v2070 = vadd.f32 %v2006, %v2038
    %v2071 = vadd.f32 %v2007, %v2039
    %v2072 = vadd.f32 %v2008, %v2040
    %v2073 = vadd.f32 %v2009, %v2041
    %v2074 = vadd.f32 %v2010, %v2042
    %v2075 = vadd.f32 %v2011, %v2043
    %v2076 = vadd.f32 %v2012, %v2044
    %v2077 = vadd.f32 %v2013, %v2045
    %v2078 = vadd.f32 %v2014, %v2046
    %v2079 = vadd.f32 %v2015, %v2047
    %v2080 = vadd.f32 %v2016, %v2048
    %v2081 = vadd.f32 %v2017, %v2049
    %v2082 = vadd.f32 %v2018, %v2050
    %v2083 = vadd.f32 %v2019, %v2051
    %v2084 = vadd.f32 %v2020, %v2052
    %v2085 = vadd.f32 %v2021, %v2053
    %v2086 = vadd.f32 %v2022, %v2054
    %v2087 = vadd.f32 %v2023, %v2055
    %v2088 = vadd.f32 %v2024, %v2056
    %v2089 = vadd.f32 %v2025, %v2057
    %v2090 = vadd.f32 %v2026, %v2058
    %vm2091 = vcmp.gt.f32.partialorder %v2059, 6.25
    %vm2092 = vcmp.gt.f32.partialorder %v2060, 6.25
    %vm2093 = vcmp.gt.f32.partialorder %v2061, 6.25
    %vm2094 = vcmp.gt.f32.partialorder %v2062, 6.25
    %vm2095 = vcmp.gt.f32.partialorder %v2063, 6.25
    %vm2096 = vcmp.gt.f32.partialorder %v2064, 6.25
    %vm2097 = vcmp.gt.f32.partialorder %v2065, 6.25
    %vm2098 = vcmp.gt.f32.partialorder %v2066, 6.25
    %vm2099 = vcmp.gt.f32.partialorder %v2067, 6.25
    %vm2100 = vcmp.gt.f32.partialorder %v2068, 6.25
    %vm2101 = vcmp.gt.f32.partialorder %v2069, 6.25
    %vm2102 = vcmp.gt.f32.partialorder %v2070, 6.25
    %vm2103 = vcmp.gt.f32.partialorder %v2071, 6.25
    %vm2104 = vcmp.gt.f32.partialorder %v2072, 6.25
    %vm2105 = vcmp.gt.f32.partialorder %v2073, 6.25
    %vm2106 = vcmp.gt.f32.partialorder %v2074, 6.25
    %vm2107 = vcmp.gt.f32.partialorder %v2075, 6.25
    %vm2108 = vcmp.gt.f32.partialorder %v2076, 6.25
    %vm2109 = vcmp.gt.f32.partialorder %v2077, 6.25
    %vm2110 = vcmp.gt.f32.partialorder %v2078, 6.25
    %vm2111 = vcmp.gt.f32.partialorder %v2079, 6.25
    %vm2112 = vcmp.gt.f32.partialorder %v2080, 6.25
    %vm2113 = vcmp.gt.f32.partialorder %v2081, 6.25
    %vm2114 = vcmp.gt.f32.partialorder %v2082, 6.25
    %vm2115 = vcmp.gt.f32.partialorder %v2083, 6.25
    %vm2116 = vcmp.gt.f32.partialorder %v2084, 6.25
    %vm2117 = vcmp.gt.f32.partialorder %v2085, 6.25
    %vm2118 = vcmp.gt.f32.partialorder %v2086, 6.25
    %vm2119 = vcmp.gt.f32.partialorder %v2087, 6.25
    %vm2120 = vcmp.gt.f32.partialorder %v2088, 6.25
    %vm2121 = vcmp.gt.f32.partialorder %v2089, 6.25
    %vm2122 = vcmp.gt.f32.partialorder %v2090, 6.25
    %vm2123 = vmand %vm1899, %vm2091
    %vm2124 = vmand %vm1900, %vm2092
    %vm2125 = vmand %vm1901, %vm2093
    %vm2126 = vmand %vm1902, %vm2094
    %vm2127 = vmand %vm1903, %vm2095
    %vm2128 = vmand %vm1904, %vm2096
    %vm2129 = vmand %vm1905, %vm2097
    %vm2130 = vmand %vm1906, %vm2098
    %vm2131 = vmand %vm1907, %vm2099
    %vm2132 = vmand %vm1908, %vm2100
    %vm2133 = vmand %vm1909, %vm2101
    %vm2134 = vmand %vm1910, %vm2102
    %vm2135 = vmand %vm1911, %vm2103
    %vm2136 = vmand %vm1912, %vm2104
    %vm2137 = vmand %vm1913, %vm2105
    %vm2138 = vmand %vm1914, %vm2106
    %vm2139 = vmand %vm1915, %vm2107
    %vm2140 = vmand %vm1916, %vm2108
    %vm2141 = vmand %vm1917, %vm2109
    %vm2142 = vmand %vm1918, %vm2110
    %vm2143 = vmand %vm1919, %vm2111
    %vm2144 = vmand %vm1920, %vm2112
    %vm2145 = vmand %vm1921, %vm2113
    %vm2146 = vmand %vm1922, %vm2114
    %vm2147 = vmand %vm1923, %vm2115
    %vm2148 = vmand %vm1924, %vm2116
    %vm2149 = vmand %vm1925, %vm2117
    %vm2150 = vmand %vm1926, %vm2118
    %vm2151 = vmand %vm1927, %vm2119
    %vm2152 = vmand %vm1928, %vm2120
    %vm2153 = vmand %vm1929, %vm2121
    %vm2154 = vmand %vm1930, %vm2122
    %v2155 = vsub.f32 %v1163, 19.0
    %v2156 = vsub.f32 %v1164, 19.0
    %v2157 = vsub.f32 %v1165, 19.0
    %v2158 = vsub.f32 %v1166, 19.0
    %v2159 = vsub.f32 %v1167, 19.0
    %v2160 = vsub.f32 %v1168, 19.0
    %v2161 = vsub.f32 %v1169, 19.0
    %v2162 = vsub.f32 %v1170, 19.0
    %v2163 = vsub.f32 %v1171, 19.0
    %v2164 = vsub.f32 %v1172, 19.0
    %v2165 = vsub.f32 %v1173, 19.0
    %v2166 = vsub.f32 %v1174, 19.0
    %v2167 = vsub.f32 %v1175, 19.0
    %v2168 = vsub.f32 %v1176, 19.0
    %v2169 = vsub.f32 %v1177, 19.0
    %v2170 = vsub.f32 %v1178, 19.0
    %v2171 = vsub.f32 %v1179, 19.0
    %v2172 = vsub.f32 %v1180, 19.0
    %v2173 = vsub.f32 %v1181, 19.0
    %v2174 = vsub.f32 %v1182, 19.0
    %v2175 = vsub.f32 %v1183, 19.0
    %v2176 = vsub.f32 %v1184, 19.0
    %v2177 = vsub.f32 %v1185, 19.0
    %v2178 = vsub.f32 %v1186, 19.0
    %v2179 = vsub.f32 %v1187, 19.0
    %v2180 = vsub.f32 %v1188, 19.0
    %v2181 = vsub.f32 %v1189, 19.0
    %v2182 = vsub.f32 %v1190, 19.0
    %v2183 = vsub.f32 %v1191, 19.0
    %v2184 = vsub.f32 %v1192, 19.0
    %v2185 = vsub.f32 %v1193, 19.0
    %v2186 = vsub.f32 %v1194, 19.0
    %v2187 = vsub.f32 %v1227, 21.0
    %v2188 = vsub.f32 %v1228, 21.0
    %v2189 = vsub.f32 %v1229, 21.0
    %v2190 = vsub.f32 %v1230, 21.0
    %v2191 = vsub.f32 %v1231, 21.0
    %v2192 = vsub.f32 %v1232, 21.0
    %v2193 = vsub.f32 %v1233, 21.0
    %v2194 = vsub.f32 %v1234, 21.0
    %v2195 = vsub.f32 %v1235, 21.0
    %v2196 = vsub.f32 %v1236, 21.0
    %v2197 = vsub.f32 %v1237, 21.0
    %v2198 = vsub.f32 %v1238, 21.0
    %v2199 = vsub.f32 %v1239, 21.0
    %v2200 = vsub.f32 %v1240, 21.0
    %v2201 = vsub.f32 %v1241, 21.0
    %v2202 = vsub.f32 %v1242, 21.0
    %v2203 = vsub.f32 %v1243, 21.0
    %v2204 = vsub.f32 %v1244, 21.0
    %v2205 = vsub.f32 %v1245, 21.0
    %v2206 = vsub.f32 %v1246, 21.0
    %v2207 = vsub.f32 %v1247, 21.0
    %v2208 = vsub.f32 %v1248, 21.0
    %v2209 = vsub.f32 %v1249, 21.0
    %v2210 = vsub.f32 %v1250, 21.0
    %v2211 = vsub.f32 %v1251, 21.0
    %v2212 = vsub.f32 %v1252, 21.0
    %v2213 = vsub.f32 %v1253, 21.0
    %v2214 = vsub.f32 %v1254, 21.0
    %v2215 = vsub.f32 %v1255, 21.0
    %v2216 = vsub.f32 %v1256, 21.0
    %v2217 = vsub.f32 %v1257, 21.0
    %v2218 = vsub.f32 %v1258, 21.0
    %v2219 = vmul.f32 %v2155, %v2155
    %v2220 = vmul.f32 %v2156, %v2156
    %v2221 = vmul.f32 %v2157, %v2157
    %v2222 = vmul.f32 %v2158, %v2158
    %v2223 = vmul.f32 %v2159, %v2159
    %v2224 = vmul.f32 %v2160, %v2160
    %v2225 = vmul.f32 %v2161, %v2161
    %v2226 = vmul.f32 %v2162, %v2162
    %v2227 = vmul.f32 %v2163, %v2163
    %v2228 = vmul.f32 %v2164, %v2164
    %v2229 = vmul.f32 %v2165, %v2165
    %v2230 = vmul.f32 %v2166, %v2166
    %v2231 = vmul.f32 %v2167, %v2167
    %v2232 = vmul.f32 %v2168, %v2168
    %v2233 = vmul.f32 %v2169, %v2169
    %v2234 = vmul.f32 %v2170, %v2170
    %v2235 = vmul.f32 %v2171, %v2171
    %v2236 = vmul.f32 %v2172, %v2172
    %v2237 = vmul.f32 %v2173, %v2173
    %v2238 = vmul.f32 %v2174, %v2174
    %v2239 = vmul.f32 %v2175, %v2175
    %v2240 = vmul.f32 %v2176, %v2176
    %v2241 = vmul.f32 %v2177, %v2177
    %v2242 = vmul.f32 %v2178, %v2178
    %v2243 = vmul.f32 %v2179, %v2179
    %v2244 = vmul.f32 %v2180, %v2180
    %v2245 = vmul.f32 %v2181, %v2181
    %v2246 = vmul.f32 %v2182, %v2182
    %v2247 = vmul.f32 %v2183, %v2183
    %v2248 = vmul.f32 %v2184, %v2184
    %v2249 = vmul.f32 %v2185, %v2185
    %v2250 = vmul.f32 %v2186, %v2186
    %v2251 = vmul.f32 %v2187, %v2187
    %v2252 = vmul.f32 %v2188, %v2188
    %v2253 = vmul.f32 %v2189, %v2189
    %v2254 = vmul.f32 %v2190, %v2190
    %v2255 = vmul.f32 %v2191, %v2191
    %v2256 = vmul.f32 %v2192, %v2192
    %v2257 = vmul.f32 %v2193, %v2193
    %v2258 = vmul.f32 %v2194, %v2194
    %v2259 = vmul.f32 %v2195, %v2195
    %v2260 = vmul.f32 %v2196, %v2196
    %v2261 = vmul.f32 %v2197, %v2197
    %v2262 = vmul.f32 %v2198, %v2198
    %v2263 = vmul.f32 %v2199, %v2199
    %v2264 = vmul.f32 %v2200, %v2200
    %v2265 = vmul.f32 %v2201, %v2201
    %v2266 = vmul.f32 %v2202, %v2202
    %v2267 = vmul.f32 %v2203, %v2203
    %v2268 = vmul.f32 %v2204, %v2204
    %v2269 = vmul.f32 %v2205, %v2205
    %v2270 = vmul.f32 %v2206, %v2206
    %v2271 = vmul.f32 %v2207, %v2207
    %v2272 = vmul.f32 %v2208, %v2208
    %v2273 = vmul.f32 %v2209, %v2209
    %v2274 = vmul.f32 %v2210, %v2210
    %v2275 = vmul.f32 %v2211, %v2211
    %v2276 = vmul.f32 %v2212, %v2212
    %v2277 = vmul.f32 %v2213, %v2213
    %v2278 = vmul.f32 %v2214, %v2214
    %v2279 = vmul.f32 %v2215, %v2215
    %v2280 = vmul.f32 %v2216, %v2216
    %v2281 = vmul.f32 %v2217, %v2217
    %v2282 = vmul.f32 %v2218, %v2218
    %v2283 = vadd.f32 %v2219, %v2251
    %v2284 = vadd.f32 %v2220, %v2252
    %v2285 = vadd.f32 %v2221, %v2253
    %v2286 = vadd.f32 %v2222, %v2254
    %v2287 = vadd.f32 %v2223, %v2255
    %v2288 = vadd.f32 %v2224, %v2256
    %v2289 = vadd.f32 %v2225, %v2257
    %v2290 = vadd.f32 %v2226, %v2258
    %v2291 = vadd.f32 %v2227, %v2259
    %v2292 = vadd.f32 %v2228, %v2260
    %v2293 = vadd.f32 %v2229, %v2261
    %v2294 = vadd.f32 %v2230, %v2262
    %v2295 = vadd.f32 %v2231, %v2263
    %v2296 = vadd.f32 %v2232, %v2264
    %v2297 = vadd.f32 %v2233, %v2265
    %v2298 = vadd.f32 %v2234, %v2266
    %v2299 = vadd.f32 %v2235, %v2267
    %v2300 = vadd.f32 %v2236, %v2268
    %v2301 = vadd.f32 %v2237, %v2269
    %v2302 = vadd.f32 %v2238, %v2270
    %v2303 = vadd.f32 %v2239, %v2271
    %v2304 = vadd.f32 %v2240, %v2272
    %v2305 = vadd.f32 %v2241, %v2273
    %v2306 = vadd.f32 %v2242, %v2274
    %v2307 = vadd.f32 %v2243, %v2275
    %v2308 = vadd.f32 %v2244, %v2276
    %v2309 = vadd.f32 %v2245, %v2277
    %v2310 = vadd.f32 %v2246, %v2278
    %v2311 = vadd.f32 %v2247, %v2279
    %v2312 = vadd.f32 %v2248, %v2280
    %v2313 = vadd.f32 %v2249, %v2281
    %v2314 = vadd.f32 %v2250, %v2282
    %vm2315 = vcmp.gt.f32.partialorder %v2283, 4.0
    %vm2316 = vcmp.gt.f32.partialorder %v2284, 4.0
    %vm2317 = vcmp.gt.f32.partialorder %v2285, 4.0
    %vm2318 = vcmp.gt.f32.partialorder %v2286, 4.0
    %vm2319 = vcmp.gt.f32.partialorder %v2287, 4.0
    %vm2320 = vcmp.gt.f32.partialorder %v2288, 4.0
    %vm2321 = vcmp.gt.f32.partialorder %v2289, 4.0
    %vm2322 = vcmp.gt.f32.partialorder %v2290, 4.0
    %vm2323 = vcmp.gt.f32.partialorder %v2291, 4.0
    %vm2324 = vcmp.gt.f32.partialorder %v2292, 4.0
    %vm2325 = vcmp.gt.f32.partialorder %v2293, 4.0
    %vm2326 = vcmp.gt.f32.partialorder %v2294, 4.0
    %vm2327 = vcmp.gt.f32.partialorder %v2295, 4.0
    %vm2328 = vcmp.gt.f32.partialorder %v2296, 4.0
    %vm2329 = vcmp.gt.f32.partialorder %v2297, 4.0
    %vm2330 = vcmp.gt.f32.partialorder %v2298, 4.0
    %vm2331 = vcmp.gt.f32.partialorder %v2299, 4.0
    %vm2332 = vcmp.gt.f32.partialorder %v2300, 4.0
    %vm2333 = vcmp.gt.f32.partialorder %v2301, 4.0
    %vm2334 = vcmp.gt.f32.partialorder %v2302, 4.0
    %vm2335 = vcmp.gt.f32.partialorder %v2303, 4.0
    %vm2336 = vcmp.gt.f32.partialorder %v2304, 4.0
    %vm2337 = vcmp.gt.f32.partialorder %v2305, 4.0
    %vm2338 = vcmp.gt.f32.partialorder %v2306, 4.0
    %vm2339 = vcmp.gt.f32.partialorder %v2307, 4.0
    %vm2340 = vcmp.gt.f32.partialorder %v2308, 4.0
    %vm2341 = vcmp.gt.f32.partialorder %v2309, 4.0
    %vm2342 = vcmp.gt.f32.partialorder %v2310, 4.0
    %vm2343 = vcmp.gt.f32.partialorder %v2311, 4.0
    %vm2344 = vcmp.gt.f32.partialorder %v2312, 4.0
    %vm2345 = vcmp.gt.f32.partialorder %v2313, 4.0
    %vm2346 = vcmp.gt.f32.partialorder %v2314, 4.0
    %vm2347 = vmand %vm2123, %vm2315
    %vm2348 = vmand %vm2124, %vm2316
    %vm2349 = vmand %vm2125, %vm2317
    %vm2350 = vmand %vm2126, %vm2318
    %vm2351 = vmand %vm2127, %vm2319
    %vm2352 = vmand %vm2128, %vm2320
    %vm2353 = vmand %vm2129, %vm2321
    %vm2354 = vmand %vm2130, %vm2322
    %vm2355 = vmand %vm2131, %vm2323
    %vm2356 = vmand %vm2132, %vm2324
    %vm2357 = vmand %vm2133, %vm2325
    %vm2358 = vmand %vm2134, %vm2326
    %vm2359 = vmand %vm2135, %vm2327
    %vm2360 = vmand %vm2136, %vm2328
    %vm2361 = vmand %vm2137, %vm2329
    %vm2362 = vmand %vm2138, %vm2330
    %vm2363 = vmand %vm2139, %vm2331
    %vm2364 = vmand %vm2140, %vm2332
    %vm2365 = vmand %vm2141, %vm2333
    %vm2366 = vmand %vm2142, %vm2334
    %vm2367 = vmand %vm2143, %vm2335
    %vm2368 = vmand %vm2144, %vm2336
    %vm2369 = vmand %vm2145, %vm2337
    %vm2370 = vmand %vm2146, %vm2338
    %vm2371 = vmand %vm2147, %vm2339
    %vm2372 = vmand %vm2148, %vm2340
    %vm2373 = vmand %vm2149, %vm2341
    %vm2374 = vmand %vm2150, %vm2342
    %vm2375 = vmand %vm2151, %vm2343
    %vm2376 = vmand %vm2152, %vm2344
    %vm2377 = vmand %vm2153, %vm2345
    %vm2378 = vmand %vm2154, %vm2346
    %v2379 = vsel %vm2347, 1, 0
    %v2380 = vsel %vm2348, 1, 0
    %v2381 = vsel %vm2349, 1, 0
    %v2382 = vsel %vm2350, 1, 0
    %v2383 = vsel %vm2351, 1, 0
    %v2384 = vsel %vm2352, 1, 0
    %v2385 = vsel %vm2353, 1, 0
    %v2386 = vsel %vm2354, 1, 0
    %v2387 = vsel %vm2355, 1, 0
    %v2388 = vsel %vm2356, 1, 0
    %v2389 = vsel %vm2357, 1, 0
    %v2390 = vsel %vm2358, 1, 0
    %v2391 = vsel %vm2359, 1, 0
    %v2392 = vsel %vm2360, 1, 0
    %v2393 = vsel %vm2361, 1, 0
    %v2394 = vsel %vm2362, 1, 0
    %v2395 = vsel %vm2363, 1, 0
    %v2396 = vsel %vm2364, 1, 0
    %v2397 = vsel %vm2365, 1, 0
    %v2398 = vsel %vm2366, 1, 0
    %v2399 = vsel %vm2367, 1, 0
    %v2400 = vsel %vm2368, 1, 0
    %v2401 = vsel %vm2369, 1, 0
    %v2402 = vsel %vm2370, 1, 0
    %v2403 = vsel %vm2371, 1, 0
    %v2404 = vsel %vm2372, 1, 0
    %v2405 = vsel %vm2373, 1, 0
    %v2406 = vsel %vm2374, 1, 0
    %v2407 = vsel %vm2375, 1, 0
    %v2408 = vsel %vm2376, 1, 0
    %v2409 = vsel %vm2377, 1, 0
    %v2410 = vsel %vm2378, 1, 0
    %v2411 = vsel %vm353, %v2379, 2147483647
    %v2412 = vand.u32 %v2411, 65535
    %v2413 = vshra.s32 %v2411, 16
    %v2414 = vcvt.s32.f32 %v2412
    %v2415 = vcvt.s32.f32 %v2413
    %2416 = vmin.xlane.f32.xlu0 %v2415
    %v2417 = vpop.xlane.xlu0 %2416
    %vm2418 = vcmp.eq.f32.partialorder %v2415, %v2417
    %v2419 = vsel %vm2418, %v2414, inf
    %2420 = vmin.xlane.f32.xlu0 %v2419
    %v2421 = vpop.xlane.xlu0 %2420
    %v2422 = vcvt.f32.s32 %v2421
    %v2423 = vcvt.f32.s32 %v2417
    %v2424 = vshll.u32 %v2423, 16
    %v2425 = vadd.s32 %v2424, %v2422
    %v2426 = vsel %vm353, %v2380, 2147483647
    %v2427 = vand.u32 %v2426, 65535
    %v2428 = vshra.s32 %v2426, 16
    %v2429 = vcvt.s32.f32 %v2427
    %v2430 = vcvt.s32.f32 %v2428
    %2431 = vmin.xlane.f32.xlu0 %v2430
    %v2432 = vpop.xlane.xlu0 %2431
    %vm2433 = vcmp.eq.f32.partialorder %v2430, %v2432
    %v2434 = vsel %vm2433, %v2429, inf
    %2435 = vmin.xlane.f32.xlu0 %v2434
    %v2436 = vpop.xlane.xlu0 %2435
    %v2437 = vcvt.f32.s32 %v2436
    %v2438 = vcvt.f32.s32 %v2432
    %v2439 = vshll.u32 %v2438, 16
    %v2440 = vadd.s32 %v2439, %v2437
    %v2441 = vsel %vm353, %v2381, 2147483647
    %v2442 = vand.u32 %v2441, 65535
    %v2443 = vshra.s32 %v2441, 16
    %v2444 = vcvt.s32.f32 %v2442
    %v2445 = vcvt.s32.f32 %v2443
    %2446 = vmin.xlane.f32.xlu0 %v2445
    %v2447 = vpop.xlane.xlu0 %2446
    %vm2448 = vcmp.eq.f32.partialorder %v2445, %v2447
    %v2449 = vsel %vm2448, %v2444, inf
    %2450 = vmin.xlane.f32.xlu0 %v2449
    %v2451 = vpop.xlane.xlu0 %2450
    %v2452 = vcvt.f32.s32 %v2451
    %v2453 = vcvt.f32.s32 %v2447
    %v2454 = vshll.u32 %v2453, 16
    %v2455 = vadd.s32 %v2454, %v2452
    %v2456 = vsel %vm353, %v2382, 2147483647
    %v2457 = vand.u32 %v2456, 65535
    %v2458 = vshra.s32 %v2456, 16
    %v2459 = vcvt.s32.f32 %v2457
    %v2460 = vcvt.s32.f32 %v2458
    %2461 = vmin.xlane.f32.xlu0 %v2460
    %v2462 = vpop.xlane.xlu0 %2461
    %vm2463 = vcmp.eq.f32.partialorder %v2460, %v2462
    %v2464 = vsel %vm2463, %v2459, inf
    %2465 = vmin.xlane.f32.xlu0 %v2464
    %v2466 = vpop.xlane.xlu0 %2465
    %v2467 = vcvt.f32.s32 %v2466
    %v2468 = vcvt.f32.s32 %v2462
    %v2469 = vshll.u32 %v2468, 16
    %v2470 = vadd.s32 %v2469, %v2467
    %v2471 = vsel %vm353, %v2383, 2147483647
    %v2472 = vand.u32 %v2471, 65535
    %v2473 = vshra.s32 %v2471, 16
    %v2474 = vcvt.s32.f32 %v2472
    %v2475 = vcvt.s32.f32 %v2473
    %2476 = vmin.xlane.f32.xlu0 %v2475
    %v2477 = vpop.xlane.xlu0 %2476
    %vm2478 = vcmp.eq.f32.partialorder %v2475, %v2477
    %v2479 = vsel %vm2478, %v2474, inf
    %2480 = vmin.xlane.f32.xlu0 %v2479
    %v2481 = vpop.xlane.xlu0 %2480
    %v2482 = vcvt.f32.s32 %v2481
    %v2483 = vcvt.f32.s32 %v2477
    %v2484 = vshll.u32 %v2483, 16
    %v2485 = vadd.s32 %v2484, %v2482
    %v2486 = vsel %vm353, %v2384, 2147483647
    %v2487 = vand.u32 %v2486, 65535
    %v2488 = vshra.s32 %v2486, 16
    %v2489 = vcvt.s32.f32 %v2487
    %v2490 = vcvt.s32.f32 %v2488
    %2491 = vmin.xlane.f32.xlu0 %v2490
    %v2492 = vpop.xlane.xlu0 %2491
    %vm2493 = vcmp.eq.f32.partialorder %v2490, %v2492
    %v2494 = vsel %vm2493, %v2489, inf
    %2495 = vmin.xlane.f32.xlu0 %v2494
    %v2496 = vpop.xlane.xlu0 %2495
    %v2497 = vcvt.f32.s32 %v2496
    %v2498 = vcvt.f32.s32 %v2492
    %v2499 = vshll.u32 %v2498, 16
    %v2500 = vadd.s32 %v2499, %v2497
    %v2501 = vsel %vm353, %v2385, 2147483647
    %v2502 = vand.u32 %v2501, 65535
    %v2503 = vshra.s32 %v2501, 16
    %v2504 = vcvt.s32.f32 %v2502
    %v2505 = vcvt.s32.f32 %v2503
    %2506 = vmin.xlane.f32.xlu0 %v2505
    %v2507 = vpop.xlane.xlu0 %2506
    %vm2508 = vcmp.eq.f32.partialorder %v2505, %v2507
    %v2509 = vsel %vm2508, %v2504, inf
    %2510 = vmin.xlane.f32.xlu0 %v2509
    %v2511 = vpop.xlane.xlu0 %2510
    %v2512 = vcvt.f32.s32 %v2511
    %v2513 = vcvt.f32.s32 %v2507
    %v2514 = vshll.u32 %v2513, 16
    %v2515 = vadd.s32 %v2514, %v2512
    %v2516 = vsel %vm353, %v2386, 2147483647
    %v2517 = vand.u32 %v2516, 65535
    %v2518 = vshra.s32 %v2516, 16
    %v2519 = vcvt.s32.f32 %v2517
    %v2520 = vcvt.s32.f32 %v2518
    %2521 = vmin.xlane.f32.xlu0 %v2520
    %v2522 = vpop.xlane.xlu0 %2521
    %vm2523 = vcmp.eq.f32.partialorder %v2520, %v2522
    %v2524 = vsel %vm2523, %v2519, inf
    %2525 = vmin.xlane.f32.xlu0 %v2524
    %v2526 = vpop.xlane.xlu0 %2525
    %v2527 = vcvt.f32.s32 %v2526
    %v2528 = vcvt.f32.s32 %v2522
    %v2529 = vshll.u32 %v2528, 16
    %v2530 = vadd.s32 %v2529, %v2527
    %v2531 = vsel %vm353, %v2387, 2147483647
    %v2532 = vand.u32 %v2531, 65535
    %v2533 = vshra.s32 %v2531, 16
    %v2534 = vcvt.s32.f32 %v2532
    %v2535 = vcvt.s32.f32 %v2533
    %2536 = vmin.xlane.f32.xlu0 %v2535
    %v2537 = vpop.xlane.xlu0 %2536
    %vm2538 = vcmp.eq.f32.partialorder %v2535, %v2537
    %v2539 = vsel %vm2538, %v2534, inf
    %2540 = vmin.xlane.f32.xlu0 %v2539
    %v2541 = vpop.xlane.xlu0 %2540
    %v2542 = vcvt.f32.s32 %v2541
    %v2543 = vcvt.f32.s32 %v2537
    %v2544 = vshll.u32 %v2543, 16
    %v2545 = vadd.s32 %v2544, %v2542
    %v2546 = vsel %vm353, %v2388, 2147483647
    %v2547 = vand.u32 %v2546, 65535
    %v2548 = vshra.s32 %v2546, 16
    %v2549 = vcvt.s32.f32 %v2547
    %v2550 = vcvt.s32.f32 %v2548
    %2551 = vmin.xlane.f32.xlu0 %v2550
    %v2552 = vpop.xlane.xlu0 %2551
    %vm2553 = vcmp.eq.f32.partialorder %v2550, %v2552
    %v2554 = vsel %vm2553, %v2549, inf
    %2555 = vmin.xlane.f32.xlu0 %v2554
    %v2556 = vpop.xlane.xlu0 %2555
    %v2557 = vcvt.f32.s32 %v2556
    %v2558 = vcvt.f32.s32 %v2552
    %v2559 = vshll.u32 %v2558, 16
    %v2560 = vadd.s32 %v2559, %v2557
    %v2561 = vsel %vm353, %v2389, 2147483647
    %v2562 = vand.u32 %v2561, 65535
    %v2563 = vshra.s32 %v2561, 16
    %v2564 = vcvt.s32.f32 %v2562
    %v2565 = vcvt.s32.f32 %v2563
    %2566 = vmin.xlane.f32.xlu0 %v2565
    %v2567 = vpop.xlane.xlu0 %2566
    %vm2568 = vcmp.eq.f32.partialorder %v2565, %v2567
    %v2569 = vsel %vm2568, %v2564, inf
    %2570 = vmin.xlane.f32.xlu0 %v2569
    %v2571 = vpop.xlane.xlu0 %2570
    %v2572 = vcvt.f32.s32 %v2571
    %v2573 = vcvt.f32.s32 %v2567
    %v2574 = vshll.u32 %v2573, 16
    %v2575 = vadd.s32 %v2574, %v2572
    %v2576 = vsel %vm353, %v2390, 2147483647
    %v2577 = vand.u32 %v2576, 65535
    %v2578 = vshra.s32 %v2576, 16
    %v2579 = vcvt.s32.f32 %v2577
    %v2580 = vcvt.s32.f32 %v2578
    %2581 = vmin.xlane.f32.xlu0 %v2580
    %v2582 = vpop.xlane.xlu0 %2581
    %vm2583 = vcmp.eq.f32.partialorder %v2580, %v2582
    %v2584 = vsel %vm2583, %v2579, inf
    %2585 = vmin.xlane.f32.xlu0 %v2584
    %v2586 = vpop.xlane.xlu0 %2585
    %v2587 = vcvt.f32.s32 %v2586
    %v2588 = vcvt.f32.s32 %v2582
    %v2589 = vshll.u32 %v2588, 16
    %v2590 = vadd.s32 %v2589, %v2587
    %v2591 = vsel %vm353, %v2391, 2147483647
    %v2592 = vand.u32 %v2591, 65535
    %v2593 = vshra.s32 %v2591, 16
    %v2594 = vcvt.s32.f32 %v2592
    %v2595 = vcvt.s32.f32 %v2593
    %2596 = vmin.xlane.f32.xlu0 %v2595
    %v2597 = vpop.xlane.xlu0 %2596
    %vm2598 = vcmp.eq.f32.partialorder %v2595, %v2597
    %v2599 = vsel %vm2598, %v2594, inf
    %2600 = vmin.xlane.f32.xlu0 %v2599
    %v2601 = vpop.xlane.xlu0 %2600
    %v2602 = vcvt.f32.s32 %v2601
    %v2603 = vcvt.f32.s32 %v2597
    %v2604 = vshll.u32 %v2603, 16
    %v2605 = vadd.s32 %v2604, %v2602
    %v2606 = vsel %vm353, %v2392, 2147483647
    %v2607 = vand.u32 %v2606, 65535
    %v2608 = vshra.s32 %v2606, 16
    %v2609 = vcvt.s32.f32 %v2607
    %v2610 = vcvt.s32.f32 %v2608
    %2611 = vmin.xlane.f32.xlu0 %v2610
    %v2612 = vpop.xlane.xlu0 %2611
    %vm2613 = vcmp.eq.f32.partialorder %v2610, %v2612
    %v2614 = vsel %vm2613, %v2609, inf
    %2615 = vmin.xlane.f32.xlu0 %v2614
    %v2616 = vpop.xlane.xlu0 %2615
    %v2617 = vcvt.f32.s32 %v2616
    %v2618 = vcvt.f32.s32 %v2612
    %v2619 = vshll.u32 %v2618, 16
    %v2620 = vadd.s32 %v2619, %v2617
    %v2621 = vsel %vm353, %v2393, 2147483647
    %v2622 = vand.u32 %v2621, 65535
    %v2623 = vshra.s32 %v2621, 16
    %v2624 = vcvt.s32.f32 %v2622
    %v2625 = vcvt.s32.f32 %v2623
    %2626 = vmin.xlane.f32.xlu0 %v2625
    %v2627 = vpop.xlane.xlu0 %2626
    %vm2628 = vcmp.eq.f32.partialorder %v2625, %v2627
    %v2629 = vsel %vm2628, %v2624, inf
    %2630 = vmin.xlane.f32.xlu0 %v2629
    %v2631 = vpop.xlane.xlu0 %2630
    %v2632 = vcvt.f32.s32 %v2631
    %v2633 = vcvt.f32.s32 %v2627
    %v2634 = vshll.u32 %v2633, 16
    %v2635 = vadd.s32 %v2634, %v2632
    %v2636 = vsel %vm353, %v2394, 2147483647
    %v2637 = vand.u32 %v2636, 65535
    %v2638 = vshra.s32 %v2636, 16
    %v2639 = vcvt.s32.f32 %v2637
    %v2640 = vcvt.s32.f32 %v2638
    %2641 = vmin.xlane.f32.xlu0 %v2640
    %v2642 = vpop.xlane.xlu0 %2641
    %vm2643 = vcmp.eq.f32.partialorder %v2640, %v2642
    %v2644 = vsel %vm2643, %v2639, inf
    %2645 = vmin.xlane.f32.xlu0 %v2644
    %v2646 = vpop.xlane.xlu0 %2645
    %v2647 = vcvt.f32.s32 %v2646
    %v2648 = vcvt.f32.s32 %v2642
    %v2649 = vshll.u32 %v2648, 16
    %v2650 = vadd.s32 %v2649, %v2647
    %v2651 = vsel %vm353, %v2395, 2147483647
    %v2652 = vand.u32 %v2651, 65535
    %v2653 = vshra.s32 %v2651, 16
    %v2654 = vcvt.s32.f32 %v2652
    %v2655 = vcvt.s32.f32 %v2653
    %2656 = vmin.xlane.f32.xlu0 %v2655
    %v2657 = vpop.xlane.xlu0 %2656
    %vm2658 = vcmp.eq.f32.partialorder %v2655, %v2657
    %v2659 = vsel %vm2658, %v2654, inf
    %2660 = vmin.xlane.f32.xlu0 %v2659
    %v2661 = vpop.xlane.xlu0 %2660
    %v2662 = vcvt.f32.s32 %v2661
    %v2663 = vcvt.f32.s32 %v2657
    %v2664 = vshll.u32 %v2663, 16
    %v2665 = vadd.s32 %v2664, %v2662
    %v2666 = vsel %vm353, %v2396, 2147483647
    %v2667 = vand.u32 %v2666, 65535
    %v2668 = vshra.s32 %v2666, 16
    %v2669 = vcvt.s32.f32 %v2667
    %v2670 = vcvt.s32.f32 %v2668
    %2671 = vmin.xlane.f32.xlu0 %v2670
    %v2672 = vpop.xlane.xlu0 %2671
    %vm2673 = vcmp.eq.f32.partialorder %v2670, %v2672
    %v2674 = vsel %vm2673, %v2669, inf
    %2675 = vmin.xlane.f32.xlu0 %v2674
    %v2676 = vpop.xlane.xlu0 %2675
    %v2677 = vcvt.f32.s32 %v2676
    %v2678 = vcvt.f32.s32 %v2672
    %v2679 = vshll.u32 %v2678, 16
    %v2680 = vadd.s32 %v2679, %v2677
    %v2681 = vsel %vm353, %v2397, 2147483647
    %v2682 = vand.u32 %v2681, 65535
    %v2683 = vshra.s32 %v2681, 16
    %v2684 = vcvt.s32.f32 %v2682
    %v2685 = vcvt.s32.f32 %v2683
    %2686 = vmin.xlane.f32.xlu0 %v2685
    %v2687 = vpop.xlane.xlu0 %2686
    %vm2688 = vcmp.eq.f32.partialorder %v2685, %v2687
    %v2689 = vsel %vm2688, %v2684, inf
    %2690 = vmin.xlane.f32.xlu0 %v2689
    %v2691 = vpop.xlane.xlu0 %2690
    %v2692 = vcvt.f32.s32 %v2691
    %v2693 = vcvt.f32.s32 %v2687
    %v2694 = vshll.u32 %v2693, 16
    %v2695 = vadd.s32 %v2694, %v2692
    %v2696 = vsel %vm353, %v2398, 2147483647
    %v2697 = vand.u32 %v2696, 65535
    %v2698 = vshra.s32 %v2696, 16
    %v2699 = vcvt.s32.f32 %v2697
    %v2700 = vcvt.s32.f32 %v2698
    %2701 = vmin.xlane.f32.xlu0 %v2700
    %v2702 = vpop.xlane.xlu0 %2701
    %vm2703 = vcmp.eq.f32.partialorder %v2700, %v2702
    %v2704 = vsel %vm2703, %v2699, inf
    %2705 = vmin.xlane.f32.xlu0 %v2704
    %v2706 = vpop.xlane.xlu0 %2705
    %v2707 = vcvt.f32.s32 %v2706
    %v2708 = vcvt.f32.s32 %v2702
    %v2709 = vshll.u32 %v2708, 16
    %v2710 = vadd.s32 %v2709, %v2707
    %v2711 = vsel %vm353, %v2399, 2147483647
    %v2712 = vand.u32 %v2711, 65535
    %v2713 = vshra.s32 %v2711, 16
    %v2714 = vcvt.s32.f32 %v2712
    %v2715 = vcvt.s32.f32 %v2713
    %2716 = vmin.xlane.f32.xlu0 %v2715
    %v2717 = vpop.xlane.xlu0 %2716
    %vm2718 = vcmp.eq.f32.partialorder %v2715, %v2717
    %v2719 = vsel %vm2718, %v2714, inf
    %2720 = vmin.xlane.f32.xlu0 %v2719
    %v2721 = vpop.xlane.xlu0 %2720
    %v2722 = vcvt.f32.s32 %v2721
    %v2723 = vcvt.f32.s32 %v2717
    %v2724 = vshll.u32 %v2723, 16
    %v2725 = vadd.s32 %v2724, %v2722
    %v2726 = vsel %vm353, %v2400, 2147483647
    %v2727 = vand.u32 %v2726, 65535
    %v2728 = vshra.s32 %v2726, 16
    %v2729 = vcvt.s32.f32 %v2727
    %v2730 = vcvt.s32.f32 %v2728
    %2731 = vmin.xlane.f32.xlu0 %v2730
    %v2732 = vpop.xlane.xlu0 %2731
    %vm2733 = vcmp.eq.f32.partialorder %v2730, %v2732
    %v2734 = vsel %vm2733, %v2729, inf
    %2735 = vmin.xlane.f32.xlu0 %v2734
    %v2736 = vpop.xlane.xlu0 %2735
    %v2737 = vcvt.f32.s32 %v2736
    %v2738 = vcvt.f32.s32 %v2732
    %v2739 = vshll.u32 %v2738, 16
    %v2740 = vadd.s32 %v2739, %v2737
    %v2741 = vsel %vm353, %v2401, 2147483647
    %v2742 = vand.u32 %v2741, 65535
    %v2743 = vshra.s32 %v2741, 16
    %v2744 = vcvt.s32.f32 %v2742
    %v2745 = vcvt.s32.f32 %v2743
    %2746 = vmin.xlane.f32.xlu0 %v2745
    %v2747 = vpop.xlane.xlu0 %2746
    %vm2748 = vcmp.eq.f32.partialorder %v2745, %v2747
    %v2749 = vsel %vm2748, %v2744, inf
    %2750 = vmin.xlane.f32.xlu0 %v2749
    %v2751 = vpop.xlane.xlu0 %2750
    %v2752 = vcvt.f32.s32 %v2751
    %v2753 = vcvt.f32.s32 %v2747
    %v2754 = vshll.u32 %v2753, 16
    %v2755 = vadd.s32 %v2754, %v2752
    %v2756 = vsel %vm353, %v2402, 2147483647
    %v2757 = vand.u32 %v2756, 65535
    %v2758 = vshra.s32 %v2756, 16
    %v2759 = vcvt.s32.f32 %v2757
    %v2760 = vcvt.s32.f32 %v2758
    %2761 = vmin.xlane.f32.xlu0 %v2760
    %v2762 = vpop.xlane.xlu0 %2761
    %vm2763 = vcmp.eq.f32.partialorder %v2760, %v2762
    %v2764 = vsel %vm2763, %v2759, inf
    %2765 = vmin.xlane.f32.xlu0 %v2764
    %v2766 = vpop.xlane.xlu0 %2765
    %v2767 = vcvt.f32.s32 %v2766
    %v2768 = vcvt.f32.s32 %v2762
    %v2769 = vshll.u32 %v2768, 16
    %v2770 = vadd.s32 %v2769, %v2767
    %v2771 = vsel %vm353, %v2403, 2147483647
    %v2772 = vand.u32 %v2771, 65535
    %v2773 = vshra.s32 %v2771, 16
    %v2774 = vcvt.s32.f32 %v2772
    %v2775 = vcvt.s32.f32 %v2773
    %2776 = vmin.xlane.f32.xlu0 %v2775
    %v2777 = vpop.xlane.xlu0 %2776
    %vm2778 = vcmp.eq.f32.partialorder %v2775, %v2777
    %v2779 = vsel %vm2778, %v2774, inf
    %2780 = vmin.xlane.f32.xlu0 %v2779
    %v2781 = vpop.xlane.xlu0 %2780
    %v2782 = vcvt.f32.s32 %v2781
    %v2783 = vcvt.f32.s32 %v2777
    %v2784 = vshll.u32 %v2783, 16
    %v2785 = vadd.s32 %v2784, %v2782
    %v2786 = vsel %vm353, %v2404, 2147483647
    %v2787 = vand.u32 %v2786, 65535
    %v2788 = vshra.s32 %v2786, 16
    %v2789 = vcvt.s32.f32 %v2787
    %v2790 = vcvt.s32.f32 %v2788
    %2791 = vmin.xlane.f32.xlu0 %v2790
    %v2792 = vpop.xlane.xlu0 %2791
    %vm2793 = vcmp.eq.f32.partialorder %v2790, %v2792
    %v2794 = vsel %vm2793, %v2789, inf
    %2795 = vmin.xlane.f32.xlu0 %v2794
    %v2796 = vpop.xlane.xlu0 %2795
    %v2797 = vcvt.f32.s32 %v2796
    %v2798 = vcvt.f32.s32 %v2792
    %v2799 = vshll.u32 %v2798, 16
    %v2800 = vadd.s32 %v2799, %v2797
    %v2801 = vsel %vm353, %v2405, 2147483647
    %v2802 = vand.u32 %v2801, 65535
    %v2803 = vshra.s32 %v2801, 16
    %v2804 = vcvt.s32.f32 %v2802
    %v2805 = vcvt.s32.f32 %v2803
    %2806 = vmin.xlane.f32.xlu0 %v2805
    %v2807 = vpop.xlane.xlu0 %2806
    %vm2808 = vcmp.eq.f32.partialorder %v2805, %v2807
    %v2809 = vsel %vm2808, %v2804, inf
    %2810 = vmin.xlane.f32.xlu0 %v2809
    %v2811 = vpop.xlane.xlu0 %2810
    %v2812 = vcvt.f32.s32 %v2811
    %v2813 = vcvt.f32.s32 %v2807
    %v2814 = vshll.u32 %v2813, 16
    %v2815 = vadd.s32 %v2814, %v2812
    %v2816 = vsel %vm353, %v2406, 2147483647
    %v2817 = vand.u32 %v2816, 65535
    %v2818 = vshra.s32 %v2816, 16
    %v2819 = vcvt.s32.f32 %v2817
    %v2820 = vcvt.s32.f32 %v2818
    %2821 = vmin.xlane.f32.xlu0 %v2820
    %v2822 = vpop.xlane.xlu0 %2821
    %vm2823 = vcmp.eq.f32.partialorder %v2820, %v2822
    %v2824 = vsel %vm2823, %v2819, inf
    %2825 = vmin.xlane.f32.xlu0 %v2824
    %v2826 = vpop.xlane.xlu0 %2825
    %v2827 = vcvt.f32.s32 %v2826
    %v2828 = vcvt.f32.s32 %v2822
    %v2829 = vshll.u32 %v2828, 16
    %v2830 = vadd.s32 %v2829, %v2827
    %v2831 = vsel %vm353, %v2407, 2147483647
    %v2832 = vand.u32 %v2831, 65535
    %v2833 = vshra.s32 %v2831, 16
    %v2834 = vcvt.s32.f32 %v2832
    %v2835 = vcvt.s32.f32 %v2833
    %2836 = vmin.xlane.f32.xlu0 %v2835
    %v2837 = vpop.xlane.xlu0 %2836
    %vm2838 = vcmp.eq.f32.partialorder %v2835, %v2837
    %v2839 = vsel %vm2838, %v2834, inf
    %2840 = vmin.xlane.f32.xlu0 %v2839
    %v2841 = vpop.xlane.xlu0 %2840
    %v2842 = vcvt.f32.s32 %v2841
    %v2843 = vcvt.f32.s32 %v2837
    %v2844 = vshll.u32 %v2843, 16
    %v2845 = vadd.s32 %v2844, %v2842
    %v2846 = vsel %vm353, %v2408, 2147483647
    %v2847 = vand.u32 %v2846, 65535
    %v2848 = vshra.s32 %v2846, 16
    %v2849 = vcvt.s32.f32 %v2847
    %v2850 = vcvt.s32.f32 %v2848
    %2851 = vmin.xlane.f32.xlu0 %v2850
    %v2852 = vpop.xlane.xlu0 %2851
    %vm2853 = vcmp.eq.f32.partialorder %v2850, %v2852
    %v2854 = vsel %vm2853, %v2849, inf
    %2855 = vmin.xlane.f32.xlu0 %v2854
    %v2856 = vpop.xlane.xlu0 %2855
    %v2857 = vcvt.f32.s32 %v2856
    %v2858 = vcvt.f32.s32 %v2852
    %v2859 = vshll.u32 %v2858, 16
    %v2860 = vadd.s32 %v2859, %v2857
    %v2861 = vsel %vm353, %v2409, 2147483647
    %v2862 = vand.u32 %v2861, 65535
    %v2863 = vshra.s32 %v2861, 16
    %v2864 = vcvt.s32.f32 %v2862
    %v2865 = vcvt.s32.f32 %v2863
    %2866 = vmin.xlane.f32.xlu0 %v2865
    %v2867 = vpop.xlane.xlu0 %2866
    %vm2868 = vcmp.eq.f32.partialorder %v2865, %v2867
    %v2869 = vsel %vm2868, %v2864, inf
    %2870 = vmin.xlane.f32.xlu0 %v2869
    %v2871 = vpop.xlane.xlu0 %2870
    %v2872 = vcvt.f32.s32 %v2871
    %v2873 = vcvt.f32.s32 %v2867
    %v2874 = vshll.u32 %v2873, 16
    %v2875 = vadd.s32 %v2874, %v2872
    %v2876 = vsel %vm353, %v2410, 2147483647
    %v2877 = vand.u32 %v2876, 65535
    %v2878 = vshra.s32 %v2876, 16
    %v2879 = vcvt.s32.f32 %v2877
    %v2880 = vcvt.s32.f32 %v2878
    %2881 = vmin.xlane.f32.xlu0 %v2880
    %v2882 = vpop.xlane.xlu0 %2881
    %vm2883 = vcmp.eq.f32.partialorder %v2880, %v2882
    %v2884 = vsel %vm2883, %v2879, inf
    %2885 = vmin.xlane.f32.xlu0 %v2884
    %v2886 = vpop.xlane.xlu0 %2885
    %v2887 = vcvt.f32.s32 %v2886
    %v2888 = vcvt.f32.s32 %v2882
    %v2889 = vshll.u32 %v2888, 16
    %v2890 = vadd.s32 %v2889, %v2887
    %v2891 = vcvt.s32.f32 %v2425
    %v2892 = vcvt.s32.f32 %v2440
    %v2893 = vcvt.s32.f32 %v2455
    %v2894 = vcvt.s32.f32 %v2470
    %v2895 = vcvt.s32.f32 %v2485
    %v2896 = vcvt.s32.f32 %v2500
    %v2897 = vcvt.s32.f32 %v2515
    %v2898 = vcvt.s32.f32 %v2530
    %v2899 = vcvt.s32.f32 %v2545
    %v2900 = vcvt.s32.f32 %v2560
    %v2901 = vcvt.s32.f32 %v2575
    %v2902 = vcvt.s32.f32 %v2590
    %v2903 = vcvt.s32.f32 %v2605
    %v2904 = vcvt.s32.f32 %v2620
    %v2905 = vcvt.s32.f32 %v2635
    %v2906 = vcvt.s32.f32 %v2650
    %v2907 = vcvt.s32.f32 %v2665
    %v2908 = vcvt.s32.f32 %v2680
    %v2909 = vcvt.s32.f32 %v2695
    %v2910 = vcvt.s32.f32 %v2710
    %v2911 = vcvt.s32.f32 %v2725
    %v2912 = vcvt.s32.f32 %v2740
    %v2913 = vcvt.s32.f32 %v2755
    %v2914 = vcvt.s32.f32 %v2770
    %v2915 = vcvt.s32.f32 %v2785
    %v2916 = vcvt.s32.f32 %v2800
    %v2917 = vcvt.s32.f32 %v2815
    %v2918 = vcvt.s32.f32 %v2830
    %v2919 = vcvt.s32.f32 %v2845
    %v2920 = vcvt.s32.f32 %v2860
    %v2921 = vcvt.s32.f32 %v2875
    %v2922 = vcvt.s32.f32 %v2890
    %2923 = vxpose.xlu0.b32.start [1/16] %v2891, 128
    %2924 = vxpose.xlu0.b32.cont [2/16] %v2892, 128
    %2925 = vxpose.xlu0.b32.cont [3/16] %v2893, 128
    %2926 = vxpose.xlu0.b32.cont [4/16] %v2894, 128
    %2927 = vxpose.xlu0.b32.cont [5/16] %v2895, 128
    %2928 = vxpose.xlu0.b32.cont [6/16] %v2896, 128
    %2929 = vxpose.xlu0.b32.cont [7/16] %v2897, 128
    %2930 = vxpose.xlu0.b32.cont [8/16] %v2898, 128
    %2931 = vxpose.xlu0.b32.cont [9/16] %v2899, 128
    %2932 = vxpose.xlu0.b32.cont [10/16] %v2900, 128
    %2933 = vxpose.xlu0.b32.cont [11/16] %v2901, 128
    %2934 = vxpose.xlu0.b32.cont [12/16] %v2902, 128
    %2935 = vxpose.xlu0.b32.cont [13/16] %v2903, 128
    %2936 = vxpose.xlu0.b32.cont [14/16] %v2904, 128
    %2937 = vxpose.xlu0.b32.cont [15/16] %v2905, 128
    %2938 = vxpose.xlu0.b32.end [16/16] %v2906, 128
    %v2939 = vpop.trf.xlu0
    %v2940 = vpop.trf.xlu0
    %v2941 = vpop.trf.xlu0
    %v2942 = vpop.trf.xlu0
    %v2943 = vpop.trf.xlu0
    %v2944 = vpop.trf.xlu0
    %v2945 = vpop.trf.xlu0
    %v2946 = vpop.trf.xlu0
    %v2947 = vpop.trf.xlu0
    %v2948 = vpop.trf.xlu0
    %v2949 = vpop.trf.xlu0
    %v2950 = vpop.trf.xlu0
    %v2951 = vpop.trf.xlu0
    %v2952 = vpop.trf.xlu0
    %v2953 = vpop.trf.xlu0
    %v2954 = vpop.trf.xlu0
    %2955 = vxpose.xlu0.b32.start [1/16] %v2907, 128
    %2956 = vxpose.xlu0.b32.cont [2/16] %v2908, 128
    %2957 = vxpose.xlu0.b32.cont [3/16] %v2909, 128
    %2958 = vxpose.xlu0.b32.cont [4/16] %v2910, 128
    %2959 = vxpose.xlu0.b32.cont [5/16] %v2911, 128
    %2960 = vxpose.xlu0.b32.cont [6/16] %v2912, 128
    %2961 = vxpose.xlu0.b32.cont [7/16] %v2913, 128
    %2962 = vxpose.xlu0.b32.cont [8/16] %v2914, 128
    %2963 = vxpose.xlu0.b32.cont [9/16] %v2915, 128
    %2964 = vxpose.xlu0.b32.cont [10/16] %v2916, 128
    %2965 = vxpose.xlu0.b32.cont [11/16] %v2917, 128
    %2966 = vxpose.xlu0.b32.cont [12/16] %v2918, 128
    %2967 = vxpose.xlu0.b32.cont [13/16] %v2919, 128
    %2968 = vxpose.xlu0.b32.cont [14/16] %v2920, 128
    %2969 = vxpose.xlu0.b32.cont [15/16] %v2921, 128
    %2970 = vxpose.xlu0.b32.end [16/16] %v2922, 128
    %v2971 = vpop.trf.xlu0
    %v2972 = vpop.trf.xlu0
    %v2973 = vpop.trf.xlu0
    %v2974 = vpop.trf.xlu0
    %v2975 = vpop.trf.xlu0
    %v2976 = vpop.trf.xlu0
    %v2977 = vpop.trf.xlu0
    %v2978 = vpop.trf.xlu0
    %v2979 = vpop.trf.xlu0
    %v2980 = vpop.trf.xlu0
    %v2981 = vpop.trf.xlu0
    %v2982 = vpop.trf.xlu0
    %v2983 = vpop.trf.xlu0
    %v2984 = vpop.trf.xlu0
    %v2985 = vpop.trf.xlu0
    %v2986 = vpop.trf.xlu0
    %v2989 = vcombine.low %v2939, %v2971
    %v2991 = vunpack.c.l.s4 1966171168
    %v2992 = vunpack.c.0.s8 %v2991
    %v2993 = vlaneseq
    %v2994 = vshrl.u32 %v2993, 7
    %v2995 = vsub.s32 %v2992, %v2994
    %v2996 = vrot.slane %v2989, %v2995
    %v2998 = vunpack.c.l.s4 1966171168
    %v2999 = vunpack.c.0.s8 %v2998
    %v3000 = vlaneseq
    %v3001 = vshrl.u32 %v3000, 7
    %v3002 = vsub.s32 %v2999, %v3001
    %v3003 = vrot.slane %v2996, %v3002
    %v3005 = vlaneseq
    %vm3006 = vcmp.ge.s32.totalorder %v3005, 0
    %vm3007 = vcmp.lt.s32.totalorder %v3005, 256
    %vm3008 = vmand %vm3006, %vm3007
    %3009 = vst.msk [vmem:[#allocation2] sm:$0x3] %vm3008, %v3003
    // Predicated region
    $region38: #{tpu_custom_call.1} parent=1 // pred_check
      _
    $region39: #{tpu_custom_call.1} parent=1 // pred_check_branch
      %3011 = sbr.rel (0) target = $region41
    $region40: #{tpu_custom_call.1} parent=1 // pred_region
      %s3013 = ssub.s32 32, 32
      %3014 = vsyncadd [#allocation3], %s3013
      %s3016 = sshll.u32 [#allocation2], 4
      %s3017 = int_to_ptr.vmem [resolvable:$true] %s3016
      %3019 = dma.vmem_to_hbm [thread:$0]  %s3017, 32, %s9, [#allocation3]
    $region41: #{tpu_custom_call.1} parent=1 // pred_fallthru
      _
    // Predicated region
    $region42: #{tpu_custom_call.1} parent=1 // pred_check
      _
    $region43: #{tpu_custom_call.1} parent=1 // pred_check_branch
      %3021 = sbr.rel (0) target = $region45
    $region44: #{tpu_custom_call.1} parent=1 // pred_region
      %3022 = dma.done [#allocation3], 32
    $region45: #{tpu_custom_call.1} parent=1 // pred_fallthru
      _
    %3023 = vsyncpa [#allocation3], 1

</llo_original>
